<compile_context>
chip_gen: v7x
topology: tpu7x:2x2x1
jax: 0.10.0
libtpu: 0.0.40
codegen_flags: <defaults>
</compile_context>

<pallas_src>
import functools

import jax
import jax.numpy as jnp
from jax.experimental import pallas as pl
from jax.experimental.pallas import tpu as pltpu

EPS = 1e-5
TM_A = 256        # row tile for Stage A (conv1)
TM_D = 256        # row tile for Stage D (bn3 + residual)
GROUP_H = 8       # image rows per fused 3x3 matmul group in Stage B


def _round_up(x, m):
  return ((x + m - 1) // m) * m


# ---------------------------------------------------------------------------
# Stage A: conv1 (1x1) on compact HxW rows + per-channel sum / sumsq.
# ---------------------------------------------------------------------------
def _conv1_kernel(x_ref, w1_ref, h1_ref, sum_ref, sq_ref):
  t = pl.program_id(1)
  h = jnp.dot(x_ref[0], w1_ref[...], preferred_element_type=jnp.float32)
  h_bf = h.astype(jnp.bfloat16)
  h1_ref[0] = h_bf
  hf = h_bf.astype(jnp.float32)                 # stats of what is stored
  hs = jnp.sum(hf, axis=0, keepdims=True)
  hq = jnp.sum(hf * hf, axis=0, keepdims=True)

  @pl.when(t == 0)
  def _init():
    sum_ref[0] = jnp.zeros_like(hs)
    sq_ref[0] = jnp.zeros_like(hq)

  sum_ref[0] += hs
  sq_ref[0] += hq


# ---------------------------------------------------------------------------
# Stage B: bn1 + relu -> conv2 (3x3, pad=1) fused as K=9P matmuls per group
#          of image rows, emitting compact (HxW, P) rows + sum / sumsq.
# ---------------------------------------------------------------------------
def _conv2_kernel(h1_ref, sc1_ref, sh1_ref, w2_ref,
                  h2_ref, sum_ref, sq_ref, a2_scr, *, H, W):
  P = h1_ref.shape[-1]
  Wp = W + 2

  # Zero the padded plane scratch: pad / halo rows must be exact zeros.
  a2_scr[...] = jnp.zeros_like(a2_scr)

  # bn1 + relu on the compact conv1 output (bf16 for the MXU & halved VMEM).
  a2 = jnp.maximum(
      h1_ref[0].astype(jnp.float32) * sc1_ref[...] + sh1_ref[...],
      0.0).astype(jnp.bfloat16)

  # Scatter valid pixels into the (Hp x Wp) row-major padded plane.
  for r in range(H):
    dst = (r + 1) * Wp + 1
    a2_scr[dst:dst + W, :] = a2[r * W:(r + 1) * W, :]

  s_sum = jnp.zeros((1, P), jnp.float32)
  s_sq = jnp.zeros((1, P), jnp.float32)
  r0 = 0
  while r0 < H:                                  # static loop over row groups
    g = min(GROUP_H, H - r0)
    base = r0 * Wp
    # 9 taps fused into one matmul: each tap is a contiguous row shift of the
    # padded-flat plane, so the staging buffer is 9 cheap VMEM slices.
    windows = []
    for k in range(9):
      s = base + (k // 3) * Wp + (k % 3)
      windows.append(a2_scr[s:s + g * Wp, :])
    stag = jnp.concatenate(windows, axis=1)                 # (g*Wp, 9P) bf16
    res = jnp.dot(stag, w2_ref[...], preferred_element_type=jnp.float32)
    # Compact: drop the 2 junk columns of every image row -> (g*W, P).
    comp = jnp.concatenate(
        [res[r * Wp:r * Wp + W, :] for r in range(g)], axis=0)
    comp_bf = comp.astype(jnp.bfloat16)
    h2_ref[0, r0 * W:(r0 + g) * W, :] = comp_bf
    cf = comp_bf.astype(jnp.float32)
    s_sum = s_sum + jnp.sum(cf, axis=0, keepdims=True)
    s_sq = s_sq + jnp.sum(cf * cf, axis=0, keepdims=True)
    r0 += g

  sum_ref[0] = s_sum
  sq_ref[0] = s_sq


# ---------------------------------------------------------------------------
# Stage C: bn2 + relu -> conv3 (1x1) on compact rows + sum / sumsq.
# ---------------------------------------------------------------------------
def _conv3_kernel(h2_ref, sc2_ref, sh2_ref, w3_ref,
                  h3_ref, sum_ref, sq_ref, *, pad_rows):
  a3 = jnp.maximum(
      h2_ref[0].astype(jnp.float32) * sc2_ref[...] + sh2_ref[...], 0.0)
  h3 = jnp.dot(a3.astype(jnp.bfloat16), w3_ref[...],
               preferred_element_type=jnp.float32)
  h3_bf = h3.astype(jnp.bfloat16)
  hw = h3_bf.shape[0]
  h3_ref[0, :hw, :] = h3_bf
  if pad_rows:                                   # keep tile-pad rows defined
    h3_ref[0, hw:, :] = jnp.zeros((pad_rows, h3_bf.shape[1]), jnp.bfloat16)
  hf = h3_bf.astype(jnp.float32)
  sum_ref[0] = jnp.sum(hf, axis=0, keepdims=True)
  sq_ref[0] = jnp.sum(hf * hf, axis=0, keepdims=True)


# ---------------------------------------------------------------------------
# Stage D: bn3 + residual + relu (pure elementwise, fully tiled & parallel).
# ---------------------------------------------------------------------------
def _bn3_res_kernel(h3_ref, r_ref, sc3_ref, sh3_ref, o_ref):
  y = h3_ref[0].astype(jnp.float32) * sc3_ref[...] + sh3_ref[...] + r_ref[0]
  o_ref[0] = jnp.maximum(y, 0.0)


def _bn_affine(sum_nc, sq_nc, gamma, beta, count):
  """Finalize per-channel BN scale/shift from accumulated sum / sumsq."""
  s = jnp.sum(sum_nc, axis=(0, 1))
  q = jnp.sum(sq_nc, axis=(0, 1))
  mean = s / count
  var = q / count - mean * mean
  scale = gamma * jax.lax.rsqrt(var + EPS)
  shift = beta - mean * scale
  return scale.reshape(1, -1), shift.reshape(1, -1)


@jax.jit
def bottleneck_forward(x_nchw, params):
  N, Cin, H, W = x_nchw.shape
  P = params["w1"].shape[0]                 # planes
  Cout = 4 * P                              # expansion = 4
  assert Cin == Cout, "downsample=None requires inplanes == planes*expansion"
  M = float(N * H * W)                      # count of valid BN positions
  Wp = W + 2
  HWA = _round_up(H * W, TM_A)              # Stage A rows (compact + tile pad)
  HWD = _round_up(H * W, TM_D)              # Stage D rows (compact + tile pad)
  R1 = _round_up((H + 2) * Wp + 2, 8)       # padded-plane scratch rows

  x_nhwc = jnp.transpose(x_nchw, (0, 2, 3, 1)).astype(jnp.float32)
  x_flat = x_nhwc.reshape(N, H * W, Cin)
  x_a = jnp.pad(x_flat, ((0, 0), (0, HWA - H * W), (0, 0))).astype(jnp.bfloat16)
  x_res = jnp.pad(x_flat, ((0, 0), (0, HWD - H * W), (0, 0)))   # f32 residual

  # Weights, reorganised for channel-last matmuls, bf16 for the MXU.
  w1m = params["w1"][:, :, 0, 0].T.astype(jnp.bfloat16)               # (Cin, P)
  w2m = jnp.transpose(params["w2"], (2, 3, 1, 0)).reshape(9 * P, P)   # (9P, P)
  w2m = w2m.astype(jnp.bfloat16)
  w3m = params["w3"][:, :, 0, 0].T.astype(jnp.bfloat16)               # (P, Cout)

  # ---------------- Stage A: conv1 + stats1 ----------------
  h1, s1_sum, s1_sq = pl.pallas_call(
      _conv1_kernel,
      grid=(N, HWA // TM_A),
      in_specs=[
          pl.BlockSpec((1, TM_A, Cin), lambda n, t: (n, t, 0)),
          pl.BlockSpec((Cin, P), lambda n, t: (0, 0)),
      ],
      out_specs=[
          pl.BlockSpec((1, TM_A, P), lambda n, t: (n, t, 0)),
          pl.BlockSpec((1, 1, P), lambda n, t: (n, 0, 0)),
          pl.BlockSpec((1, 1, P), lambda n, t: (n, 0, 0)),
      ],
      out_shape=[
          jax.ShapeDtypeStruct((N, HWA, P), jnp.bfloat16),
          jax.ShapeDtypeStruct((N, 1, P), jnp.float32),
          jax.ShapeDtypeStruct((N, 1, P), jnp.float32),
      ],
      compiler_params=pltpu.CompilerParams(
          dimension_semantics=("parallel", "arbitrary")),
  )(x_a, w1m)
  sc1, sh1 = _bn_affine(s1_sum, s1_sq, params["g1"], params["b1"], M)

  # ---------------- Stage B: bn1+relu -> fused 3x3 conv + stats2 -------------
  h2, s2_sum, s2_sq = pl.pallas_call(
      functools.partial(_conv2_kernel, H=H, W=W),
      grid=(N,),
      in_specs=[
          pl.BlockSpec((1, HWA, P), lambda n: (n, 0, 0)),
          pl.BlockSpec((1, P), lambda n: (0, 0)),
          pl.BlockSpec((1, P), lambda n: (0, 0)),
          pl.BlockSpec((9 * P, P), lambda n: (0, 0)),
      ],
      out_specs=[
          pl.BlockSpec((1, H * W, P), lambda n: (n, 0, 0)),
          pl.BlockSpec((1, 1, P), lambda n: (n, 0, 0)),
          pl.BlockSpec((1, 1, P), lambda n: (n, 0, 0)),
      ],
      out_shape=[
          jax.ShapeDtypeStruct((N, H * W, P), jnp.bfloat16),
          jax.ShapeDtypeStruct((N, 1, P), jnp.float32),
          jax.ShapeDtypeStruct((N, 1, P), jnp.float32),
      ],
      scratch_shapes=[pltpu.VMEM((R1, P), jnp.bfloat16)],
      compiler_params=pltpu.CompilerParams(dimension_semantics=("parallel",)),
  )(h1, sc1, sh1, w2m)
  sc2, sh2 = _bn_affine(s2_sum, s2_sq, params["g2"], params["b2"], M)

  # ---------------- Stage C: bn2+relu -> conv3 (1x1) + stats3 ----------------
  h3, s3_sum, s3_sq = pl.pallas_call(
      functools.partial(_conv3_kernel, pad_rows=HWD - H * W),
      grid=(N,),
      in_specs=[
          pl.BlockSpec((1, H * W, P), lambda n: (n, 0, 0)),
          pl.BlockSpec((1, P), lambda n: (0, 0)),
          pl.BlockSpec((1, P), lambda n: (0, 0)),
          pl.BlockSpec((P, Cout), lambda n: (0, 0)),
      ],
      out_specs=[
          pl.BlockSpec((1, HWD, Cout), lambda n: (n, 0, 0)),
          pl.BlockSpec((1, 1, Cout), lambda n: (n, 0, 0)),
          pl.BlockSpec((1, 1, Cout), lambda n: (n, 0, 0)),
      ],
      out_shape=[
          jax.ShapeDtypeStruct((N, HWD, Cout), jnp.bfloat16),
          jax.ShapeDtypeStruct((N, 1, Cout), jnp.float32),
          jax.ShapeDtypeStruct((N, 1, Cout), jnp.float32),
      ],
      compiler_params=pltpu.CompilerParams(dimension_semantics=("parallel",)),
  )(h2, sc2, sh2, w3m)
  sc3, sh3 = _bn_affine(s3_sum, s3_sq, params["g3"], params["b3"], M)

  # ---------------- Stage D: bn3 + residual + relu ----------------
  out_flat = pl.pallas_call(
      _bn3_res_kernel,
      grid=(N, HWD // TM_D),
      in_specs=[
          pl.BlockSpec((1, TM_D, Cout), lambda n, t: (n, t, 0)),
          pl.BlockSpec((1, TM_D, Cout), lambda n, t: (n, t, 0)),
          pl.BlockSpec((1, Cout), lambda n, t: (0, 0)),
          pl.BlockSpec((1, Cout), lambda n, t: (0, 0)),
      ],
      out_specs=pl.BlockSpec((1, TM_D, Cout), lambda n, t: (n, t, 0)),
      out_shape=jax.ShapeDtypeStruct((N, HWD, Cout), jnp.float32),
      compiler_params=pltpu.CompilerParams(
          dimension_semantics=("parallel", "parallel")),
  )(h3, x_res, sc3, sh3)

  out = out_flat[:, :H * W, :].reshape(N, H, W, Cout)
  return jnp.transpose(out, (0, 3, 1, 2))


# ---------------------------------------------------------------------------
# Pure-JAX reference with the same precision policy: bf16 conv inputs,
# bf16 inter-stage activation storage, f32 BN math and f32 residual add.
# ---------------------------------------------------------------------------
def reference_forward(x, params):
  conv = functools.partial(
      jax.lax.conv_general_dilated,
      dimension_numbers=("NCHW", "OIHW", "NCHW"),
      precision=jax.lax.Precision.HIGHEST)
  q = lambda t: t.astype(jnp.bfloat16).astype(jnp.float32)

  def bn(h, g, b):
    mean = jnp.mean(h, axis=(0, 2, 3), keepdims=True)
    var = jnp.mean((h - mean) ** 2, axis=(0, 2, 3), keepdims=True)
    return ((h - mean) * jax.lax.rsqrt(var + EPS) * g.reshape(1, -1, 1, 1)
            + b.reshape(1, -1, 1, 1))

  h1 = q(conv(q(x), q(params["w1"]), (1, 1), [(0, 0), (0, 0)]))
  a2 = jnp.maximum(bn(h1, params["g1"], params["b1"]), 0.0)
  h2 = q(conv(q(a2), q(params["w2"]), (1, 1), [(1, 1), (1, 1)]))
  a3 = jnp.maximum(bn(h2, params["g2"], params["b2"]), 0.0)
  h3 = q(conv(q(a3), q(params["w3"]), (1, 1), [(0, 0), (0, 0)]))
  out = bn(h3, params["g3"], params["b3"]) + x
  return jnp.maximum(out, 0.0)


def init_params(key, inplanes, planes):
  exp = 4
  ks = jax.random.split(key, 9)
  return {
      "w1": 0.1 * jax.random.normal(ks[0], (planes, inplanes, 1, 1), jnp.float32),
      "w2": 0.1 * jax.random.normal(ks[1], (planes, planes, 3, 3), jnp.float32),
      "w3": 0.1 * jax.random.normal(ks[2], (planes * exp, planes, 1, 1), jnp.float32),
      "g1": 1.0 + 0.1 * jax.random.normal(ks[3], (planes,), jnp.float32),
      "b1": 0.1 * jax.random.normal(ks[4], (planes,), jnp.float32),
      "g2": 1.0 + 0.1 * jax.random.normal(ks[5], (planes,), jnp.float32),
      "b2": 0.1 * jax.random.normal(ks[6], (planes,), jnp.float32),
      "g3": 1.0 + 0.1 * jax.random.normal(ks[7], (planes * exp,), jnp.float32),
      "b3": 0.1 * jax.random.normal(ks[8], (planes * exp,), jnp.float32),
  }


if __name__ == "__main__":
  # Bottleneck(inplanes=16, planes=4, stride=1, downsample=None)
  N, inplanes, H, W = 2, 16, 16, 16
  planes = 4

  key = jax.random.PRNGKey(0)
  kx, kp = jax.random.split(key)
  x = jax.random.normal(kx, (N, inplanes, H, W), jnp.float32)
  params = init_params(kp, inplanes, planes)

  out = jax.block_until_ready(bottleneck_forward(x, params))

  ref = reference_forward(x, params)
  assert out.shape == ref.shape == (N, inplanes, H, W)
  err = float(jnp.max(jnp.abs(out - ref)))
  assert jnp.allclose(out, ref, atol=3e-3, rtol=3e-3), err

  print("KERNEL_OK")
</pallas_src>

<mosaic_0001>
module attributes {stable_mosaic.version = 11 : i64} {
  func.func @_conv1_kernel(%arg0: i32, %arg1: i32, %arg2: memref<1x256x16xbf16, #tpu.memory_space<vmem>>, %arg3: memref<16x4xbf16, #tpu.memory_space<vmem>>, %arg4: memref<1x256x4xbf16, #tpu.memory_space<vmem>>, %arg5: memref<1x1x4xf32, #tpu.memory_space<vmem>>, %arg6: memref<1x1x4xf32, #tpu.memory_space<vmem>>) attributes {dimension_semantics = [#tpu.dimension_semantics<parallel>, #tpu.dimension_semantics<arbitrary>], iteration_bounds = array<i64: 2, 1>, scalar_prefetch = 0 : i64, scratch_operands = 0 : i64, tpu.core_type = #tpu.core_type<tc>, window_params = [{transform_indices = @transform_0, window_bounds = array<i64: 1, 256, 16>}, {pipeline_mode = #tpu.pipeline_mode<synchronous>, transform_indices = @transform_1, window_bounds = array<i64: 16, 4>}, {transform_indices = @transform_2, window_bounds = array<i64: 1, 256, 4>}, {transform_indices = @transform_3, window_bounds = array<i64: 1, 1, 4>}, {transform_indices = @transform_4, window_bounds = array<i64: 1, 1, 4>}]} {
    %c0 = arith.constant 0 : index
    %c0_0 = arith.constant 0 : index
    %c0_1 = arith.constant 0 : index
    %0 = vector.load %arg2[%c0, %c0_0, %c0_1] : memref<1x256x16xbf16, #tpu.memory_space<vmem>>, vector<1x256x16xbf16>
    %1 = vector.shape_cast %0 : vector<1x256x16xbf16> to vector<256x16xbf16>
    %c0_2 = arith.constant 0 : index
    %c0_3 = arith.constant 0 : index
    %2 = vector.load %arg3[%c0_2, %c0_3] : memref<16x4xbf16, #tpu.memory_space<vmem>>, vector<16x4xbf16>
    %cst = arith.constant dense<0.000000e+00> : vector<256x4xf32>
    %3 = tpu.matmul %1, %2, %cst {dimension_numbers = #tpu.dot_dimension_numbers<[1], [0], [0], [1], [0, 0, 1, 1], [], []>} : vector<256x16xbf16>, vector<16x4xbf16>, vector<256x4xf32> -> vector<256x4xf32>
    %4 = arith.truncf %3 : vector<256x4xf32> to vector<256x4xbf16>
    %c0_4 = arith.constant 0 : index
    %c0_5 = arith.constant 0 : index
    %c0_6 = arith.constant 0 : index
    %5 = vector.load %arg4[%c0_4, %c0_5, %c0_6] : memref<1x256x4xbf16, #tpu.memory_space<vmem>>, vector<1x256x4xbf16>
    %6 = vector.shape_cast %5 : vector<1x256x4xbf16> to vector<256x4xbf16>
    %7 = vector.shape_cast %4 : vector<256x4xbf16> to vector<1x256x4xbf16>
    tpu.vector_store %arg4[%c0_4, %c0_5, %c0_6], %7 {strides = array<i32>} : memref<1x256x4xbf16, #tpu.memory_space<vmem>>, vector<1x256x4xbf16>,
    %8 = arith.extf %4 : vector<256x4xbf16> to vector<256x4xf32>
    %cst_7 = arith.constant dense<0.000000e+00> : vector<4xf32>
    %9 = vector.multi_reduction <add>, %8, %cst_7 [0] : vector<256x4xf32> to vector<4xf32>
    %10 = vector.shape_cast %9 : vector<4xf32> to vector<1x4xf32>
    %11 = arith.mulf %8, %8 : vector<256x4xf32>
    %cst_8 = arith.constant dense<0.000000e+00> : vector<4xf32>
    %12 = vector.multi_reduction <add>, %11, %cst_8 [0] : vector<256x4xf32> to vector<4xf32>
    %13 = vector.shape_cast %12 : vector<4xf32> to vector<1x4xf32>
    %c0_i32 = arith.constant 0 : i32
    %14 = arith.cmpi eq, %arg1, %c0_i32 : i32
    %15 = arith.extui %14 : i1 to i32
    %c0_i32_9 = arith.constant 0 : i32
    %16 = arith.cmpi ne, %15, %c0_i32_9 : i32
    scf.if %16 {
      %cst_22 = arith.constant 0.000000e+00 : f32
      %29 = vector.broadcast %cst_22 : f32 to vector<1x4xf32>
      %c0_23 = arith.constant 0 : index
      %c0_24 = arith.constant 0 : index
      %c0_25 = arith.constant 0 : index
      %30 = vector.load %arg5[%c0_23, %c0_24, %c0_25] : memref<1x1x4xf32, #tpu.memory_space<vmem>>, vector<1x1x4xf32>
      %31 = vector.shape_cast %30 : vector<1x1x4xf32> to vector<1x4xf32>
      %32 = vector.shape_cast %29 : vector<1x4xf32> to vector<1x1x4xf32>
      tpu.vector_store %arg5[%c0_23, %c0_24, %c0_25], %32 {strides = array<i32>} : memref<1x1x4xf32, #tpu.memory_space<vmem>>, vector<1x1x4xf32>,
      %cst_26 = arith.constant 0.000000e+00 : f32
      %33 = vector.broadcast %cst_26 : f32 to vector<1x4xf32>
      %c0_27 = arith.constant 0 : index
      %c0_28 = arith.constant 0 : index
      %c0_29 = arith.constant 0 : index
      %34 = vector.load %arg6[%c0_27, %c0_28, %c0_29] : memref<1x1x4xf32, #tpu.memory_space<vmem>>, vector<1x1x4xf32>
      %35 = vector.shape_cast %34 : vector<1x1x4xf32> to vector<1x4xf32>
      %36 = vector.shape_cast %33 : vector<1x4xf32> to vector<1x1x4xf32>
      tpu.vector_store %arg6[%c0_27, %c0_28, %c0_29], %36 {strides = array<i32>} : memref<1x1x4xf32, #tpu.memory_space<vmem>>, vector<1x1x4xf32>,
    } else {
    }
    %c0_10 = arith.constant 0 : index
    %c0_11 = arith.constant 0 : index
    %c0_12 = arith.constant 0 : index
    %17 = vector.load %arg5[%c0_10, %c0_11, %c0_12] : memref<1x1x4xf32, #tpu.memory_space<vmem>>, vector<1x1x4xf32>
    %18 = vector.shape_cast %17 : vector<1x1x4xf32> to vector<1x4xf32>
    %19 = arith.addf %18, %10 : vector<1x4xf32>
    %c0_13 = arith.constant 0 : index
    %c0_14 = arith.constant 0 : index
    %c0_15 = arith.constant 0 : index
    %20 = vector.load %arg5[%c0_13, %c0_14, %c0_15] : memref<1x1x4xf32, #tpu.memory_space<vmem>>, vector<1x1x4xf32>
    %21 = vector.shape_cast %20 : vector<1x1x4xf32> to vector<1x4xf32>
    %22 = vector.shape_cast %19 : vector<1x4xf32> to vector<1x1x4xf32>
    tpu.vector_store %arg5[%c0_13, %c0_14, %c0_15], %22 {strides = array<i32>} : memref<1x1x4xf32, #tpu.memory_space<vmem>>, vector<1x1x4xf32>,
    %c0_16 = arith.constant 0 : index
    %c0_17 = arith.constant 0 : index
    %c0_18 = arith.constant 0 : index
    %23 = vector.load %arg6[%c0_16, %c0_17, %c0_18] : memref<1x1x4xf32, #tpu.memory_space<vmem>>, vector<1x1x4xf32>
    %24 = vector.shape_cast %23 : vector<1x1x4xf32> to vector<1x4xf32>
    %25 = arith.addf %24, %13 : vector<1x4xf32>
    %c0_19 = arith.constant 0 : index
    %c0_20 = arith.constant 0 : index
    %c0_21 = arith.constant 0 : index
    %26 = vector.load %arg6[%c0_19, %c0_20, %c0_21] : memref<1x1x4xf32, #tpu.memory_space<vmem>>, vector<1x1x4xf32>
    %27 = vector.shape_cast %26 : vector<1x1x4xf32> to vector<1x4xf32>
    %28 = vector.shape_cast %25 : vector<1x4xf32> to vector<1x1x4xf32>
    tpu.vector_store %arg6[%c0_19, %c0_20, %c0_21], %28 {strides = array<i32>} : memref<1x1x4xf32, #tpu.memory_space<vmem>>, vector<1x1x4xf32>,
    return
  }
  func.func @transform_0(%arg0: i32, %arg1: i32) -> (i32, i32, i32) {
    %c0_i32 = arith.constant 0 : i32
    %c0_i32_0 = arith.constant 0 : i32
    return %arg0, %arg1, %c0_i32 : i32, i32, i32
  }
  func.func @transform_1(%arg0: i32, %arg1: i32) -> (i32, i32) {
    %c0_i32 = arith.constant 0 : i32
    %c0_i32_0 = arith.constant 0 : i32
    %c0_i32_1 = arith.constant 0 : i32
    return %c0_i32, %c0_i32_0 : i32, i32
  }
  func.func @transform_2(%arg0: i32, %arg1: i32) -> (i32, i32, i32) {
    %c0_i32 = arith.constant 0 : i32
    %c0_i32_0 = arith.constant 0 : i32
    return %arg0, %arg1, %c0_i32 : i32, i32, i32
  }
  func.func @transform_3(%arg0: i32, %arg1: i32) -> (i32, i32, i32) {
    %c0_i32 = arith.constant 0 : i32
    %c0_i32_0 = arith.constant 0 : i32
    %c0_i32_1 = arith.constant 0 : i32
    return %arg0, %c0_i32, %c0_i32_0 : i32, i32, i32
  }
  func.func @transform_4(%arg0: i32, %arg1: i32) -> (i32, i32, i32) {
    %c0_i32 = arith.constant 0 : i32
    %c0_i32_0 = arith.constant 0 : i32
    %c0_i32_1 = arith.constant 0 : i32
    return %arg0, %c0_i32, %c0_i32_0 : i32, i32, i32
  }
}

module attributes {stable_mosaic.version = 11 : i64} {
  func.func @_conv3_kernel(%arg0: i32, %arg1: memref<1x256x4xbf16, #tpu.memory_space<vmem>>, %arg2: memref<1x4xf32, #tpu.memory_space<vmem>>, %arg3: memref<1x4xf32, #tpu.memory_space<vmem>>, %arg4: memref<4x16xbf16, #tpu.memory_space<vmem>>, %arg5: memref<1x256x16xbf16, #tpu.memory_space<vmem>>, %arg6: memref<1x1x16xf32, #tpu.memory_space<vmem>>, %arg7: memref<1x1x16xf32, #tpu.memory_space<vmem>>) attributes {dimension_semantics = [#tpu.dimension_semantics<parallel>], iteration_bounds = array<i64: 2>, scalar_prefetch = 0 : i64, scratch_operands = 0 : i64, tpu.core_type = #tpu.core_type<tc>, window_params = [{transform_indices = @transform_0, window_bounds = array<i64: 1, 256, 4>}, {pipeline_mode = #tpu.pipeline_mode<synchronous>, transform_indices = @transform_1, window_bounds = array<i64: 1, 4>}, {pipeline_mode = #tpu.pipeline_mode<synchronous>, transform_indices = @transform_2, window_bounds = array<i64: 1, 4>}, {pipeline_mode = #tpu.pipeline_mode<synchronous>, transform_indices = @transform_3, window_bounds = array<i64: 4, 16>}, {transform_indices = @transform_4, window_bounds = array<i64: 1, 256, 16>}, {transform_indices = @transform_5, window_bounds = array<i64: 1, 1, 16>}, {transform_indices = @transform_6, window_bounds = array<i64: 1, 1, 16>}]} {
    %c0 = arith.constant 0 : index
    %c0_0 = arith.constant 0 : index
    %c0_1 = arith.constant 0 : index
    %0 = vector.load %arg1[%c0, %c0_0, %c0_1] : memref<1x256x4xbf16, #tpu.memory_space<vmem>>, vector<1x256x4xbf16>
    %1 = vector.shape_cast %0 : vector<1x256x4xbf16> to vector<256x4xbf16>
    %2 = arith.extf %1 : vector<256x4xbf16> to vector<256x4xf32>
    %c0_2 = arith.constant 0 : index
    %c0_3 = arith.constant 0 : index
    %3 = vector.load %arg2[%c0_2, %c0_3] : memref<1x4xf32, #tpu.memory_space<vmem>>, vector<1x4xf32>
    %4 = vector.broadcast %3 : vector<1x4xf32> to vector<256x4xf32>
    %5 = arith.mulf %2, %4 : vector<256x4xf32>
    %c0_4 = arith.constant 0 : index
    %c0_5 = arith.constant 0 : index
    %6 = vector.load %arg3[%c0_4, %c0_5] : memref<1x4xf32, #tpu.memory_space<vmem>>, vector<1x4xf32>
    %7 = vector.broadcast %6 : vector<1x4xf32> to vector<256x4xf32>
    %8 = arith.addf %5, %7 : vector<256x4xf32>
    %cst = arith.constant 0.000000e+00 : f32
    %9 = vector.broadcast %cst : f32 to vector<256x4xf32>
    %10 = arith.maximumf %8, %9 : vector<256x4xf32>
    %11 = arith.truncf %10 : vector<256x4xf32> to vector<256x4xbf16>
    %c0_6 = arith.constant 0 : index
    %c0_7 = arith.constant 0 : index
    %12 = vector.load %arg4[%c0_6, %c0_7] : memref<4x16xbf16, #tpu.memory_space<vmem>>, vector<4x16xbf16>
    %cst_8 = arith.constant dense<0.000000e+00> : vector<256x16xf32>
    %13 = tpu.matmul %11, %12, %cst_8 {dimension_numbers = #tpu.dot_dimension_numbers<[1], [0], [0], [1], [0, 0, 1, 1], [], []>} : vector<256x4xbf16>, vector<4x16xbf16>, vector<256x16xf32> -> vector<256x16xf32>
    %14 = arith.truncf %13 : vector<256x16xf32> to vector<256x16xbf16>
    %c0_9 = arith.constant 0 : index
    %c0_10 = arith.constant 0 : index
    %c0_11 = arith.constant 0 : index
    %15 = vector.load %arg5[%c0_9, %c0_10, %c0_11] : memref<1x256x16xbf16, #tpu.memory_space<vmem>>, vector<1x256x16xbf16>
    %16 = vector.shape_cast %15 : vector<1x256x16xbf16> to vector<256x16xbf16>
    %17 = vector.shape_cast %14 : vector<256x16xbf16> to vector<1x256x16xbf16>
    tpu.vector_store %arg5[%c0_9, %c0_10, %c0_11], %17 {strides = array<i32>} : memref<1x256x16xbf16, #tpu.memory_space<vmem>>, vector<1x256x16xbf16>,
    %18 = arith.extf %14 : vector<256x16xbf16> to vector<256x16xf32>
    %cst_12 = arith.constant dense<0.000000e+00> : vector<16xf32>
    %19 = vector.multi_reduction <add>, %18, %cst_12 [0] : vector<256x16xf32> to vector<16xf32>
    %20 = vector.shape_cast %19 : vector<16xf32> to vector<1x16xf32>
    %c0_13 = arith.constant 0 : index
    %c0_14 = arith.constant 0 : index
    %c0_15 = arith.constant 0 : index
    %21 = vector.load %arg6[%c0_13, %c0_14, %c0_15] : memref<1x1x16xf32, #tpu.memory_space<vmem>>, vector<1x1x16xf32>
    %22 = vector.shape_cast %21 : vector<1x1x16xf32> to vector<1x16xf32>
    %23 = vector.shape_cast %20 : vector<1x16xf32> to vector<1x1x16xf32>
    tpu.vector_store %arg6[%c0_13, %c0_14, %c0_15], %23 {strides = array<i32>} : memref<1x1x16xf32, #tpu.memory_space<vmem>>, vector<1x1x16xf32>,
    %24 = arith.mulf %18, %18 : vector<256x16xf32>
    %cst_16 = arith.constant dense<0.000000e+00> : vector<16xf32>
    %25 = vector.multi_reduction <add>, %24, %cst_16 [0] : vector<256x16xf32> to vector<16xf32>
    %26 = vector.shape_cast %25 : vector<16xf32> to vector<1x16xf32>
    %c0_17 = arith.constant 0 : index
    %c0_18 = arith.constant 0 : index
    %c0_19 = arith.constant 0 : index
    %27 = vector.load %arg7[%c0_17, %c0_18, %c0_19] : memref<1x1x16xf32, #tpu.memory_space<vmem>>, vector<1x1x16xf32>
    %28 = vector.shape_cast %27 : vector<1x1x16xf32> to vector<1x16xf32>
    %29 = vector.shape_cast %26 : vector<1x16xf32> to vector<1x1x16xf32>
    tpu.vector_store %arg7[%c0_17, %c0_18, %c0_19], %29 {strides = array<i32>} : memref<1x1x16xf32, #tpu.memory_space<vmem>>, vector<1x1x16xf32>,
    return
  }
  func.func @transform_0(%arg0: i32) -> (i32, i32, i32) {
    %c0_i32 = arith.constant 0 : i32
    %c0_i32_0 = arith.constant 0 : i32
    %c0_i32_1 = arith.constant 0 : i32
    return %arg0, %c0_i32, %c0_i32_0 : i32, i32, i32
  }
  func.func @transform_1(%arg0: i32) -> (i32, i32) {
    %c0_i32 = arith.constant 0 : i32
    %c0_i32_0 = arith.constant 0 : i32
    %c0_i32_1 = arith.constant 0 : i32
    return %c0_i32, %c0_i32_0 : i32, i32
  }
  func.func @transform_2(%arg0: i32) -> (i32, i32) {
    %c0_i32 = arith.constant 0 : i32
    %c0_i32_0 = arith.constant 0 : i32
    %c0_i32_1 = arith.constant 0 : i32
    return %c0_i32, %c0_i32_0 : i32, i32
  }
  func.func @transform_3(%arg0: i32) -> (i32, i32) {
    %c0_i32 = arith.constant 0 : i32
    %c0_i32_0 = arith.constant 0 : i32
    %c0_i32_1 = arith.constant 0 : i32
    return %c0_i32, %c0_i32_0 : i32, i32
  }
  func.func @transform_4(%arg0: i32) -> (i32, i32, i32) {
    %c0_i32 = arith.constant 0 : i32
    %c0_i32_0 = arith.constant 0 : i32
    %c0_i32_1 = arith.constant 0 : i32
    return %arg0, %c0_i32, %c0_i32_0 : i32, i32, i32
  }
  func.func @transform_5(%arg0: i32) -> (i32, i32, i32) {
    %c0_i32 = arith.constant 0 : i32
    %c0_i32_0 = arith.constant 0 : i32
    %c0_i32_1 = arith.constant 0 : i32
    return %arg0, %c0_i32, %c0_i32_0 : i32, i32, i32
  }
  func.func @transform_6(%arg0: i32) -> (i32, i32, i32) {
    %c0_i32 = arith.constant 0 : i32
    %c0_i32_0 = arith.constant 0 : i32
    %c0_i32_1 = arith.constant 0 : i32
    return %arg0, %c0_i32, %c0_i32_0 : i32, i32, i32
  }
}

module attributes {stable_mosaic.version = 11 : i64} {
  func.func @_conv2_kernel(%arg0: i32, %arg1: memref<1x256x4xbf16, #tpu.memory_space<vmem>>, %arg2: memref<1x4xf32, #tpu.memory_space<vmem>>, %arg3: memref<1x4xf32, #tpu.memory_space<vmem>>, %arg4: memref<36x4xbf16, #tpu.memory_space<vmem>>, %arg5: memref<1x256x4xbf16, #tpu.memory_space<vmem>>, %arg6: memref<1x1x4xf32, #tpu.memory_space<vmem>>, %arg7: memref<1x1x4xf32, #tpu.memory_space<vmem>>, %arg8: memref<328x4xbf16, #tpu.memory_space<vmem>>) attributes {dimension_semantics = [#tpu.dimension_semantics<parallel>], iteration_bounds = array<i64: 2>, scalar_prefetch = 0 : i64, scratch_operands = 1 : i64, tpu.core_type = #tpu.core_type<tc>, window_params = [{transform_indices = @transform_0, window_bounds = array<i64: 1, 256, 4>}, {pipeline_mode = #tpu.pipeline_mode<synchronous>, transform_indices = @transform_1, window_bounds = array<i64: 1, 4>}, {pipeline_mode = #tpu.pipeline_mode<synchronous>, transform_indices = @transform_2, window_bounds = array<i64: 1, 4>}, {pipeline_mode = #tpu.pipeline_mode<synchronous>, transform_indices = @transform_3, window_bounds = array<i64: 36, 4>}, {transform_indices = @transform_4, window_bounds = array<i64: 1, 256, 4>}, {transform_indices = @transform_5, window_bounds = array<i64: 1, 1, 4>}, {transform_indices = @transform_6, window_bounds = array<i64: 1, 1, 4>}]} {
    %cst = arith.constant 0.000000e+00 : bf16
    %0 = vector.broadcast %cst : bf16 to vector<328x4xbf16>
    %c0 = arith.constant 0 : index
    %c0_0 = arith.constant 0 : index
    %1 = vector.load %arg8[%c0, %c0_0] : memref<328x4xbf16, #tpu.memory_space<vmem>>, vector<328x4xbf16>
    tpu.vector_store %arg8[%c0, %c0_0], %0 {strides = array<i32>} : memref<328x4xbf16, #tpu.memory_space<vmem>>, vector<328x4xbf16>,
    %c0_1 = arith.constant 0 : index
    %c0_2 = arith.constant 0 : index
    %c0_3 = arith.constant 0 : index
    %2 = vector.load %arg1[%c0_1, %c0_2, %c0_3] : memref<1x256x4xbf16, #tpu.memory_space<vmem>>, vector<1x256x4xbf16>
    %3 = vector.shape_cast %2 : vector<1x256x4xbf16> to vector<256x4xbf16>
    %4 = arith.extf %3 : vector<256x4xbf16> to vector<256x4xf32>
    %c0_4 = arith.constant 0 : index
    %c0_5 = arith.constant 0 : index
    %5 = vector.load %arg2[%c0_4, %c0_5] : memref<1x4xf32, #tpu.memory_space<vmem>>, vector<1x4xf32>
    %6 = vector.broadcast %5 : vector<1x4xf32> to vector<256x4xf32>
    %7 = arith.mulf %4, %6 : vector<256x4xf32>
    %c0_6 = arith.constant 0 : index
    %c0_7 = arith.constant 0 : index
    %8 = vector.load %arg3[%c0_6, %c0_7] : memref<1x4xf32, #tpu.memory_space<vmem>>, vector<1x4xf32>
    %9 = vector.broadcast %8 : vector<1x4xf32> to vector<256x4xf32>
    %10 = arith.addf %7, %9 : vector<256x4xf32>
    %cst_8 = arith.constant 0.000000e+00 : f32
    %11 = vector.broadcast %cst_8 : f32 to vector<256x4xf32>
    %12 = arith.maximumf %10, %11 : vector<256x4xf32>
    %13 = arith.truncf %12 : vector<256x4xf32> to vector<256x4xbf16>
    %14 = vector.extract_strided_slice %13 {offsets = [0, 0], sizes = [16, 4], strides = [1, 1]} : vector<256x4xbf16> to vector<16x4xbf16>
    %c19 = arith.constant 19 : index
    %c0_9 = arith.constant 0 : index
    %15 = vector.load %arg8[%c19, %c0_9] : memref<328x4xbf16, #tpu.memory_space<vmem>>, vector<16x4xbf16>
    tpu.vector_store %arg8[%c19, %c0_9], %14 {strides = array<i32>} : memref<328x4xbf16, #tpu.memory_space<vmem>>, vector<16x4xbf16>,
    %16 = vector.extract_strided_slice %13 {offsets = [16, 0], sizes = [16, 4], strides = [1, 1]} : vector<256x4xbf16> to vector<16x4xbf16>
    %c37 = arith.constant 37 : index
    %c0_10 = arith.constant 0 : index
    %17 = vector.load %arg8[%c37, %c0_10] : memref<328x4xbf16, #tpu.memory_space<vmem>>, vector<16x4xbf16>
    tpu.vector_store %arg8[%c37, %c0_10], %16 {strides = array<i32>} : memref<328x4xbf16, #tpu.memory_space<vmem>>, vector<16x4xbf16>,
    %18 = vector.extract_strided_slice %13 {offsets = [32, 0], sizes = [16, 4], strides = [1, 1]} : vector<256x4xbf16> to vector<16x4xbf16>
    %c55 = arith.constant 55 : index
    %c0_11 = arith.constant 0 : index
    %19 = vector.load %arg8[%c55, %c0_11] : memref<328x4xbf16, #tpu.memory_space<vmem>>, vector<16x4xbf16>
    tpu.vector_store %arg8[%c55, %c0_11], %18 {strides = array<i32>} : memref<328x4xbf16, #tpu.memory_space<vmem>>, vector<16x4xbf16>,
    %20 = vector.extract_strided_slice %13 {offsets = [48, 0], sizes = [16, 4], strides = [1, 1]} : vector<256x4xbf16> to vector<16x4xbf16>
    %c73 = arith.constant 73 : index
    %c0_12 = arith.constant 0 : index
    %21 = vector.load %arg8[%c73, %c0_12] : memref<328x4xbf16, #tpu.memory_space<vmem>>, vector<16x4xbf16>
    tpu.vector_store %arg8[%c73, %c0_12], %20 {strides = array<i32>} : memref<328x4xbf16, #tpu.memory_space<vmem>>, vector<16x4xbf16>,
    %22 = vector.extract_strided_slice %13 {offsets = [64, 0], sizes = [16, 4], strides = [1, 1]} : vector<256x4xbf16> to vector<16x4xbf16>
    %c91 = arith.constant 91 : index
    %c0_13 = arith.constant 0 : index
    %23 = vector.load %arg8[%c91, %c0_13] : memref<328x4xbf16, #tpu.memory_space<vmem>>, vector<16x4xbf16>
    tpu.vector_store %arg8[%c91, %c0_13], %22 {strides = array<i32>} : memref<328x4xbf16, #tpu.memory_space<vmem>>, vector<16x4xbf16>,
    %24 = vector.extract_strided_slice %13 {offsets = [80, 0], sizes = [16, 4], strides = [1, 1]} : vector<256x4xbf16> to vector<16x4xbf16>
    %c109 = arith.constant 109 : index
    %c0_14 = arith.constant 0 : index
    %25 = vector.load %arg8[%c109, %c0_14] : memref<328x4xbf16, #tpu.memory_space<vmem>>, vector<16x4xbf16>
    tpu.vector_store %arg8[%c109, %c0_14], %24 {strides = array<i32>} : memref<328x4xbf16, #tpu.memory_space<vmem>>, vector<16x4xbf16>,
    %26 = vector.extract_strided_slice %13 {offsets = [96, 0], sizes = [16, 4], strides = [1, 1]} : vector<256x4xbf16> to vector<16x4xbf16>
    %c127 = arith.constant 127 : index
    %c0_15 = arith.constant 0 : index
    %27 = vector.load %arg8[%c127, %c0_15] : memref<328x4xbf16, #tpu.memory_space<vmem>>, vector<16x4xbf16>
    tpu.vector_store %arg8[%c127, %c0_15], %26 {strides = array<i32>} : memref<328x4xbf16, #tpu.memory_space<vmem>>, vector<16x4xbf16>,
    %28 = vector.extract_strided_slice %13 {offsets = [112, 0], sizes = [16, 4], strides = [1, 1]} : vector<256x4xbf16> to vector<16x4xbf16>
    %c145 = arith.constant 145 : index
    %c0_16 = arith.constant 0 : index
    %29 = vector.load %arg8[%c145, %c0_16] : memref<328x4xbf16, #tpu.memory_space<vmem>>, vector<16x4xbf16>
    tpu.vector_store %arg8[%c145, %c0_16], %28 {strides = array<i32>} : memref<328x4xbf16, #tpu.memory_space<vmem>>, vector<16x4xbf16>,
    %30 = vector.extract_strided_slice %13 {offsets = [128, 0], sizes = [16, 4], strides = [1, 1]} : vector<256x4xbf16> to vector<16x4xbf16>
    %c163 = arith.constant 163 : index
    %c0_17 = arith.constant 0 : index
    %31 = vector.load %arg8[%c163, %c0_17] : memref<328x4xbf16, #tpu.memory_space<vmem>>, vector<16x4xbf16>
    tpu.vector_store %arg8[%c163, %c0_17], %30 {strides = array<i32>} : memref<328x4xbf16, #tpu.memory_space<vmem>>, vector<16x4xbf16>,
    %32 = vector.extract_strided_slice %13 {offsets = [144, 0], sizes = [16, 4], strides = [1, 1]} : vector<256x4xbf16> to vector<16x4xbf16>
    %c181 = arith.constant 181 : index
    %c0_18 = arith.constant 0 : index
    %33 = vector.load %arg8[%c181, %c0_18] : memref<328x4xbf16, #tpu.memory_space<vmem>>, vector<16x4xbf16>
    tpu.vector_store %arg8[%c181, %c0_18], %32 {strides = array<i32>} : memref<328x4xbf16, #tpu.memory_space<vmem>>, vector<16x4xbf16>,
    %34 = vector.extract_strided_slice %13 {offsets = [160, 0], sizes = [16, 4], strides = [1, 1]} : vector<256x4xbf16> to vector<16x4xbf16>
    %c199 = arith.constant 199 : index
    %c0_19 = arith.constant 0 : index
    %35 = vector.load %arg8[%c199, %c0_19] : memref<328x4xbf16, #tpu.memory_space<vmem>>, vector<16x4xbf16>
    tpu.vector_store %arg8[%c199, %c0_19], %34 {strides = array<i32>} : memref<328x4xbf16, #tpu.memory_space<vmem>>, vector<16x4xbf16>,
    %36 = vector.extract_strided_slice %13 {offsets = [176, 0], sizes = [16, 4], strides = [1, 1]} : vector<256x4xbf16> to vector<16x4xbf16>
    %c217 = arith.constant 217 : index
    %c0_20 = arith.constant 0 : index
    %37 = vector.load %arg8[%c217, %c0_20] : memref<328x4xbf16, #tpu.memory_space<vmem>>, vector<16x4xbf16>
    tpu.vector_store %arg8[%c217, %c0_20], %36 {strides = array<i32>} : memref<328x4xbf16, #tpu.memory_space<vmem>>, vector<16x4xbf16>,
    %38 = vector.extract_strided_slice %13 {offsets = [192, 0], sizes = [16, 4], strides = [1, 1]} : vector<256x4xbf16> to vector<16x4xbf16>
    %c235 = arith.constant 235 : index
    %c0_21 = arith.constant 0 : index
    %39 = vector.load %arg8[%c235, %c0_21] : memref<328x4xbf16, #tpu.memory_space<vmem>>, vector<16x4xbf16>
    tpu.vector_store %arg8[%c235, %c0_21], %38 {strides = array<i32>} : memref<328x4xbf16, #tpu.memory_space<vmem>>, vector<16x4xbf16>,
    %40 = vector.extract_strided_slice %13 {offsets = [208, 0], sizes = [16, 4], strides = [1, 1]} : vector<256x4xbf16> to vector<16x4xbf16>
    %c253 = arith.constant 253 : index
    %c0_22 = arith.constant 0 : index
    %41 = vector.load %arg8[%c253, %c0_22] : memref<328x4xbf16, #tpu.memory_space<vmem>>, vector<16x4xbf16>
    tpu.vector_store %arg8[%c253, %c0_22], %40 {strides = array<i32>} : memref<328x4xbf16, #tpu.memory_space<vmem>>, vector<16x4xbf16>,
    %42 = vector.extract_strided_slice %13 {offsets = [224, 0], sizes = [16, 4], strides = [1, 1]} : vector<256x4xbf16> to vector<16x4xbf16>
    %c271 = arith.constant 271 : index
    %c0_23 = arith.constant 0 : index
    %43 = vector.load %arg8[%c271, %c0_23] : memref<328x4xbf16, #tpu.memory_space<vmem>>, vector<16x4xbf16>
    tpu.vector_store %arg8[%c271, %c0_23], %42 {strides = array<i32>} : memref<328x4xbf16, #tpu.memory_space<vmem>>, vector<16x4xbf16>,
    %44 = vector.extract_strided_slice %13 {offsets = [240, 0], sizes = [16, 4], strides = [1, 1]} : vector<256x4xbf16> to vector<16x4xbf16>
    %c289 = arith.constant 289 : index
    %c0_24 = arith.constant 0 : index
    %45 = vector.load %arg8[%c289, %c0_24] : memref<328x4xbf16, #tpu.memory_space<vmem>>, vector<16x4xbf16>
    tpu.vector_store %arg8[%c289, %c0_24], %44 {strides = array<i32>} : memref<328x4xbf16, #tpu.memory_space<vmem>>, vector<16x4xbf16>,
    %cst_25 = arith.constant 0.000000e+00 : f32
    %46 = vector.broadcast %cst_25 : f32 to vector<1x4xf32>
    %cst_26 = arith.constant 0.000000e+00 : f32
    %47 = vector.broadcast %cst_26 : f32 to vector<1x4xf32>
    %c0_27 = arith.constant 0 : index
    %c0_28 = arith.constant 0 : index
    %48 = vector.load %arg8[%c0_27, %c0_28] : memref<328x4xbf16, #tpu.memory_space<vmem>>, vector<144x4xbf16>
    %c1 = arith.constant 1 : index
    %c0_29 = arith.constant 0 : index
    %49 = vector.load %arg8[%c1, %c0_29] : memref<328x4xbf16, #tpu.memory_space<vmem>>, vector<144x4xbf16>
    %c2 = arith.constant 2 : index
    %c0_30 = arith.constant 0 : index
    %50 = vector.load %arg8[%c2, %c0_30] : memref<328x4xbf16, #tpu.memory_space<vmem>>, vector<144x4xbf16>
    %c18 = arith.constant 18 : index
    %c0_31 = arith.constant 0 : index
    %51 = vector.load %arg8[%c18, %c0_31] : memref<328x4xbf16, #tpu.memory_space<vmem>>, vector<144x4xbf16>
    %c19_32 = arith.constant 19 : index
    %c0_33 = arith.constant 0 : index
    %52 = vector.load %arg8[%c19_32, %c0_33] : memref<328x4xbf16, #tpu.memory_space<vmem>>, vector<144x4xbf16>
    %c20 = arith.constant 20 : index
    %c0_34 = arith.constant 0 : index
    %53 = vector.load %arg8[%c20, %c0_34] : memref<328x4xbf16, #tpu.memory_space<vmem>>, vector<144x4xbf16>
    %c36 = arith.constant 36 : index
    %c0_35 = arith.constant 0 : index
    %54 = vector.load %arg8[%c36, %c0_35] : memref<328x4xbf16, #tpu.memory_space<vmem>>, vector<144x4xbf16>
    %c37_36 = arith.constant 37 : index
    %c0_37 = arith.constant 0 : index
    %55 = vector.load %arg8[%c37_36, %c0_37] : memref<328x4xbf16, #tpu.memory_space<vmem>>, vector<144x4xbf16>
    %c38 = arith.constant 38 : index
    %c0_38 = arith.constant 0 : index
    %56 = vector.load %arg8[%c38, %c0_38] : memref<328x4xbf16, #tpu.memory_space<vmem>>, vector<144x4xbf16>
    %57 = tpu.concatenate %48, %49, %50, %51, %52, %53, %54, %55, %56 in 1 : vector<144x4xbf16>, vector<144x4xbf16>, vector<144x4xbf16>, vector<144x4xbf16>, vector<144x4xbf16>, vector<144x4xbf16>, vector<144x4xbf16>, vector<144x4xbf16>, vector<144x4xbf16> -> vector<144x36xbf16>
    %c0_39 = arith.constant 0 : index
    %c0_40 = arith.constant 0 : index
    %58 = vector.load %arg4[%c0_39, %c0_40] : memref<36x4xbf16, #tpu.memory_space<vmem>>, vector<36x4xbf16>
    %cst_41 = arith.constant dense<0.000000e+00> : vector<144x4xf32>
    %59 = tpu.matmul %57, %58, %cst_41 {dimension_numbers = #tpu.dot_dimension_numbers<[1], [0], [0], [1], [0, 0, 1, 1], [], []>} : vector<144x36xbf16>, vector<36x4xbf16>, vector<144x4xf32> -> vector<144x4xf32>
    %60 = vector.extract_strided_slice %59 {offsets = [0, 0], sizes = [16, 4], strides = [1, 1]} : vector<144x4xf32> to vector<16x4xf32>
    %61 = vector.extract_strided_slice %59 {offsets = [18, 0], sizes = [16, 4], strides = [1, 1]} : vector<144x4xf32> to vector<16x4xf32>
    %62 = vector.extract_strided_slice %59 {offsets = [36, 0], sizes = [16, 4], strides = [1, 1]} : vector<144x4xf32> to vector<16x4xf32>
    %63 = vector.extract_strided_slice %59 {offsets = [54, 0], sizes = [16, 4], strides = [1, 1]} : vector<144x4xf32> to vector<16x4xf32>
    %64 = vector.extract_strided_slice %59 {offsets = [72, 0], sizes = [16, 4], strides = [1, 1]} : vector<144x4xf32> to vector<16x4xf32>
    %65 = vector.extract_strided_slice %59 {offsets = [90, 0], sizes = [16, 4], strides = [1, 1]} : vector<144x4xf32> to vector<16x4xf32>
    %66 = vector.extract_strided_slice %59 {offsets = [108, 0], sizes = [16, 4], strides = [1, 1]} : vector<144x4xf32> to vector<16x4xf32>
    %67 = vector.extract_strided_slice %59 {offsets = [126, 0], sizes = [16, 4], strides = [1, 1]} : vector<144x4xf32> to vector<16x4xf32>
    %68 = tpu.concatenate %60, %61, %62, %63, %64, %65, %66, %67 in 0 : vector<16x4xf32>, vector<16x4xf32>, vector<16x4xf32>, vector<16x4xf32>, vector<16x4xf32>, vector<16x4xf32>, vector<16x4xf32>, vector<16x4xf32> -> vector<128x4xf32>
    %69 = arith.truncf %68 : vector<128x4xf32> to vector<128x4xbf16>
    %c0_42 = arith.constant 0 : index
    %c0_43 = arith.constant 0 : index
    %c0_44 = arith.constant 0 : index
    %70 = vector.load %arg5[%c0_42, %c0_43, %c0_44] : memref<1x256x4xbf16, #tpu.memory_space<vmem>>, vector<1x128x4xbf16>
    %71 = vector.shape_cast %70 : vector<1x128x4xbf16> to vector<128x4xbf16>
    %72 = vector.shape_cast %69 : vector<128x4xbf16> to vector<1x128x4xbf16>
    tpu.vector_store %arg5[%c0_42, %c0_43, %c0_44], %72 {strides = array<i32>} : memref<1x256x4xbf16, #tpu.memory_space<vmem>>, vector<1x128x4xbf16>,
    %73 = arith.extf %69 : vector<128x4xbf16> to vector<128x4xf32>
    %cst_45 = arith.constant dense<0.000000e+00> : vector<4xf32>
    %74 = vector.multi_reduction <add>, %73, %cst_45 [0] : vector<128x4xf32> to vector<4xf32>
    %75 = vector.shape_cast %74 : vector<4xf32> to vector<1x4xf32>
    %76 = arith.addf %46, %75 : vector<1x4xf32>
    %77 = arith.mulf %73, %73 : vector<128x4xf32>
    %cst_46 = arith.constant dense<0.000000e+00> : vector<4xf32>
    %78 = vector.multi_reduction <add>, %77, %cst_46 [0] : vector<128x4xf32> to vector<4xf32>
    %79 = vector.shape_cast %78 : vector<4xf32> to vector<1x4xf32>
    %80 = arith.addf %47, %79 : vector<1x4xf32>
    %c144 = arith.constant 144 : index
    %c0_47 = arith.constant 0 : index
    %81 = vector.load %arg8[%c144, %c0_47] : memref<328x4xbf16, #tpu.memory_space<vmem>>, vector<144x4xbf16>
    %c145_48 = arith.constant 145 : index
    %c0_49 = arith.constant 0 : index
    %82 = vector.load %arg8[%c145_48, %c0_49] : memref<328x4xbf16, #tpu.memory_space<vmem>>, vector<144x4xbf16>
    %c146 = arith.constant 146 : index
    %c0_50 = arith.constant 0 : index
    %83 = vector.load %arg8[%c146, %c0_50] : memref<328x4xbf16, #tpu.memory_space<vmem>>, vector<144x4xbf16>
    %c162 = arith.constant 162 : index
    %c0_51 = arith.constant 0 : index
    %84 = vector.load %arg8[%c162, %c0_51] : memref<328x4xbf16, #tpu.memory_space<vmem>>, vector<144x4xbf16>
    %c163_52 = arith.constant 163 : index
    %c0_53 = arith.constant 0 : index
    %85 = vector.load %arg8[%c163_52, %c0_53] : memref<328x4xbf16, #tpu.memory_space<vmem>>, vector<144x4xbf16>
    %c164 = arith.constant 164 : index
    %c0_54 = arith.constant 0 : index
    %86 = vector.load %arg8[%c164, %c0_54] : memref<328x4xbf16, #tpu.memory_space<vmem>>, vector<144x4xbf16>
    %c180 = arith.constant 180 : index
    %c0_55 = arith.constant 0 : index
    %87 = vector.load %arg8[%c180, %c0_55] : memref<328x4xbf16, #tpu.memory_space<vmem>>, vector<144x4xbf16>
    %c181_56 = arith.constant 181 : index
    %c0_57 = arith.constant 0 : index
    %88 = vector.load %arg8[%c181_56, %c0_57] : memref<328x4xbf16, #tpu.memory_space<vmem>>, vector<144x4xbf16>
    %c182 = arith.constant 182 : index
    %c0_58 = arith.constant 0 : index
    %89 = vector.load %arg8[%c182, %c0_58] : memref<328x4xbf16, #tpu.memory_space<vmem>>, vector<144x4xbf16>
    %90 = tpu.concatenate %81, %82, %83, %84, %85, %86, %87, %88, %89 in 1 : vector<144x4xbf16>, vector<144x4xbf16>, vector<144x4xbf16>, vector<144x4xbf16>, vector<144x4xbf16>, vector<144x4xbf16>, vector<144x4xbf16>, vector<144x4xbf16>, vector<144x4xbf16> -> vector<144x36xbf16>
    %c0_59 = arith.constant 0 : index
    %c0_60 = arith.constant 0 : index
    %91 = vector.load %arg4[%c0_59, %c0_60] : memref<36x4xbf16, #tpu.memory_space<vmem>>, vector<36x4xbf16>
    %cst_61 = arith.constant dense<0.000000e+00> : vector<144x4xf32>
    %92 = tpu.matmul %90, %91, %cst_61 {dimension_numbers = #tpu.dot_dimension_numbers<[1], [0], [0], [1], [0, 0, 1, 1], [], []>} : vector<144x36xbf16>, vector<36x4xbf16>, vector<144x4xf32> -> vector<144x4xf32>
    %93 = vector.extract_strided_slice %92 {offsets = [0, 0], sizes = [16, 4], strides = [1, 1]} : vector<144x4xf32> to vector<16x4xf32>
    %94 = vector.extract_strided_slice %92 {offsets = [18, 0], sizes = [16, 4], strides = [1, 1]} : vector<144x4xf32> to vector<16x4xf32>
    %95 = vector.extract_strided_slice %92 {offsets = [36, 0], sizes = [16, 4], strides = [1, 1]} : vector<144x4xf32> to vector<16x4xf32>
    %96 = vector.extract_strided_slice %92 {offsets = [54, 0], sizes = [16, 4], strides = [1, 1]} : vector<144x4xf32> to vector<16x4xf32>
    %97 = vector.extract_strided_slice %92 {offsets = [72, 0], sizes = [16, 4], strides = [1, 1]} : vector<144x4xf32> to vector<16x4xf32>
    %98 = vector.extract_strided_slice %92 {offsets = [90, 0], sizes = [16, 4], strides = [1, 1]} : vector<144x4xf32> to vector<16x4xf32>
    %99 = vector.extract_strided_slice %92 {offsets = [108, 0], sizes = [16, 4], strides = [1, 1]} : vector<144x4xf32> to vector<16x4xf32>
    %100 = vector.extract_strided_slice %92 {offsets = [126, 0], sizes = [16, 4], strides = [1, 1]} : vector<144x4xf32> to vector<16x4xf32>
    %101 = tpu.concatenate %93, %94, %95, %96, %97, %98, %99, %100 in 0 : vector<16x4xf32>, vector<16x4xf32>, vector<16x4xf32>, vector<16x4xf32>, vector<16x4xf32>, vector<16x4xf32>, vector<16x4xf32>, vector<16x4xf32> -> vector<128x4xf32>
    %102 = arith.truncf %101 : vector<128x4xf32> to vector<128x4xbf16>
    %c0_62 = arith.constant 0 : index
    %c128 = arith.constant 128 : index
    %c0_63 = arith.constant 0 : index
    %103 = vector.load %arg5[%c0_62, %c128, %c0_63] : memref<1x256x4xbf16, #tpu.memory_space<vmem>>, vector<1x128x4xbf16>
    %104 = vector.shape_cast %103 : vector<1x128x4xbf16> to vector<128x4xbf16>
    %105 = vector.shape_cast %102 : vector<128x4xbf16> to vector<1x128x4xbf16>
    tpu.vector_store %arg5[%c0_62, %c128, %c0_63], %105 {strides = array<i32>} : memref<1x256x4xbf16, #tpu.memory_space<vmem>>, vector<1x128x4xbf16>,
    %106 = arith.extf %102 : vector<128x4xbf16> to vector<128x4xf32>
    %cst_64 = arith.constant dense<0.000000e+00> : vector<4xf32>
    %107 = vector.multi_reduction <add>, %106, %cst_64 [0] : vector<128x4xf32> to vector<4xf32>
    %108 = vector.shape_cast %107 : vector<4xf32> to vector<1x4xf32>
    %109 = arith.addf %76, %108 : vector<1x4xf32>
    %110 = arith.mulf %106, %106 : vector<128x4xf32>
    %cst_65 = arith.constant dense<0.000000e+00> : vector<4xf32>
    %111 = vector.multi_reduction <add>, %110, %cst_65 [0] : vector<128x4xf32> to vector<4xf32>
    %112 = vector.shape_cast %111 : vector<4xf32> to vector<1x4xf32>
    %113 = arith.addf %80, %112 : vector<1x4xf32>
    %c0_66 = arith.constant 0 : index
    %c0_67 = arith.constant 0 : index
    %c0_68 = arith.constant 0 : index
    %114 = vector.load %arg6[%c0_66, %c0_67, %c0_68] : memref<1x1x4xf32, #tpu.memory_space<vmem>>, vector<1x1x4xf32>
    %115 = vector.shape_cast %114 : vector<1x1x4xf32> to vector<1x4xf32>
    %116 = vector.shape_cast %109 : vector<1x4xf32> to vector<1x1x4xf32>
    tpu.vector_store %arg6[%c0_66, %c0_67, %c0_68], %116 {strides = array<i32>} : memref<1x1x4xf32, #tpu.memory_space<vmem>>, vector<1x1x4xf32>,
    %c0_69 = arith.constant 0 : index
    %c0_70 = arith.constant 0 : index
    %c0_71 = arith.constant 0 : index
    %117 = vector.load %arg7[%c0_69, %c0_70, %c0_71] : memref<1x1x4xf32, #tpu.memory_space<vmem>>, vector<1x1x4xf32>
    %118 = vector.shape_cast %117 : vector<1x1x4xf32> to vector<1x4xf32>
    %119 = vector.shape_cast %113 : vector<1x4xf32> to vector<1x1x4xf32>
    tpu.vector_store %arg7[%c0_69, %c0_70, %c0_71], %119 {strides = array<i32>} : memref<1x1x4xf32, #tpu.memory_space<vmem>>, vector<1x1x4xf32>,
    return
  }
  func.func @transform_0(%arg0: i32) -> (i32, i32, i32) {
    %c0_i32 = arith.constant 0 : i32
    %c0_i32_0 = arith.constant 0 : i32
    %c0_i32_1 = arith.constant 0 : i32
    return %arg0, %c0_i32, %c0_i32_0 : i32, i32, i32
  }
  func.func @transform_1(%arg0: i32) -> (i32, i32) {
    %c0_i32 = arith.constant 0 : i32
    %c0_i32_0 = arith.constant 0 : i32
    %c0_i32_1 = arith.constant 0 : i32
    return %c0_i32, %c0_i32_0 : i32, i32
  }
  func.func @transform_2(%arg0: i32) -> (i32, i32) {
    %c0_i32 = arith.constant 0 : i32
    %c0_i32_0 = arith.constant 0 : i32
    %c0_i32_1 = arith.constant 0 : i32
    return %c0_i32, %c0_i32_0 : i32, i32
  }
  func.func @transform_3(%arg0: i32) -> (i32, i32) {
    %c0_i32 = arith.constant 0 : i32
    %c0_i32_0 = arith.constant 0 : i32
    %c0_i32_1 = arith.constant 0 : i32
    return %c0_i32, %c0_i32_0 : i32, i32
  }
  func.func @transform_4(%arg0: i32) -> (i32, i32, i32) {
    %c0_i32 = arith.constant 0 : i32
    %c0_i32_0 = arith.constant 0 : i32
    %c0_i32_1 = arith.constant 0 : i32
    return %arg0, %c0_i32, %c0_i32_0 : i32, i32, i32
  }
  func.func @transform_5(%arg0: i32) -> (i32, i32, i32) {
    %c0_i32 = arith.constant 0 : i32
    %c0_i32_0 = arith.constant 0 : i32
    %c0_i32_1 = arith.constant 0 : i32
    return %arg0, %c0_i32, %c0_i32_0 : i32, i32, i32
  }
  func.func @transform_6(%arg0: i32) -> (i32, i32, i32) {
    %c0_i32 = arith.constant 0 : i32
    %c0_i32_0 = arith.constant 0 : i32
    %c0_i32_1 = arith.constant 0 : i32
    return %arg0, %c0_i32, %c0_i32_0 : i32, i32, i32
  }
}

module attributes {stable_mosaic.version = 11 : i64} {
  func.func @_bn3_res_kernel(%arg0: i32, %arg1: i32, %arg2: memref<1x256x16xbf16, #tpu.memory_space<vmem>>, %arg3: memref<1x256x16xf32, #tpu.memory_space<vmem>>, %arg4: memref<1x16xf32, #tpu.memory_space<vmem>>, %arg5: memref<1x16xf32, #tpu.memory_space<vmem>>, %arg6: memref<1x256x16xf32, #tpu.memory_space<vmem>>) attributes {dimension_semantics = [#tpu.dimension_semantics<parallel>, #tpu.dimension_semantics<parallel>], iteration_bounds = array<i64: 2, 1>, scalar_prefetch = 0 : i64, scratch_operands = 0 : i64, tpu.core_type = #tpu.core_type<tc>, window_params = [{transform_indices = @transform_0, window_bounds = array<i64: 1, 256, 16>}, {transform_indices = @transform_1, window_bounds = array<i64: 1, 256, 16>}, {pipeline_mode = #tpu.pipeline_mode<synchronous>, transform_indices = @transform_2, window_bounds = array<i64: 1, 16>}, {pipeline_mode = #tpu.pipeline_mode<synchronous>, transform_indices = @transform_3, window_bounds = array<i64: 1, 16>}, {transform_indices = @transform_4, window_bounds = array<i64: 1, 256, 16>}]} {
    %c0 = arith.constant 0 : index
    %c0_0 = arith.constant 0 : index
    %c0_1 = arith.constant 0 : index
    %0 = vector.load %arg2[%c0, %c0_0, %c0_1] : memref<1x256x16xbf16, #tpu.memory_space<vmem>>, vector<1x256x16xbf16>
    %1 = vector.shape_cast %0 : vector<1x256x16xbf16> to vector<256x16xbf16>
    %2 = arith.extf %1 : vector<256x16xbf16> to vector<256x16xf32>
    %c0_2 = arith.constant 0 : index
    %c0_3 = arith.constant 0 : index
    %3 = vector.load %arg4[%c0_2, %c0_3] : memref<1x16xf32, #tpu.memory_space<vmem>>, vector<1x16xf32>
    %4 = vector.broadcast %3 : vector<1x16xf32> to vector<256x16xf32>
    %5 = arith.mulf %2, %4 : vector<256x16xf32>
    %c0_4 = arith.constant 0 : index
    %c0_5 = arith.constant 0 : index
    %6 = vector.load %arg5[%c0_4, %c0_5] : memref<1x16xf32, #tpu.memory_space<vmem>>, vector<1x16xf32>
    %7 = vector.broadcast %6 : vector<1x16xf32> to vector<256x16xf32>
    %8 = arith.addf %5, %7 : vector<256x16xf32>
    %c0_6 = arith.constant 0 : index
    %c0_7 = arith.constant 0 : index
    %c0_8 = arith.constant 0 : index
    %9 = vector.load %arg3[%c0_6, %c0_7, %c0_8] : memref<1x256x16xf32, #tpu.memory_space<vmem>>, vector<1x256x16xf32>
    %10 = vector.shape_cast %9 : vector<1x256x16xf32> to vector<256x16xf32>
    %11 = arith.addf %8, %10 : vector<256x16xf32>
    %cst = arith.constant 0.000000e+00 : f32
    %12 = vector.broadcast %cst : f32 to vector<256x16xf32>
    %13 = arith.maximumf %11, %12 : vector<256x16xf32>
    %c0_9 = arith.constant 0 : index
    %c0_10 = arith.constant 0 : index
    %c0_11 = arith.constant 0 : index
    %14 = vector.load %arg6[%c0_9, %c0_10, %c0_11] : memref<1x256x16xf32, #tpu.memory_space<vmem>>, vector<1x256x16xf32>
    %15 = vector.shape_cast %14 : vector<1x256x16xf32> to vector<256x16xf32>
    %16 = vector.shape_cast %13 : vector<256x16xf32> to vector<1x256x16xf32>
    tpu.vector_store %arg6[%c0_9, %c0_10, %c0_11], %16 {strides = array<i32>} : memref<1x256x16xf32, #tpu.memory_space<vmem>>, vector<1x256x16xf32>,
    return
  }
  func.func @transform_0(%arg0: i32, %arg1: i32) -> (i32, i32, i32) {
    %c0_i32 = arith.constant 0 : i32
    %c0_i32_0 = arith.constant 0 : i32
    return %arg0, %arg1, %c0_i32 : i32, i32, i32
  }
  func.func @transform_1(%arg0: i32, %arg1: i32) -> (i32, i32, i32) {
    %c0_i32 = arith.constant 0 : i32
    %c0_i32_0 = arith.constant 0 : i32
    return %arg0, %arg1, %c0_i32 : i32, i32, i32
  }
  func.func @transform_2(%arg0: i32, %arg1: i32) -> (i32, i32) {
    %c0_i32 = arith.constant 0 : i32
    %c0_i32_0 = arith.constant 0 : i32
    %c0_i32_1 = arith.constant 0 : i32
    return %c0_i32, %c0_i32_0 : i32, i32
  }
  func.func @transform_3(%arg0: i32, %arg1: i32) -> (i32, i32) {
    %c0_i32 = arith.constant 0 : i32
    %c0_i32_0 = arith.constant 0 : i32
    %c0_i32_1 = arith.constant 0 : i32
    return %c0_i32, %c0_i32_0 : i32, i32
  }
  func.func @transform_4(%arg0: i32, %arg1: i32) -> (i32, i32, i32) {
    %c0_i32 = arith.constant 0 : i32
    %c0_i32_0 = arith.constant 0 : i32
    return %arg0, %arg1, %c0_i32 : i32, i32, i32
  }
}

</mosaic_0001>

<llo_original>
// kernel: bottleneck_forward.4
$region0: #{bottleneck_forward.4}
  #allocation0 [shape = 'u32[]', space=smem, size = 0x4, offset = 0x4, fixed_abs, tag = 'smem constant byte address 0x4 - core index']
  #allocation1 [shape = 'u32[144,128]{1,0:T(1,128)}', space=vmem, size = 0x12000, scoped, tag = 'internal scratch']
  %s0 = inlined_call_operand.vmem [shape: bf16[2,256,16], index: 0, kind: input, shape index: {}]
  %s1 = inlined_call_operand.vmem [shape: bf16[16,4], index: 1, kind: input, shape index: {}]
  %s2 = inlined_call_operand.vmem [shape: bf16[2,256,4], index: 2, kind: output, shape index: {0}]
  %s3 = inlined_call_operand.vmem [shape: f32[2,1,4], index: 3, kind: output, shape index: {1}]
  %s4 = inlined_call_operand.vmem [shape: f32[2,1,4], index: 4, kind: output, shape index: {2}]
  %5 = xla_tuple %s2, %s3, %s4
  %s6 = sld [smem:[#allocation0]]
  $region61: #{bottleneck_forward.4} parent=0
    _
  %s8 = ssub.s32 1, %s6
  %s9 = scalar_select 0, %s8, %s6
  loop: start=0, step=1, limit=4
  $region2: #{bottleneck_forward.4} parent=0 // loop_pre_header
    _
  $region3: #{bottleneck_forward.4} parent=0 // loop_header
    %s11 = sphi 0, %s15
    %p12 = scmp.ge.s32.totalorder %s11, 4
    %s18 = sphi 0, %s30
    %s19 = sphi 0, %s26
    %s20 = sphi 0, %s18
    %s21 = sphi 0, %s19
    %s22 = sphi 0, %s20
    %s23 = sphi 0, %s21
    %s35 = sphi 0, %s37
    %s38 = sphi 0, %s35
    %s39 = sphi 0, %s38
    %s55 = sphi 0, %s39
    %s59 = sphi 0, %s59
    %s61 = sphi 0, %s59
    %s62 = sphi 0, %s61
    %s76 = sphi 0, %s62
    %s84 = sphi 0, %s86
    %s87 = sphi 0, %s84
    %s88 = sphi 0, %s87
    %s104 = sphi 0, %s88
    %s110 = sphi 0, %s112
    %s113 = sphi 0, %s110
    %s114 = sphi 0, %s113
    %s130 = sphi 0, %s114
    %s136 = sphi 0, %s138
    %s139 = sphi 0, %s136
    %s140 = sphi 0, %s139
    %s156 = sphi 0, %s140
  $region4: #{bottleneck_forward.4} parent=0 // loop_header_branch
    %14 = sbr.rel (%p12) target = $region8
  $region5: #{bottleneck_forward.4} parent=0 // loop_body
    %s16 = ssub.s32 %s11, 1
    %s17 = ssub.s32 %s11, 2
    %s24 = sadd.s32 1, %s19
    %p25 = scmp.ge.s32.totalorder %s24, 1
    %s26 = scalar_select %p25, 0, %s24
    %s27 = sadd.s32 1, %s18
    %s28 = scalar_select %p25, %s27, %s18
    %p29 = scmp.ge.s32.totalorder %s28, 2
    %s30 = scalar_select %p29, 0, %s28
    %s31 = ssub.s32 %s18, %s30
    %s32 = ssub.s32 %s19, %s26
    %s33 = sor.u32 %s31, %s32
    %p34 = scmp.eq.s32.totalorder %s33, 0
    %s36 = sadd.s32 %s35, 1
    %s37 = scalar_select %p34, %s35, %s36
    %p40 = pneg %p34
    %p41 = scmp.eq.s32.totalorder %s11, 1
    %p42 = por %p40, %p41
    %p43 = scmp.ne.s32.totalorder %s35, %s38
    %p44 = scmp.eq.s32.totalorder %s11, 0
    %p45 = por %p43, %p44
    %p46 = scmp.ne.s32.totalorder %s35, %s38
    %p47 = scmp.eq.s32.totalorder %s16, 1
    %p48 = por %p46, %p47
    %p49 = scmp.ne.s32.totalorder %s38, %s39
    %p50 = scmp.eq.s32.totalorder %s16, 0
    %p51 = por %p49, %p50
    %p52 = scmp.ne.s32.totalorder %s38, %s39
    %p53 = scmp.eq.s32.totalorder %s17, 1
    %p54 = por %p52, %p53
    %p56 = scmp.ne.s32.totalorder %s39, %s55
    %p57 = scmp.eq.s32.totalorder %s17, 0
    %p58 = por %p56, %p57
    %s60 = sadd.s32 %s59, 1
    %p63 = scmp.eq.s32.totalorder %s11, 1
    %p64 = scmp.ne.s32.totalorder %s59, %s61
    %p65 = scmp.eq.s32.totalorder %s11, 0
    %p66 = por %p64, %p65
    %p67 = scmp.ne.s32.totalorder %s59, %s61
    %p68 = scmp.eq.s32.totalorder %s16, 1
    %p69 = por %p67, %p68
    %p70 = scmp.ne.s32.totalorder %s61, %s62
    %p71 = scmp.eq.s32.totalorder %s16, 0
    %p72 = por %p70, %p71
    %p73 = scmp.ne.s32.totalorder %s61, %s62
    %p74 = scmp.eq.s32.totalorder %s17, 1
    %p75 = por %p73, %p74
    %p77 = scmp.ne.s32.totalorder %s62, %s76
    %p78 = scmp.eq.s32.totalorder %s17, 0
    %p79 = por %p77, %p78
    %s80 = ssub.s32 %s18, %s30
    %s81 = ssub.s32 %s19, %s26
    %s82 = sor.u32 %s80, %s81
    %p83 = scmp.eq.s32.totalorder %s82, 0
    %s85 = sadd.s32 %s84, 1
    %s86 = scalar_select %p83, %s84, %s85
    %p89 = pneg %p83
    %p90 = scmp.eq.s32.totalorder %s11, 1
    %p91 = por %p89, %p90
    %p92 = scmp.ne.s32.totalorder %s84, %s87
    %p93 = scmp.eq.s32.totalorder %s11, 0
    %p94 = por %p92, %p93
    %p95 = scmp.ne.s32.totalorder %s84, %s87
    %p96 = scmp.eq.s32.totalorder %s16, 1
    %p97 = por %p95, %p96
    %p98 = scmp.ne.s32.totalorder %s87, %s88
    %p99 = scmp.eq.s32.totalorder %s16, 0
    %p100 = por %p98, %p99
    %p101 = scmp.ne.s32.totalorder %s87, %s88
    %p102 = scmp.eq.s32.totalorder %s17, 1
    %p103 = por %p101, %p102
    %p105 = scmp.ne.s32.totalorder %s88, %s104
    %p106 = scmp.eq.s32.totalorder %s17, 0
    %p107 = por %p105, %p106
    %s108 = ssub.s32 %s18, %s30
    %p109 = scmp.eq.s32.totalorder %s108, 0
    %s111 = sadd.s32 %s110, 1
    %s112 = scalar_select %p109, %s110, %s111
    %p115 = pneg %p109
    %p116 = scmp.eq.s32.totalorder %s11, 1
    %p117 = por %p115, %p116
    %p118 = scmp.ne.s32.totalorder %s110, %s113
    %p119 = scmp.eq.s32.totalorder %s11, 0
    %p120 = por %p118, %p119
    %p121 = scmp.ne.s32.totalorder %s110, %s113
    %p122 = scmp.eq.s32.totalorder %s16, 1
    %p123 = por %p121, %p122
    %p124 = scmp.ne.s32.totalorder %s113, %s114
    %p125 = scmp.eq.s32.totalorder %s16, 0
    %p126 = por %p124, %p125
    %p127 = scmp.ne.s32.totalorder %s113, %s114
    %p128 = scmp.eq.s32.totalorder %s17, 1
    %p129 = por %p127, %p128
    %p131 = scmp.ne.s32.totalorder %s114, %s130
    %p132 = scmp.eq.s32.totalorder %s17, 0
    %p133 = por %p131, %p132
    %s134 = ssub.s32 %s18, %s30
    %p135 = scmp.eq.s32.totalorder %s134, 0
    %s137 = sadd.s32 %s136, 1
    %s138 = scalar_select %p135, %s136, %s137
    %p141 = pneg %p135
    %p142 = scmp.eq.s32.totalorder %s11, 1
    %p143 = por %p141, %p142
    %p144 = scmp.ne.s32.totalorder %s136, %s139
    %p145 = scmp.eq.s32.totalorder %s11, 0
    %p146 = por %p144, %p145
    %p147 = scmp.ne.s32.totalorder %s136, %s139
    %p148 = scmp.eq.s32.totalorder %s16, 1
    %p149 = por %p147, %p148
    %p150 = scmp.ne.s32.totalorder %s139, %s140
    %p151 = scmp.eq.s32.totalorder %s16, 0
    %p152 = por %p150, %p151
    %p153 = scmp.ne.s32.totalorder %s139, %s140
    %p154 = scmp.eq.s32.totalorder %s17, 1
    %p155 = por %p153, %p154
    %p157 = scmp.ne.s32.totalorder %s140, %s156
    %p158 = scmp.eq.s32.totalorder %s17, 0
    %p159 = por %p157, %p158
    %p160 = scmp.le.s32.totalorder 1, %s11
    %p161 = scmp.lt.s32.totalorder %s11, 3
    %p162 = pnand %p160, %p161
    %p163 = pneg %p162
    // Predicated region
    $region9: #{bottleneck_forward.4} parent=5 // pred_check
      _
    $region10: #{bottleneck_forward.4} parent=5 // pred_check_branch
      %165 = sbr.rel (%p162) target = $region12
    $region11: #{bottleneck_forward.4} parent=5 // pred_region
      %s166 = ssub.s32 %s11, 1
      // Predicated region
      $region13: #{bottleneck_forward.4} parent=11 // pred_check
        %p167 = pneg %p72
      $region14: #{bottleneck_forward.4} parent=11 // pred_check_branch
        %169 = sbr.rel (%p167) target = $region16
      $region15: #{bottleneck_forward.4} parent=11 // pred_region
        _
      $region16: #{bottleneck_forward.4} parent=11 // pred_fallthru
        _
    $region12: #{bottleneck_forward.4} parent=5 // pred_fallthru
      _
    %p170 = scmp.lt.s32.totalorder %s11, 2
    // Predicated region
    $region17: #{bottleneck_forward.4} parent=5 // pred_check
      %p171 = pneg %p170
    $region18: #{bottleneck_forward.4} parent=5 // pred_check_branch
      %173 = sbr.rel (%p171) target = $region20
    $region19: #{bottleneck_forward.4} parent=5 // pred_region
      // Predicated region
      $region21: #{bottleneck_forward.4} parent=19 // pred_check
        %p174 = pneg %p45
      $region22: #{bottleneck_forward.4} parent=19 // pred_check_branch
        %176 = sbr.rel (%p174) target = $region24
      $region23: #{bottleneck_forward.4} parent=19 // pred_region
        %s177 = smul.u32 32, %s19
        %p178 = scmp.lt.s32.totalorder %s18, 1
        %s179 = scalar_select %p178, %s18, 1
        %p180 = scmp.lt.s32.totalorder %s177, 31
        %s181 = scalar_select %p180, %s177, 31
        %s182 = smul.addr %s179, 32
        %s183 = sadd.s32 %s181, %s182
        %s184 = smul.addr %s183, 4
        %s185 = scalar_lea.vmem %s0, %s184
        %s186 = smul.u32 32, %s19
      $region24: #{bottleneck_forward.4} parent=19 // pred_fallthru
        _
    $region20: #{bottleneck_forward.4} parent=5 // pred_fallthru
      _
    %p187 = scmp.le.s32.totalorder 1, %s11
    %p188 = scmp.lt.s32.totalorder %s11, 3
    %p189 = pnand %p187, %p188
    %p190 = pneg %p189
    // Predicated region
    $region25: #{bottleneck_forward.4} parent=5 // pred_check
      _
    $region26: #{bottleneck_forward.4} parent=5 // pred_check_branch
      %192 = sbr.rel (%p189) target = $region28
    $region27: #{bottleneck_forward.4} parent=5 // pred_region
      %s193 = ssub.s32 %s11, 1
      %s194 = smul.u32 32, %s21
      %p195 = scmp.lt.s32.totalorder %s20, 1
      %s196 = scalar_select %p195, %s20, 1
      %p197 = scmp.lt.s32.totalorder %s194, 31
      %s198 = scalar_select %p197, %s194, 31
      %s199 = smul.addr %s196, 32
      %s200 = sadd.s32 %s198, %s199
      %s201 = smul.addr %s200, 4
      %s202 = scalar_lea.vmem %s0, %s201
      %p203 = pneg %p51
      %p204 = pneg %p48
      %p205 = pneg %p72
      %p206 = pneg %p69
      %p207 = pneg %p100
      %p208 = pneg %p97
      %s209 = smul.u32 32, %s21
      %p210 = scmp.lt.s32.totalorder %s20, 1
      %s211 = scalar_select %p210, %s20, 1
      %p212 = scmp.lt.s32.totalorder %s209, 31
      %s213 = scalar_select %p212, %s209, 31
      %s214 = smul.addr %s211, 32
      %s215 = sadd.s32 %s213, %s214
      %s216 = smul.addr %s215, 4
      %s217 = scalar_lea.vmem %s2, %s216
      %p218 = pneg %p126
      %p219 = pneg %p123
      %p220 = scmp.lt.s32.totalorder %s20, 1
      %s221 = scalar_select %p220, %s20, 1
      %s222 = scalar_lea.vmem %s3, %s221
      %p223 = pneg %p152
      %p224 = pneg %p149
      %p225 = scmp.lt.s32.totalorder %s20, 1
      %s226 = scalar_select %p225, %s20, 1
      %s227 = scalar_lea.vmem %s4, %s226
      %s228 = smul.u32 32, %s21
      %p229 = scmp.lt.s32.totalorder %s20, 1
      %s230 = scalar_select %p229, %s20, 1
      %p231 = scmp.lt.s32.totalorder %s228, 31
      %s232 = scalar_select %p231, %s228, 31
      %s233 = smul.addr %s230, 32
      %s234 = sadd.s32 %s232, %s233
      %s235 = smul.addr %s234, 4
      %s236 = scalar_lea.vmem %s0, %s235
      %s237 = smul.u32 32, %s21
      %s238 = smul.u32 32, %s21
      %p239 = scmp.lt.s32.totalorder %s20, 1
      %s240 = scalar_select %p239, %s20, 1
      %p241 = scmp.lt.s32.totalorder %s238, 31
      %s242 = scalar_select %p241, %s238, 31
      %s243 = smul.addr %s240, 32
      %s244 = sadd.s32 %s242, %s243
      %s245 = smul.addr %s244, 4
      %s246 = scalar_lea.vmem %s2, %s245
      %s247 = smul.u32 32, %s21
      %p248 = scmp.lt.s32.totalorder %s20, 1
      %s249 = scalar_select %p248, %s20, 1
      %s250 = scalar_lea.vmem %s3, %s249
      %p251 = scmp.lt.s32.totalorder %s20, 1
      %s252 = scalar_select %p251, %s20, 1
      %s253 = scalar_lea.vmem %s4, %s252
      %v255 = vld [vmem:[%s236] sm:$0xf]
      %v256 = vld [vmem:[%s236 + $0x4] sm:$0xf]
      %v257 = vld [vmem:[%s236 + $0x8] sm:$0xf]
      %v258 = vld [vmem:[%s236 + $0xc] sm:$0xf]
      %v259 = vld [vmem:[%s236 + $0x10] sm:$0xf]
      %v260 = vld [vmem:[%s236 + $0x14] sm:$0xf]
      %v261 = vld [vmem:[%s236 + $0x18] sm:$0xf]
      %v262 = vld [vmem:[%s236 + $0x1c] sm:$0xf]
      %v263 = vld [vmem:[%s236 + $0x20] sm:$0xf]
      %v264 = vld [vmem:[%s236 + $0x24] sm:$0xf]
      %v265 = vld [vmem:[%s236 + $0x28] sm:$0xf]
      %v266 = vld [vmem:[%s236 + $0x2c] sm:$0xf]
      %v267 = vld [vmem:[%s236 + $0x30] sm:$0xf]
      %v268 = vld [vmem:[%s236 + $0x34] sm:$0xf]
      %v269 = vld [vmem:[%s236 + $0x38] sm:$0xf]
      %v270 = vld [vmem:[%s236 + $0x3c] sm:$0xf]
      %v271 = vld [vmem:[%s236 + $0x40] sm:$0xf]
      %v272 = vld [vmem:[%s236 + $0x44] sm:$0xf]
      %v273 = vld [vmem:[%s236 + $0x48] sm:$0xf]
      %v274 = vld [vmem:[%s236 + $0x4c] sm:$0xf]
      %v275 = vld [vmem:[%s236 + $0x50] sm:$0xf]
      %v276 = vld [vmem:[%s236 + $0x54] sm:$0xf]
      %v277 = vld [vmem:[%s236 + $0x58] sm:$0xf]
      %v278 = vld [vmem:[%s236 + $0x5c] sm:$0xf]
      %v279 = vld [vmem:[%s236 + $0x60] sm:$0xf]
      %v280 = vld [vmem:[%s236 + $0x64] sm:$0xf]
      %v281 = vld [vmem:[%s236 + $0x68] sm:$0xf]
      %v282 = vld [vmem:[%s236 + $0x6c] sm:$0xf]
      %v283 = vld [vmem:[%s236 + $0x70] sm:$0xf]
      %v284 = vld [vmem:[%s236 + $0x74] sm:$0xf]
      %v285 = vld [vmem:[%s236 + $0x78] sm:$0xf]
      %v286 = vld [vmem:[%s236 + $0x7c] sm:$0xf]
      %v287 = vld [vmem:[%s1] sm:$0xf]
      %v288 = vld [vmem:[%s1 + $0x4] sm:$0xf]
      %v321 = vunpack.c.l.b16 %v255
      %v322 = vunpack.c.l.b16 %v256
      %v323 = vunpack.c.l.b16 %v257
      %v324 = vunpack.c.l.b16 %v258
      %v325 = vunpack.c.l.b16 %v259
      %v326 = vunpack.c.l.b16 %v260
      %v327 = vunpack.c.l.b16 %v261
      %v328 = vunpack.c.l.b16 %v262
      %v329 = vunpack.c.l.b16 %v263
      %v330 = vunpack.c.l.b16 %v264
      %v331 = vunpack.c.l.b16 %v265
      %v332 = vunpack.c.l.b16 %v266
      %v333 = vunpack.c.l.b16 %v267
      %v334 = vunpack.c.l.b16 %v268
      %v335 = vunpack.c.l.b16 %v269
      %v336 = vunpack.c.l.b16 %v270
      %v337 = vunpack.c.l.b16 %v271
      %v338 = vunpack.c.l.b16 %v272
      %v339 = vunpack.c.l.b16 %v273
      %v340 = vunpack.c.l.b16 %v274
      %v341 = vunpack.c.l.b16 %v275
      %v342 = vunpack.c.l.b16 %v276
      %v343 = vunpack.c.l.b16 %v277
      %v344 = vunpack.c.l.b16 %v278
      %v345 = vunpack.c.l.b16 %v279
      %v346 = vunpack.c.l.b16 %v280
      %v347 = vunpack.c.l.b16 %v281
      %v348 = vunpack.c.l.b16 %v282
      %v349 = vunpack.c.l.b16 %v283
      %v350 = vunpack.c.l.b16 %v284
      %v351 = vunpack.c.l.b16 %v285
      %v352 = vunpack.c.l.b16 %v286
      %v353 = vpack.c.b16 %v322, %v321
      %v354 = vpack.c.b16 %v324, %v323
      %v355 = vpack.c.b16 %v326, %v325
      %v356 = vpack.c.b16 %v328, %v327
      %v357 = vpack.c.b16 %v330, %v329
      %v358 = vpack.c.b16 %v332, %v331
      %v359 = vpack.c.b16 %v334, %v333
      %v360 = vpack.c.b16 %v336, %v335
      %v361 = vpack.c.b16 %v338, %v337
      %v362 = vpack.c.b16 %v340, %v339
      %v363 = vpack.c.b16 %v342, %v341
      %v364 = vpack.c.b16 %v344, %v343
      %v365 = vpack.c.b16 %v346, %v345
      %v366 = vpack.c.b16 %v348, %v347
      %v367 = vpack.c.b16 %v350, %v349
      %v368 = vpack.c.b16 %v352, %v351
      %v371 = vunpack.c.l.b16 %v287
      %v372 = vunpack.c.l.b16 %v288
      %v373 = vpack.c.b16 %v372, %v371
      %vm375 = vcmask 130048
      %v377 = vsel %vm375, %v353, 0
      %v380 = vsel %vm375, %v354, 0
      %v383 = vsel %vm375, %v355, 0
      %v386 = vsel %vm375, %v356, 0
      %v389 = vsel %vm375, %v357, 0
      %v392 = vsel %vm375, %v358, 0
      %v395 = vsel %vm375, %v359, 0
      %v398 = vsel %vm375, %v360, 0
      %v401 = vsel %vm375, %v361, 0
      %v404 = vsel %vm375, %v362, 0
      %v407 = vsel %vm375, %v363, 0
      %v410 = vsel %vm375, %v364, 0
      %v413 = vsel %vm375, %v365, 0
      %v416 = vsel %vm375, %v366, 0
      %v419 = vsel %vm375, %v367, 0
      %v422 = vsel %vm375, %v368, 0
      %424 = vmatprep.subr.bf16.mxu0 0
      %425 = vmatpush1.bf16.msra.mxu0 %v373
      %426 = vmatprep.subr.bf16.mxu0 0
      %427 = vmatpush1.bf16.msra.mxu0 0
      %428 = vmatprep.subr.bf16.mxu0 0
      %429 = vmatpush1.bf16.msra.mxu0 0
      %430 = vmatprep.subr.bf16.mxu0 0
      %431 = vmatpush1.bf16.msra.mxu0 0
      %432 = vmatprep.subr.bf16.mxu0 0
      %433 = vmatpush1.bf16.msra.mxu0 0
      %434 = vmatprep.subr.bf16.mxu0 0
      %435 = vmatpush1.bf16.msra.mxu0 0
      %436 = vmatprep.subr.bf16.mxu0 0
      %437 = vmatpush1.bf16.msra.mxu0 0
      %438 = vmatprep.subr.bf16.mxu0 0
      %439 = vmatpush1.bf16.msra.mxu0 0
      %440 = vmatprep.subr.bf16.mxu0 0
      %441 = vmatpush1.bf16.msra.mxu0 0
      %442 = vmatprep.subr.bf16.mxu0 0
      %443 = vmatpush1.bf16.msra.mxu0 0
      %444 = vmatprep.subr.bf16.mxu0 0
      %445 = vmatpush1.bf16.msra.mxu0 0
      %446 = vmatprep.subr.bf16.mxu0 0
      %447 = vmatpush1.bf16.msra.mxu0 0
      %448 = vmatprep.subr.bf16.mxu0 0
      %449 = vmatpush1.bf16.msra.mxu0 0
      %450 = vmatprep.subr.bf16.mxu0 0
      %451 = vmatpush1.bf16.msra.mxu0 0
      %452 = vmatprep.subr.bf16.mxu0 0
      %453 = vmatpush1.bf16.msra.mxu0 0
      %454 = vmatprep.subr.bf16.mxu0 0
      %455 = vmatpush1.bf16.msra.mxu0 0
      %456 = vmatprep.mubr.bf16.mxu0 0
      %457 = vmatmul.mubr.bf16.gmra.mrb[0].mxu0 %v377
      %v458 = vpop.f32.mrb[0].mxu0
      %v459 = vadd.f32 0.0, %v458
      %v460 = vpop.f32.mrb[0].mxu0
      %v461 = vpop.f32.mrb[0].mxu0
      %v462 = vadd.f32 0.0, %v461
      %v463 = vpop.f32.mrb[0].mxu0
      %464 = vmatprep.mubr.bf16.mxu0 0
      %465 = vmatmul.mubr.bf16.gmra.mrb[0].mxu0 %v380
      %v466 = vpop.f32.mrb[0].mxu0
      %v467 = vadd.f32 0.0, %v466
      %v468 = vpop.f32.mrb[0].mxu0
      %v469 = vpop.f32.mrb[0].mxu0
      %v470 = vadd.f32 0.0, %v469
      %v471 = vpop.f32.mrb[0].mxu0
      %472 = vmatprep.mubr.bf16.mxu0 0
      %473 = vmatmul.mubr.bf16.gmra.mrb[0].mxu0 %v383
      %v474 = vpop.f32.mrb[0].mxu0
      %v475 = vadd.f32 0.0, %v474
      %v476 = vpop.f32.mrb[0].mxu0
      %v477 = vpop.f32.mrb[0].mxu0
      %v478 = vadd.f32 0.0, %v477
      %v479 = vpop.f32.mrb[0].mxu0
      %480 = vmatprep.mubr.bf16.mxu0 0
      %481 = vmatmul.mubr.bf16.gmra.mrb[0].mxu0 %v386
      %v482 = vpop.f32.mrb[0].mxu0
      %v483 = vadd.f32 0.0, %v482
      %v484 = vpop.f32.mrb[0].mxu0
      %v485 = vpop.f32.mrb[0].mxu0
      %v486 = vadd.f32 0.0, %v485
      %v487 = vpop.f32.mrb[0].mxu0
      %488 = vmatprep.mubr.bf16.mxu0 0
      %489 = vmatmul.mubr.bf16.gmra.mrb[0].mxu0 %v389
      %v490 = vpop.f32.mrb[0].mxu0
      %v491 = vadd.f32 0.0, %v490
      %v492 = vpop.f32.mrb[0].mxu0
      %v493 = vpop.f32.mrb[0].mxu0
      %v494 = vadd.f32 0.0, %v493
      %v495 = vpop.f32.mrb[0].mxu0
      %496 = vmatprep.mubr.bf16.mxu0 0
      %497 = vmatmul.mubr.bf16.gmra.mrb[0].mxu0 %v392
      %v498 = vpop.f32.mrb[0].mxu0
      %v499 = vadd.f32 0.0, %v498
      %v500 = vpop.f32.mrb[0].mxu0
      %v501 = vpop.f32.mrb[0].mxu0
      %v502 = vadd.f32 0.0, %v501
      %v503 = vpop.f32.mrb[0].mxu0
      %504 = vmatprep.mubr.bf16.mxu0 0
      %505 = vmatmul.mubr.bf16.gmra.mrb[0].mxu0 %v395
      %v506 = vpop.f32.mrb[0].mxu0
      %v507 = vadd.f32 0.0, %v506
      %v508 = vpop.f32.mrb[0].mxu0
      %v509 = vpop.f32.mrb[0].mxu0
      %v510 = vadd.f32 0.0, %v509
      %v511 = vpop.f32.mrb[0].mxu0
      %512 = vmatprep.mubr.bf16.mxu0 0
      %513 = vmatmul.mubr.bf16.gmra.mrb[0].mxu0 %v398
      %v514 = vpop.f32.mrb[0].mxu0
      %v515 = vadd.f32 0.0, %v514
      %v516 = vpop.f32.mrb[0].mxu0
      %v517 = vpop.f32.mrb[0].mxu0
      %v518 = vadd.f32 0.0, %v517
      %v519 = vpop.f32.mrb[0].mxu0
      %520 = vmatprep.mubr.bf16.mxu0 0
      %521 = vmatmul.mubr.bf16.gmra.mrb[0].mxu0 %v401
      %v522 = vpop.f32.mrb[0].mxu0
      %v523 = vadd.f32 0.0, %v522
      %v524 = vpop.f32.mrb[0].mxu0
      %v525 = vpop.f32.mrb[0].mxu0
      %v526 = vadd.f32 0.0, %v525
      %v527 = vpop.f32.mrb[0].mxu0
      %528 = vmatprep.mubr.bf16.mxu0 0
      %529 = vmatmul.mubr.bf16.gmra.mrb[0].mxu0 %v404
      %v530 = vpop.f32.mrb[0].mxu0
      %v531 = vadd.f32 0.0, %v530
      %v532 = vpop.f32.mrb[0].mxu0
      %v533 = vpop.f32.mrb[0].mxu0
      %v534 = vadd.f32 0.0, %v533
      %v535 = vpop.f32.mrb[0].mxu0
      %536 = vmatprep.mubr.bf16.mxu0 0
      %537 = vmatmul.mubr.bf16.gmra.mrb[0].mxu0 %v407
      %v538 = vpop.f32.mrb[0].mxu0
      %v539 = vadd.f32 0.0, %v538
      %v540 = vpop.f32.mrb[0].mxu0
      %v541 = vpop.f32.mrb[0].mxu0
      %v542 = vadd.f32 0.0, %v541
      %v543 = vpop.f32.mrb[0].mxu0
      %544 = vmatprep.mubr.bf16.mxu0 0
      %545 = vmatmul.mubr.bf16.gmra.mrb[0].mxu0 %v410
      %v546 = vpop.f32.mrb[0].mxu0
      %v547 = vadd.f32 0.0, %v546
      %v548 = vpop.f32.mrb[0].mxu0
      %v549 = vpop.f32.mrb[0].mxu0
      %v550 = vadd.f32 0.0, %v549
      %v551 = vpop.f32.mrb[0].mxu0
      %552 = vmatprep.mubr.bf16.mxu0 0
      %553 = vmatmul.mubr.bf16.gmra.mrb[0].mxu0 %v413
      %v554 = vpop.f32.mrb[0].mxu0
      %v555 = vadd.f32 0.0, %v554
      %v556 = vpop.f32.mrb[0].mxu0
      %v557 = vpop.f32.mrb[0].mxu0
      %v558 = vadd.f32 0.0, %v557
      %v559 = vpop.f32.mrb[0].mxu0
      %560 = vmatprep.mubr.bf16.mxu0 0
      %561 = vmatmul.mubr.bf16.gmra.mrb[0].mxu0 %v416
      %v562 = vpop.f32.mrb[0].mxu0
      %v563 = vadd.f32 0.0, %v562
      %v564 = vpop.f32.mrb[0].mxu0
      %v565 = vpop.f32.mrb[0].mxu0
      %v566 = vadd.f32 0.0, %v565
      %v567 = vpop.f32.mrb[0].mxu0
      %568 = vmatprep.mubr.bf16.mxu0 0
      %569 = vmatmul.mubr.bf16.gmra.mrb[0].mxu0 %v419
      %v570 = vpop.f32.mrb[0].mxu0
      %v571 = vadd.f32 0.0, %v570
      %v572 = vpop.f32.mrb[0].mxu0
      %v573 = vpop.f32.mrb[0].mxu0
      %v574 = vadd.f32 0.0, %v573
      %v575 = vpop.f32.mrb[0].mxu0
      %576 = vmatprep.mubr.bf16.mxu0 0
      %577 = vmatmul.mubr.bf16.gmra.mrb[0].mxu0 %v422
      %v578 = vpop.f32.mrb[0].mxu0
      %v579 = vadd.f32 0.0, %v578
      %v580 = vpop.f32.mrb[0].mxu0
      %v581 = vpop.f32.mrb[0].mxu0
      %v582 = vadd.f32 0.0, %v581
      %v583 = vpop.f32.mrb[0].mxu0
      %584 = vdwg.mxu0
      %v585 = vpack.c.bf16 %v462, %v459
      %v586 = vpack.c.bf16 %v470, %v467
      %v587 = vpack.c.bf16 %v478, %v475
      %v588 = vpack.c.bf16 %v486, %v483
      %v589 = vpack.c.bf16 %v494, %v491
      %v590 = vpack.c.bf16 %v502, %v499
      %v591 = vpack.c.bf16 %v510, %v507
      %v592 = vpack.c.bf16 %v518, %v515
      %v593 = vpack.c.bf16 %v526, %v523
      %v594 = vpack.c.bf16 %v534, %v531
      %v595 = vpack.c.bf16 %v542, %v539
      %v596 = vpack.c.bf16 %v550, %v547
      %v597 = vpack.c.bf16 %v558, %v555
      %v598 = vpack.c.bf16 %v566, %v563
      %v599 = vpack.c.bf16 %v574, %v571
      %v600 = vpack.c.bf16 %v582, %v579
      %v617 = vunpack.c.l.b16 %v585
      %v618 = vunpack.c.h.b16 %v585
      %v619 = vunpack.c.l.b16 %v586
      %v620 = vunpack.c.h.b16 %v586
      %v621 = vunpack.c.l.b16 %v587
      %v622 = vunpack.c.h.b16 %v587
      %v623 = vunpack.c.l.b16 %v588
      %v624 = vunpack.c.h.b16 %v588
      %v625 = vunpack.c.l.b16 %v589
      %v626 = vunpack.c.h.b16 %v589
      %v627 = vunpack.c.l.b16 %v590
      %v628 = vunpack.c.h.b16 %v590
      %v629 = vunpack.c.l.b16 %v591
      %v630 = vunpack.c.h.b16 %v591
      %v631 = vunpack.c.l.b16 %v592
      %v632 = vunpack.c.h.b16 %v592
      %v633 = vunpack.c.l.b16 %v593
      %v634 = vunpack.c.h.b16 %v593
      %v635 = vunpack.c.l.b16 %v594
      %v636 = vunpack.c.h.b16 %v594
      %v637 = vunpack.c.l.b16 %v595
      %v638 = vunpack.c.h.b16 %v595
      %v639 = vunpack.c.l.b16 %v596
      %v640 = vunpack.c.h.b16 %v596
      %v641 = vunpack.c.l.b16 %v597
      %v642 = vunpack.c.h.b16 %v597
      %v643 = vunpack.c.l.b16 %v598
      %v644 = vunpack.c.h.b16 %v598
      %v645 = vunpack.c.l.b16 %v599
      %v646 = vunpack.c.h.b16 %v599
      %v647 = vunpack.c.l.b16 %v600
      %v648 = vunpack.c.h.b16 %v600
      %v649 = vpack.c.b16 %v617, %v617
      %v650 = vpack.c.b16 %v618, %v618
      %v651 = vpack.c.b16 %v619, %v619
      %v652 = vpack.c.b16 %v620, %v620
      %v653 = vpack.c.b16 %v621, %v621
      %v654 = vpack.c.b16 %v622, %v622
      %v655 = vpack.c.b16 %v623, %v623
      %v656 = vpack.c.b16 %v624, %v624
      %v657 = vpack.c.b16 %v625, %v625
      %v658 = vpack.c.b16 %v626, %v626
      %v659 = vpack.c.b16 %v627, %v627
      %v660 = vpack.c.b16 %v628, %v628
      %v661 = vpack.c.b16 %v629, %v629
      %v662 = vpack.c.b16 %v630, %v630
      %v663 = vpack.c.b16 %v631, %v631
      %v664 = vpack.c.b16 %v632, %v632
      %v665 = vpack.c.b16 %v633, %v633
      %v666 = vpack.c.b16 %v634, %v634
      %v667 = vpack.c.b16 %v635, %v635
      %v668 = vpack.c.b16 %v636, %v636
      %v669 = vpack.c.b16 %v637, %v637
      %v670 = vpack.c.b16 %v638, %v638
      %v671 = vpack.c.b16 %v639, %v639
      %v672 = vpack.c.b16 %v640, %v640
      %v673 = vpack.c.b16 %v641, %v641
      %v674 = vpack.c.b16 %v642, %v642
      %v675 = vpack.c.b16 %v643, %v643
      %v676 = vpack.c.b16 %v644, %v644
      %v677 = vpack.c.b16 %v645, %v645
      %v678 = vpack.c.b16 %v646, %v646
      %v679 = vpack.c.b16 %v647, %v647
      %v680 = vpack.c.b16 %v648, %v648
      %vm713 = vcmask 27648
      %714 = vst.msk [vmem:[%s246] sm:$0xf] %vm713, %v649
      %715 = vst.msk [vmem:[%s246 + $0x4] sm:$0xf] %vm713, %v650
      %716 = vst.msk [vmem:[%s246 + $0x8] sm:$0xf] %vm713, %v651
      %717 = vst.msk [vmem:[%s246 + $0xc] sm:$0xf] %vm713, %v652
      %718 = vst.msk [vmem:[%s246 + $0x10] sm:$0xf] %vm713, %v653
      %719 = vst.msk [vmem:[%s246 + $0x14] sm:$0xf] %vm713, %v654
      %720 = vst.msk [vmem:[%s246 + $0x18] sm:$0xf] %vm713, %v655
      %721 = vst.msk [vmem:[%s246 + $0x1c] sm:$0xf] %vm713, %v656
      %722 = vst.msk [vmem:[%s246 + $0x20] sm:$0xf] %vm713, %v657
      %723 = vst.msk [vmem:[%s246 + $0x24] sm:$0xf] %vm713, %v658
      %724 = vst.msk [vmem:[%s246 + $0x28] sm:$0xf] %vm713, %v659
      %725 = vst.msk [vmem:[%s246 + $0x2c] sm:$0xf] %vm713, %v660
      %726 = vst.msk [vmem:[%s246 + $0x30] sm:$0xf] %vm713, %v661
      %727 = vst.msk [vmem:[%s246 + $0x34] sm:$0xf] %vm713, %v662
      %728 = vst.msk [vmem:[%s246 + $0x38] sm:$0xf] %vm713, %v663
      %729 = vst.msk [vmem:[%s246 + $0x3c] sm:$0xf] %vm713, %v664
      %730 = vst.msk [vmem:[%s246 + $0x40] sm:$0xf] %vm713, %v665
      %731 = vst.msk [vmem:[%s246 + $0x44] sm:$0xf] %vm713, %v666
      %732 = vst.msk [vmem:[%s246 + $0x48] sm:$0xf] %vm713, %v667
      %733 = vst.msk [vmem:[%s246 + $0x4c] sm:$0xf] %vm713, %v668
      %734 = vst.msk [vmem:[%s246 + $0x50] sm:$0xf] %vm713, %v669
      %735 = vst.msk [vmem:[%s246 + $0x54] sm:$0xf] %vm713, %v670
      %736 = vst.msk [vmem:[%s246 + $0x58] sm:$0xf] %vm713, %v671
      %737 = vst.msk [vmem:[%s246 + $0x5c] sm:$0xf] %vm713, %v672
      %738 = vst.msk [vmem:[%s246 + $0x60] sm:$0xf] %vm713, %v673
      %739 = vst.msk [vmem:[%s246 + $0x64] sm:$0xf] %vm713, %v674
      %740 = vst.msk [vmem:[%s246 + $0x68] sm:$0xf] %vm713, %v675
      %741 = vst.msk [vmem:[%s246 + $0x6c] sm:$0xf] %vm713, %v676
      %742 = vst.msk [vmem:[%s246 + $0x70] sm:$0xf] %vm713, %v677
      %743 = vst.msk [vmem:[%s246 + $0x74] sm:$0xf] %vm713, %v678
      %744 = vst.msk [vmem:[%s246 + $0x78] sm:$0xf] %vm713, %v679
      %745 = vst.msk [vmem:[%s246 + $0x7c] sm:$0xf] %vm713, %v680
      %v746 = vunpack.c.l.bf16 %v585
      %v747 = vunpack.c.h.bf16 %v585
      %v748 = vunpack.c.l.bf16 %v586
      %v749 = vunpack.c.h.bf16 %v586
      %v750 = vunpack.c.l.bf16 %v587
      %v751 = vunpack.c.h.bf16 %v587
      %v752 = vunpack.c.l.bf16 %v588
      %v753 = vunpack.c.h.bf16 %v588
      %v754 = vunpack.c.l.bf16 %v589
      %v755 = vunpack.c.h.bf16 %v589
      %v756 = vunpack.c.l.bf16 %v590
      %v757 = vunpack.c.h.bf16 %v590
      %v758 = vunpack.c.l.bf16 %v591
      %v759 = vunpack.c.h.bf16 %v591
      %v760 = vunpack.c.l.bf16 %v592
      %v761 = vunpack.c.h.bf16 %v592
      %v762 = vunpack.c.l.bf16 %v593
      %v763 = vunpack.c.h.bf16 %v593
      %v764 = vunpack.c.l.bf16 %v594
      %v765 = vunpack.c.h.bf16 %v594
      %v766 = vunpack.c.l.bf16 %v595
      %v767 = vunpack.c.h.bf16 %v595
      %v768 = vunpack.c.l.bf16 %v596
      %v769 = vunpack.c.h.bf16 %v596
      %v770 = vunpack.c.l.bf16 %v597
      %v771 = vunpack.c.h.bf16 %v597
      %v772 = vunpack.c.l.bf16 %v598
      %v773 = vunpack.c.h.bf16 %v598
      %v774 = vunpack.c.l.bf16 %v599
      %v775 = vunpack.c.h.bf16 %v599
      %v776 = vunpack.c.l.bf16 %v600
      %v777 = vunpack.c.h.bf16 %v600
      %vm778 = vcmask 31744
      %v779 = vsel %vm778, %v746, 0.0
      %v780 = vsel %vm778, %v747, 0.0
      %v781 = vadd.f32 %v779, %v780
      %v782 = vsel %vm778, %v748, 0.0
      %v783 = vadd.f32 %v781, %v782
      %v784 = vsel %vm778, %v749, 0.0
      %v785 = vadd.f32 %v783, %v784
      %v786 = vsel %vm778, %v750, 0.0
      %v787 = vadd.f32 %v785, %v786
      %v788 = vsel %vm778, %v751, 0.0
      %v789 = vadd.f32 %v787, %v788
      %v790 = vsel %vm778, %v752, 0.0
      %v791 = vadd.f32 %v789, %v790
      %v792 = vsel %vm778, %v753, 0.0
      %v793 = vadd.f32 %v791, %v792
      %v794 = vsel %vm778, %v754, 0.0
      %v795 = vadd.f32 %v793, %v794
      %v796 = vsel %vm778, %v755, 0.0
      %v797 = vadd.f32 %v795, %v796
      %v798 = vsel %vm778, %v756, 0.0
      %v799 = vadd.f32 %v797, %v798
      %v800 = vsel %vm778, %v757, 0.0
      %v801 = vadd.f32 %v799, %v800
      %v802 = vsel %vm778, %v758, 0.0
      %v803 = vadd.f32 %v801, %v802
      %v804 = vsel %vm778, %v759, 0.0
      %v805 = vadd.f32 %v803, %v804
      %v806 = vsel %vm778, %v760, 0.0
      %v807 = vadd.f32 %v805, %v806
      %v808 = vsel %vm778, %v761, 0.0
      %v809 = vadd.f32 %v807, %v808
      %v810 = vsel %vm778, %v762, 0.0
      %v811 = vadd.f32 %v809, %v810
      %v812 = vsel %vm778, %v763, 0.0
      %v813 = vadd.f32 %v811, %v812
      %v814 = vsel %vm778, %v764, 0.0
      %v815 = vadd.f32 %v813, %v814
      %v816 = vsel %vm778, %v765, 0.0
      %v817 = vadd.f32 %v815, %v816
      %v818 = vsel %vm778, %v766, 0.0
      %v819 = vadd.f32 %v817, %v818
      %v820 = vsel %vm778, %v767, 0.0
      %v821 = vadd.f32 %v819, %v820
      %v822 = vsel %vm778, %v768, 0.0
      %v823 = vadd.f32 %v821, %v822
      %v824 = vsel %vm778, %v769, 0.0
      %v825 = vadd.f32 %v823, %v824
      %v826 = vsel %vm778, %v770, 0.0
      %v827 = vadd.f32 %v825, %v826
      %v828 = vsel %vm778, %v771, 0.0
      %v829 = vadd.f32 %v827, %v828
      %v830 = vsel %vm778, %v772, 0.0
      %v831 = vadd.f32 %v829, %v830
      %v832 = vsel %vm778, %v773, 0.0
      %v833 = vadd.f32 %v831, %v832
      %v834 = vsel %vm778, %v774, 0.0
      %v835 = vadd.f32 %v833, %v834
      %v836 = vsel %vm778, %v775, 0.0
      %v837 = vadd.f32 %v835, %v836
      %v838 = vsel %vm778, %v776, 0.0
      %v839 = vadd.f32 %v837, %v838
      %v840 = vsel %vm778, %v777, 0.0
      %v841 = vadd.f32 %v839, %v840
      %v842 = vrot.slane %v841, 4
      %v843 = vadd.f32 %v841, %v842
      %v844 = vrot.slane %v843, 2
      %v845 = vadd.f32 %v843, %v844
      %v846 = vrot.slane %v845, 1
      %v847 = vadd.f32 %v845, %v846
      %v848 = vmul.f32 %v746, %v746
      %v849 = vmul.f32 %v747, %v747
      %v850 = vmul.f32 %v748, %v748
      %v851 = vmul.f32 %v749, %v749
      %v852 = vmul.f32 %v750, %v750
      %v853 = vmul.f32 %v751, %v751
      %v854 = vmul.f32 %v752, %v752
      %v855 = vmul.f32 %v753, %v753
      %v856 = vmul.f32 %v754, %v754
      %v857 = vmul.f32 %v755, %v755
      %v858 = vmul.f32 %v756, %v756
      %v859 = vmul.f32 %v757, %v757
      %v860 = vmul.f32 %v758, %v758
      %v861 = vmul.f32 %v759, %v759
      %v862 = vmul.f32 %v760, %v760
      %v863 = vmul.f32 %v761, %v761
      %v864 = vmul.f32 %v762, %v762
      %v865 = vmul.f32 %v763, %v763
      %v866 = vmul.f32 %v764, %v764
      %v867 = vmul.f32 %v765, %v765
      %v868 = vmul.f32 %v766, %v766
      %v869 = vmul.f32 %v767, %v767
      %v870 = vmul.f32 %v768, %v768
      %v871 = vmul.f32 %v769, %v769
      %v872 = vmul.f32 %v770, %v770
      %v873 = vmul.f32 %v771, %v771
      %v874 = vmul.f32 %v772, %v772
      %v875 = vmul.f32 %v773, %v773
      %v876 = vmul.f32 %v774, %v774
      %v877 = vmul.f32 %v775, %v775
      %v878 = vmul.f32 %v776, %v776
      %v879 = vmul.f32 %v777, %v777
      %v880 = vsel %vm778, %v848, 0.0
      %v881 = vsel %vm778, %v849, 0.0
      %v882 = vadd.f32 %v880, %v881
      %v883 = vsel %vm778, %v850, 0.0
      %v884 = vadd.f32 %v882, %v883
      %v885 = vsel %vm778, %v851, 0.0
      %v886 = vadd.f32 %v884, %v885
      %v887 = vsel %vm778, %v852, 0.0
      %v888 = vadd.f32 %v886, %v887
      %v889 = vsel %vm778, %v853, 0.0
      %v890 = vadd.f32 %v888, %v889
      %v891 = vsel %vm778, %v854, 0.0
      %v892 = vadd.f32 %v890, %v891
      %v893 = vsel %vm778, %v855, 0.0
      %v894 = vadd.f32 %v892, %v893
      %v895 = vsel %vm778, %v856, 0.0
      %v896 = vadd.f32 %v894, %v895
      %v897 = vsel %vm778, %v857, 0.0
      %v898 = vadd.f32 %v896, %v897
      %v899 = vsel %vm778, %v858, 0.0
      %v900 = vadd.f32 %v898, %v899
      %v901 = vsel %vm778, %v859, 0.0
      %v902 = vadd.f32 %v900, %v901
      %v903 = vsel %vm778, %v860, 0.0
      %v904 = vadd.f32 %v902, %v903
      %v905 = vsel %vm778, %v861, 0.0
      %v906 = vadd.f32 %v904, %v905
      %v907 = vsel %vm778, %v862, 0.0
      %v908 = vadd.f32 %v906, %v907
      %v909 = vsel %vm778, %v863, 0.0
      %v910 = vadd.f32 %v908, %v909
      %v911 = vsel %vm778, %v864, 0.0
      %v912 = vadd.f32 %v910, %v911
      %v913 = vsel %vm778, %v865, 0.0
      %v914 = vadd.f32 %v912, %v913
      %v915 = vsel %vm778, %v866, 0.0
      %v916 = vadd.f32 %v914, %v915
      %v917 = vsel %vm778, %v867, 0.0
      %v918 = vadd.f32 %v916, %v917
      %v919 = vsel %vm778, %v868, 0.0
      %v920 = vadd.f32 %v918, %v919
      %v921 = vsel %vm778, %v869, 0.0
      %v922 = vadd.f32 %v920, %v921
      %v923 = vsel %vm778, %v870, 0.0
      %v924 = vadd.f32 %v922, %v923
      %v925 = vsel %vm778, %v871, 0.0
      %v926 = vadd.f32 %v924, %v925
      %v927 = vsel %vm778, %v872, 0.0
      %v928 = vadd.f32 %v926, %v927
      %v929 = vsel %vm778, %v873, 0.0
      %v930 = vadd.f32 %v928, %v929
      %v931 = vsel %vm778, %v874, 0.0
      %v932 = vadd.f32 %v930, %v931
      %v933 = vsel %vm778, %v875, 0.0
      %v934 = vadd.f32 %v932, %v933
      %v935 = vsel %vm778, %v876, 0.0
      %v936 = vadd.f32 %v934, %v935
      %v937 = vsel %vm778, %v877, 0.0
      %v938 = vadd.f32 %v936, %v937
      %v939 = vsel %vm778, %v878, 0.0
      %v940 = vadd.f32 %v938, %v939
      %v941 = vsel %vm778, %v879, 0.0
      %v942 = vadd.f32 %v940, %v941
      %v943 = vrot.slane %v942, 4
      %v944 = vadd.f32 %v942, %v943
      %v945 = vrot.slane %v944, 2
      %v946 = vadd.f32 %v944, %v945
      %v947 = vrot.slane %v946, 1
      %v948 = vadd.f32 %v946, %v947
      %p949 = scmp.eq.s32.totalorder %s21, 0
      // Predicated region
      $region29: #{bottleneck_forward.4} parent=27 // pred_check
        %p950 = pneg %p949
      $region30: #{bottleneck_forward.4} parent=27 // pred_check_branch
        %952 = sbr.rel (%p950) target = $region32
      $region31: #{bottleneck_forward.4} parent=27 // pred_region
        %vm953 = vcmask 24576
        %954 = vst.msk [vmem:[%s250] sm:$0x1] %vm953, 0.0
        %955 = vst.msk [vmem:[%s253] sm:$0x1] %vm953, 0.0
      $region32: #{bottleneck_forward.4} parent=27 // pred_fallthru
        _
      %v956 = vld [vmem:[%s250] sm:$0x1]
      %v957 = vadd.f32 %v956, %v847
      %vm958 = vcmask 24576
      %959 = vst.msk [vmem:[%s250] sm:$0x1] %vm958, %v957
      %v960 = vld [vmem:[%s253] sm:$0x1]
      %v961 = vadd.f32 %v960, %v948
      %962 = vst.msk [vmem:[%s253] sm:$0x1] %vm958, %v961
      %s963 = smul.u32 32, %s21
      %p964 = scmp.lt.s32.totalorder %s20, 1
      %s965 = scalar_select %p964, %s20, 1
      %p966 = scmp.lt.s32.totalorder %s963, 31
      %s967 = scalar_select %p966, %s963, 31
      %s968 = smul.addr %s965, 32
      %s969 = sadd.s32 %s967, %s968
      %s970 = smul.addr %s969, 4
      %s971 = scalar_lea.vmem %s2, %s970
      %p972 = scmp.lt.s32.totalorder %s20, 1
      %s973 = scalar_select %p972, %s20, 1
      %s974 = scalar_lea.vmem %s3, %s973
      %p975 = scmp.lt.s32.totalorder %s20, 1
      %s976 = scalar_select %p975, %s20, 1
      %s977 = scalar_lea.vmem %s4, %s976
      // Predicated region
      $region33: #{bottleneck_forward.4} parent=27 // pred_check
        %p978 = pneg %p97
      $region34: #{bottleneck_forward.4} parent=27 // pred_check_branch
        %980 = sbr.rel (%p978) target = $region36
      $region35: #{bottleneck_forward.4} parent=27 // pred_region
        %s981 = smul.u32 32, %s21
      $region36: #{bottleneck_forward.4} parent=27 // pred_fallthru
        _
      // Predicated region
      $region37: #{bottleneck_forward.4} parent=27 // pred_check
        %p982 = pneg %p123
      $region38: #{bottleneck_forward.4} parent=27 // pred_check_branch
        %984 = sbr.rel (%p982) target = $region40
      $region39: #{bottleneck_forward.4} parent=27 // pred_region
        _
      $region40: #{bottleneck_forward.4} parent=27 // pred_fallthru
        _
      // Predicated region
      $region41: #{bottleneck_forward.4} parent=27 // pred_check
        %p985 = pneg %p149
      $region42: #{bottleneck_forward.4} parent=27 // pred_check_branch
        %987 = sbr.rel (%p985) target = $region44
      $region43: #{bottleneck_forward.4} parent=27 // pred_region
        _
      $region44: #{bottleneck_forward.4} parent=27 // pred_fallthru
        _
    $region28: #{bottleneck_forward.4} parent=5 // pred_fallthru
      _
    %p988 = scmp.le.s32.totalorder 2, %s11
    // Predicated region
    $region45: #{bottleneck_forward.4} parent=5 // pred_check
      %p989 = pneg %p988
    $region46: #{bottleneck_forward.4} parent=5 // pred_check_branch
      %991 = sbr.rel (%p989) target = $region48
    $region47: #{bottleneck_forward.4} parent=5 // pred_region
      %s992 = ssub.s32 %s11, 2
      // Predicated region
      $region49: #{bottleneck_forward.4} parent=47 // pred_check
        %p993 = pneg %p103
      $region50: #{bottleneck_forward.4} parent=47 // pred_check_branch
        %995 = sbr.rel (%p993) target = $region52
      $region51: #{bottleneck_forward.4} parent=47 // pred_region
        %s996 = smul.u32 32, %s23
        %p997 = scmp.lt.s32.totalorder %s22, 1
        %s998 = scalar_select %p997, %s22, 1
        %p999 = scmp.lt.s32.totalorder %s996, 31
        %s1000 = scalar_select %p999, %s996, 31
        %s1001 = smul.addr %s998, 32
        %s1002 = sadd.s32 %s1000, %s1001
        %s1003 = smul.addr %s1002, 4
        %s1004 = scalar_lea.vmem %s2, %s1003
      $region52: #{bottleneck_forward.4} parent=47 // pred_fallthru
        _
      // Predicated region
      $region53: #{bottleneck_forward.4} parent=47 // pred_check
        %p1005 = pneg %p129
      $region54: #{bottleneck_forward.4} parent=47 // pred_check_branch
        %1007 = sbr.rel (%p1005) target = $region56
      $region55: #{bottleneck_forward.4} parent=47 // pred_region
        %p1008 = scmp.lt.s32.totalorder %s22, 1
        %s1009 = scalar_select %p1008, %s22, 1
        %s1010 = scalar_lea.vmem %s3, %s1009
      $region56: #{bottleneck_forward.4} parent=47 // pred_fallthru
        _
      // Predicated region
      $region57: #{bottleneck_forward.4} parent=47 // pred_check
        %p1011 = pneg %p155
      $region58: #{bottleneck_forward.4} parent=47 // pred_check_branch
        %1013 = sbr.rel (%p1011) target = $region60
      $region59: #{bottleneck_forward.4} parent=47 // pred_region
        %p1014 = scmp.lt.s32.totalorder %s22, 1
        %s1015 = scalar_select %p1014, %s22, 1
        %s1016 = scalar_lea.vmem %s4, %s1015
      $region60: #{bottleneck_forward.4} parent=47 // pred_fallthru
        _
    $region48: #{bottleneck_forward.4} parent=5 // pred_fallthru
      _
  $region6: #{bottleneck_forward.4} parent=0 // loop_footer
    %s15 = sadd.s32 1, %s11
  $region7: #{bottleneck_forward.4} parent=0 // loop_footer_branch
    %10 = sbr.rel target = $region3
  $region8: #{bottleneck_forward.4} parent=0 // loop_exit
    _

// kernel: bottleneck_forward.6
$region0: #{bottleneck_forward.6}
  #allocation0 [shape = 'u32[]', space=smem, size = 0x4, offset = 0x4, fixed_abs, tag = 'smem constant byte address 0x4 - core index']
  #allocation1 [shape = 'u32[144,128]{1,0:T(1,128)}', space=vmem, size = 0x12000, scoped, tag = 'internal scratch']
  %s0 = inlined_call_operand.vmem [shape: bf16[2,256,4], index: 0, kind: input, shape index: {}]
  %s1 = inlined_call_operand.vmem [shape: f32[1,4], index: 1, kind: input, shape index: {}]
  %s2 = inlined_call_operand.vmem [shape: f32[1,4], index: 2, kind: input, shape index: {}]
  %s3 = inlined_call_operand.vmem [shape: bf16[4,16], index: 3, kind: input, shape index: {}]
  %s4 = inlined_call_operand.vmem [shape: bf16[2,256,16], index: 4, kind: output, shape index: {0}]
  %s5 = inlined_call_operand.vmem [shape: f32[2,1,16], index: 5, kind: output, shape index: {1}]
  %s6 = inlined_call_operand.vmem [shape: f32[2,1,16], index: 6, kind: output, shape index: {2}]
  %7 = xla_tuple %s4, %s5, %s6
  %s8 = sld [smem:[#allocation0]]
  $region65: #{bottleneck_forward.6} parent=0
    _
  %s10 = ssub.s32 1, %s8
  %s11 = scalar_select 0, %s10, %s8
  loop: start=0, step=1, limit=4
  $region2: #{bottleneck_forward.6} parent=0 // loop_pre_header
    _
  $region3: #{bottleneck_forward.6} parent=0 // loop_header
    %s13 = sphi 0, %s17
    %p14 = scmp.ge.s32.totalorder %s13, 4
    %s23 = sphi 0, %s25
    %s26 = sphi 0, %s23
    %s27 = sphi 0, %s26
    %s43 = sphi 0, %s27
    %s47 = sphi 0, %s47
    %s49 = sphi 0, %s47
    %s50 = sphi 0, %s49
    %s64 = sphi 0, %s50
    %s68 = sphi 0, %s68
    %s70 = sphi 0, %s68
    %s71 = sphi 0, %s70
    %s85 = sphi 0, %s71
    %s89 = sphi 0, %s89
    %s91 = sphi 0, %s89
    %s92 = sphi 0, %s91
    %s106 = sphi 0, %s92
    %s112 = sphi 0, %s114
    %s115 = sphi 0, %s112
    %s116 = sphi 0, %s115
    %s132 = sphi 0, %s116
    %s138 = sphi 0, %s140
    %s141 = sphi 0, %s138
    %s142 = sphi 0, %s141
    %s158 = sphi 0, %s142
    %s164 = sphi 0, %s166
    %s167 = sphi 0, %s164
    %s168 = sphi 0, %s167
    %s184 = sphi 0, %s168
  $region4: #{bottleneck_forward.6} parent=0 // loop_header_branch
    %16 = sbr.rel (%p14) target = $region8
  $region5: #{bottleneck_forward.6} parent=0 // loop_body
    %s18 = ssub.s32 %s13, 1
    %s19 = ssub.s32 %s13, 2
    %s20 = sadd.s32 %s13, 1
    %s21 = ssub.s32 %s13, %s20
    %p22 = scmp.eq.s32.totalorder %s21, 0
    %s24 = sadd.s32 %s23, 1
    %s25 = scalar_select %p22, %s23, %s24
    %p28 = pneg %p22
    %p29 = scmp.eq.s32.totalorder %s13, 1
    %p30 = por %p28, %p29
    %p31 = scmp.ne.s32.totalorder %s23, %s26
    %p32 = scmp.eq.s32.totalorder %s13, 0
    %p33 = por %p31, %p32
    %p34 = scmp.ne.s32.totalorder %s23, %s26
    %p35 = scmp.eq.s32.totalorder %s18, 1
    %p36 = por %p34, %p35
    %p37 = scmp.ne.s32.totalorder %s26, %s27
    %p38 = scmp.eq.s32.totalorder %s18, 0
    %p39 = por %p37, %p38
    %p40 = scmp.ne.s32.totalorder %s26, %s27
    %p41 = scmp.eq.s32.totalorder %s19, 1
    %p42 = por %p40, %p41
    %p44 = scmp.ne.s32.totalorder %s27, %s43
    %p45 = scmp.eq.s32.totalorder %s19, 0
    %p46 = por %p44, %p45
    %s48 = sadd.s32 %s47, 1
    %p51 = scmp.eq.s32.totalorder %s13, 1
    %p52 = scmp.ne.s32.totalorder %s47, %s49
    %p53 = scmp.eq.s32.totalorder %s13, 0
    %p54 = por %p52, %p53
    %p55 = scmp.ne.s32.totalorder %s47, %s49
    %p56 = scmp.eq.s32.totalorder %s18, 1
    %p57 = por %p55, %p56
    %p58 = scmp.ne.s32.totalorder %s49, %s50
    %p59 = scmp.eq.s32.totalorder %s18, 0
    %p60 = por %p58, %p59
    %p61 = scmp.ne.s32.totalorder %s49, %s50
    %p62 = scmp.eq.s32.totalorder %s19, 1
    %p63 = por %p61, %p62
    %p65 = scmp.ne.s32.totalorder %s50, %s64
    %p66 = scmp.eq.s32.totalorder %s19, 0
    %p67 = por %p65, %p66
    %s69 = sadd.s32 %s68, 1
    %p72 = scmp.eq.s32.totalorder %s13, 1
    %p73 = scmp.ne.s32.totalorder %s68, %s70
    %p74 = scmp.eq.s32.totalorder %s13, 0
    %p75 = por %p73, %p74
    %p76 = scmp.ne.s32.totalorder %s68, %s70
    %p77 = scmp.eq.s32.totalorder %s18, 1
    %p78 = por %p76, %p77
    %p79 = scmp.ne.s32.totalorder %s70, %s71
    %p80 = scmp.eq.s32.totalorder %s18, 0
    %p81 = por %p79, %p80
    %p82 = scmp.ne.s32.totalorder %s70, %s71
    %p83 = scmp.eq.s32.totalorder %s19, 1
    %p84 = por %p82, %p83
    %p86 = scmp.ne.s32.totalorder %s71, %s85
    %p87 = scmp.eq.s32.totalorder %s19, 0
    %p88 = por %p86, %p87
    %s90 = sadd.s32 %s89, 1
    %p93 = scmp.eq.s32.totalorder %s13, 1
    %p94 = scmp.ne.s32.totalorder %s89, %s91
    %p95 = scmp.eq.s32.totalorder %s13, 0
    %p96 = por %p94, %p95
    %p97 = scmp.ne.s32.totalorder %s89, %s91
    %p98 = scmp.eq.s32.totalorder %s18, 1
    %p99 = por %p97, %p98
    %p100 = scmp.ne.s32.totalorder %s91, %s92
    %p101 = scmp.eq.s32.totalorder %s18, 0
    %p102 = por %p100, %p101
    %p103 = scmp.ne.s32.totalorder %s91, %s92
    %p104 = scmp.eq.s32.totalorder %s19, 1
    %p105 = por %p103, %p104
    %p107 = scmp.ne.s32.totalorder %s92, %s106
    %p108 = scmp.eq.s32.totalorder %s19, 0
    %p109 = por %p107, %p108
    %s110 = ssub.s32 %s13, %s20
    %p111 = scmp.eq.s32.totalorder %s110, 0
    %s113 = sadd.s32 %s112, 1
    %s114 = scalar_select %p111, %s112, %s113
    %p117 = pneg %p111
    %p118 = scmp.eq.s32.totalorder %s13, 1
    %p119 = por %p117, %p118
    %p120 = scmp.ne.s32.totalorder %s112, %s115
    %p121 = scmp.eq.s32.totalorder %s13, 0
    %p122 = por %p120, %p121
    %p123 = scmp.ne.s32.totalorder %s112, %s115
    %p124 = scmp.eq.s32.totalorder %s18, 1
    %p125 = por %p123, %p124
    %p126 = scmp.ne.s32.totalorder %s115, %s116
    %p127 = scmp.eq.s32.totalorder %s18, 0
    %p128 = por %p126, %p127
    %p129 = scmp.ne.s32.totalorder %s115, %s116
    %p130 = scmp.eq.s32.totalorder %s19, 1
    %p131 = por %p129, %p130
    %p133 = scmp.ne.s32.totalorder %s116, %s132
    %p134 = scmp.eq.s32.totalorder %s19, 0
    %p135 = por %p133, %p134
    %s136 = ssub.s32 %s13, %s20
    %p137 = scmp.eq.s32.totalorder %s136, 0
    %s139 = sadd.s32 %s138, 1
    %s140 = scalar_select %p137, %s138, %s139
    %p143 = pneg %p137
    %p144 = scmp.eq.s32.totalorder %s13, 1
    %p145 = por %p143, %p144
    %p146 = scmp.ne.s32.totalorder %s138, %s141
    %p147 = scmp.eq.s32.totalorder %s13, 0
    %p148 = por %p146, %p147
    %p149 = scmp.ne.s32.totalorder %s138, %s141
    %p150 = scmp.eq.s32.totalorder %s18, 1
    %p151 = por %p149, %p150
    %p152 = scmp.ne.s32.totalorder %s141, %s142
    %p153 = scmp.eq.s32.totalorder %s18, 0
    %p154 = por %p152, %p153
    %p155 = scmp.ne.s32.totalorder %s141, %s142
    %p156 = scmp.eq.s32.totalorder %s19, 1
    %p157 = por %p155, %p156
    %p159 = scmp.ne.s32.totalorder %s142, %s158
    %p160 = scmp.eq.s32.totalorder %s19, 0
    %p161 = por %p159, %p160
    %s162 = ssub.s32 %s13, %s20
    %p163 = scmp.eq.s32.totalorder %s162, 0
    %s165 = sadd.s32 %s164, 1
    %s166 = scalar_select %p163, %s164, %s165
    %p169 = pneg %p163
    %p170 = scmp.eq.s32.totalorder %s13, 1
    %p171 = por %p169, %p170
    %p172 = scmp.ne.s32.totalorder %s164, %s167
    %p173 = scmp.eq.s32.totalorder %s13, 0
    %p174 = por %p172, %p173
    %p175 = scmp.ne.s32.totalorder %s164, %s167
    %p176 = scmp.eq.s32.totalorder %s18, 1
    %p177 = por %p175, %p176
    %p178 = scmp.ne.s32.totalorder %s167, %s168
    %p179 = scmp.eq.s32.totalorder %s18, 0
    %p180 = por %p178, %p179
    %p181 = scmp.ne.s32.totalorder %s167, %s168
    %p182 = scmp.eq.s32.totalorder %s19, 1
    %p183 = por %p181, %p182
    %p185 = scmp.ne.s32.totalorder %s168, %s184
    %p186 = scmp.eq.s32.totalorder %s19, 0
    %p187 = por %p185, %p186
    %p188 = scmp.le.s32.totalorder 1, %s13
    %p189 = scmp.lt.s32.totalorder %s13, 3
    %p190 = pnand %p188, %p189
    %p191 = pneg %p190
    // Predicated region
    $region9: #{bottleneck_forward.6} parent=5 // pred_check
      _
    $region10: #{bottleneck_forward.6} parent=5 // pred_check_branch
      %193 = sbr.rel (%p190) target = $region12
    $region11: #{bottleneck_forward.6} parent=5 // pred_region
      %s194 = ssub.s32 %s13, 1
      // Predicated region
      $region13: #{bottleneck_forward.6} parent=11 // pred_check
        %p195 = pneg %p60
      $region14: #{bottleneck_forward.6} parent=11 // pred_check_branch
        %197 = sbr.rel (%p195) target = $region16
      $region15: #{bottleneck_forward.6} parent=11 // pred_region
        _
      $region16: #{bottleneck_forward.6} parent=11 // pred_fallthru
        _
      // Predicated region
      $region17: #{bottleneck_forward.6} parent=11 // pred_check
        %p198 = pneg %p81
      $region18: #{bottleneck_forward.6} parent=11 // pred_check_branch
        %200 = sbr.rel (%p198) target = $region20
      $region19: #{bottleneck_forward.6} parent=11 // pred_region
        _
      $region20: #{bottleneck_forward.6} parent=11 // pred_fallthru
        _
      // Predicated region
      $region21: #{bottleneck_forward.6} parent=11 // pred_check
        %p201 = pneg %p102
      $region22: #{bottleneck_forward.6} parent=11 // pred_check_branch
        %203 = sbr.rel (%p201) target = $region24
      $region23: #{bottleneck_forward.6} parent=11 // pred_region
        _
      $region24: #{bottleneck_forward.6} parent=11 // pred_fallthru
        _
    $region12: #{bottleneck_forward.6} parent=5 // pred_fallthru
      _
    %p204 = scmp.lt.s32.totalorder %s13, 2
    // Predicated region
    $region25: #{bottleneck_forward.6} parent=5 // pred_check
      %p205 = pneg %p204
    $region26: #{bottleneck_forward.6} parent=5 // pred_check_branch
      %207 = sbr.rel (%p205) target = $region28
    $region27: #{bottleneck_forward.6} parent=5 // pred_region
      // Predicated region
      $region29: #{bottleneck_forward.6} parent=27 // pred_check
        %p208 = pneg %p33
      $region30: #{bottleneck_forward.6} parent=27 // pred_check_branch
        %210 = sbr.rel (%p208) target = $region32
      $region31: #{bottleneck_forward.6} parent=27 // pred_region
        %p211 = scmp.lt.s32.totalorder %s13, 1
        %s212 = scalar_select %p211, %s13, 1
        %s213 = smul.addr %s212, 32
        %s214 = smul.addr %s213, 4
        %s215 = scalar_lea.vmem %s0, %s214
      $region32: #{bottleneck_forward.6} parent=27 // pred_fallthru
        _
    $region28: #{bottleneck_forward.6} parent=5 // pred_fallthru
      _
    %p216 = scmp.le.s32.totalorder 1, %s13
    %p217 = scmp.lt.s32.totalorder %s13, 3
    %p218 = pnand %p216, %p217
    %p219 = pneg %p218
    // Predicated region
    $region33: #{bottleneck_forward.6} parent=5 // pred_check
      _
    $region34: #{bottleneck_forward.6} parent=5 // pred_check_branch
      %221 = sbr.rel (%p218) target = $region36
    $region35: #{bottleneck_forward.6} parent=5 // pred_region
      %s222 = ssub.s32 %s13, 1
      %p223 = scmp.lt.s32.totalorder %s18, 1
      %s224 = scalar_select %p223, %s18, 1
      %s225 = smul.addr %s224, 32
      %s226 = smul.addr %s225, 4
      %s227 = scalar_lea.vmem %s0, %s226
      %p228 = pneg %p39
      %p229 = pneg %p36
      %p230 = pneg %p60
      %p231 = pneg %p57
      %p232 = pneg %p81
      %p233 = pneg %p78
      %p234 = pneg %p102
      %p235 = pneg %p99
      %p236 = pneg %p128
      %p237 = pneg %p125
      %p238 = scmp.lt.s32.totalorder %s18, 1
      %s239 = scalar_select %p238, %s18, 1
      %s240 = smul.addr %s239, 32
      %s241 = smul.addr %s240, 4
      %s242 = scalar_lea.vmem %s4, %s241
      %p243 = pneg %p154
      %p244 = pneg %p151
      %p245 = scmp.lt.s32.totalorder %s18, 1
      %s246 = scalar_select %p245, %s18, 1
      %s247 = scalar_lea.vmem %s5, %s246
      %p248 = pneg %p180
      %p249 = pneg %p177
      %p250 = scmp.lt.s32.totalorder %s18, 1
      %s251 = scalar_select %p250, %s18, 1
      %s252 = scalar_lea.vmem %s6, %s251
      %p253 = scmp.lt.s32.totalorder %s18, 1
      %s254 = scalar_select %p253, %s18, 1
      %s255 = smul.addr %s254, 32
      %s256 = smul.addr %s255, 4
      %s257 = scalar_lea.vmem %s0, %s256
      %p258 = scmp.lt.s32.totalorder %s18, 1
      %s259 = scalar_select %p258, %s18, 1
      %s260 = smul.addr %s259, 32
      %s261 = smul.addr %s260, 4
      %s262 = scalar_lea.vmem %s4, %s261
      %p263 = scmp.lt.s32.totalorder %s18, 1
      %s264 = scalar_select %p263, %s18, 1
      %s265 = scalar_lea.vmem %s5, %s264
      %p266 = scmp.lt.s32.totalorder %s18, 1
      %s267 = scalar_select %p266, %s18, 1
      %s268 = scalar_lea.vmem %s6, %s267
      %v270 = vld [vmem:[%s257] sm:$0xf]
      %v271 = vld [vmem:[%s257 + $0x4] sm:$0xf]
      %v272 = vld [vmem:[%s257 + $0x8] sm:$0xf]
      %v273 = vld [vmem:[%s257 + $0xc] sm:$0xf]
      %v274 = vld [vmem:[%s257 + $0x10] sm:$0xf]
      %v275 = vld [vmem:[%s257 + $0x14] sm:$0xf]
      %v276 = vld [vmem:[%s257 + $0x18] sm:$0xf]
      %v277 = vld [vmem:[%s257 + $0x1c] sm:$0xf]
      %v278 = vld [vmem:[%s257 + $0x20] sm:$0xf]
      %v279 = vld [vmem:[%s257 + $0x24] sm:$0xf]
      %v280 = vld [vmem:[%s257 + $0x28] sm:$0xf]
      %v281 = vld [vmem:[%s257 + $0x2c] sm:$0xf]
      %v282 = vld [vmem:[%s257 + $0x30] sm:$0xf]
      %v283 = vld [vmem:[%s257 + $0x34] sm:$0xf]
      %v284 = vld [vmem:[%s257 + $0x38] sm:$0xf]
      %v285 = vld [vmem:[%s257 + $0x3c] sm:$0xf]
      %v286 = vld [vmem:[%s257 + $0x40] sm:$0xf]
      %v287 = vld [vmem:[%s257 + $0x44] sm:$0xf]
      %v288 = vld [vmem:[%s257 + $0x48] sm:$0xf]
      %v289 = vld [vmem:[%s257 + $0x4c] sm:$0xf]
      %v290 = vld [vmem:[%s257 + $0x50] sm:$0xf]
      %v291 = vld [vmem:[%s257 + $0x54] sm:$0xf]
      %v292 = vld [vmem:[%s257 + $0x58] sm:$0xf]
      %v293 = vld [vmem:[%s257 + $0x5c] sm:$0xf]
      %v294 = vld [vmem:[%s257 + $0x60] sm:$0xf]
      %v295 = vld [vmem:[%s257 + $0x64] sm:$0xf]
      %v296 = vld [vmem:[%s257 + $0x68] sm:$0xf]
      %v297 = vld [vmem:[%s257 + $0x6c] sm:$0xf]
      %v298 = vld [vmem:[%s257 + $0x70] sm:$0xf]
      %v299 = vld [vmem:[%s257 + $0x74] sm:$0xf]
      %v300 = vld [vmem:[%s257 + $0x78] sm:$0xf]
      %v301 = vld [vmem:[%s257 + $0x7c] sm:$0xf]
      %v302 = vunpack.c.l.bf16 %v270
      %v303 = vunpack.c.l.bf16 %v271
      %v304 = vunpack.c.l.bf16 %v272
      %v305 = vunpack.c.l.bf16 %v273
      %v306 = vunpack.c.l.bf16 %v274
      %v307 = vunpack.c.l.bf16 %v275
      %v308 = vunpack.c.l.bf16 %v276
      %v309 = vunpack.c.l.bf16 %v277
      %v310 = vunpack.c.l.bf16 %v278
      %v311 = vunpack.c.l.bf16 %v279
      %v312 = vunpack.c.l.bf16 %v280
      %v313 = vunpack.c.l.bf16 %v281
      %v314 = vunpack.c.l.bf16 %v282
      %v315 = vunpack.c.l.bf16 %v283
      %v316 = vunpack.c.l.bf16 %v284
      %v317 = vunpack.c.l.bf16 %v285
      %v318 = vunpack.c.l.bf16 %v286
      %v319 = vunpack.c.l.bf16 %v287
      %v320 = vunpack.c.l.bf16 %v288
      %v321 = vunpack.c.l.bf16 %v289
      %v322 = vunpack.c.l.bf16 %v290
      %v323 = vunpack.c.l.bf16 %v291
      %v324 = vunpack.c.l.bf16 %v292
      %v325 = vunpack.c.l.bf16 %v293
      %v326 = vunpack.c.l.bf16 %v294
      %v327 = vunpack.c.l.bf16 %v295
      %v328 = vunpack.c.l.bf16 %v296
      %v329 = vunpack.c.l.bf16 %v297
      %v330 = vunpack.c.l.bf16 %v298
      %v331 = vunpack.c.l.bf16 %v299
      %v332 = vunpack.c.l.bf16 %v300
      %v333 = vunpack.c.l.bf16 %v301
      %v334 = vld [vmem:[%s1] sm:$0x1]
      %v336 = vlaneseq
      %v337 = vshrl.u32 %v336, 7
      %v338 = vsub.s32 0, %v337
      %v339 = vrot.slane %v334, %v338
      %v341 = vmul.f32 %v302, %v339
      %v342 = vmul.f32 %v303, %v339
      %v343 = vmul.f32 %v304, %v339
      %v344 = vmul.f32 %v305, %v339
      %v345 = vmul.f32 %v306, %v339
      %v346 = vmul.f32 %v307, %v339
      %v347 = vmul.f32 %v308, %v339
      %v348 = vmul.f32 %v309, %v339
      %v349 = vmul.f32 %v310, %v339
      %v350 = vmul.f32 %v311, %v339
      %v351 = vmul.f32 %v312, %v339
      %v352 = vmul.f32 %v313, %v339
      %v353 = vmul.f32 %v314, %v339
      %v354 = vmul.f32 %v315, %v339
      %v355 = vmul.f32 %v316, %v339
      %v356 = vmul.f32 %v317, %v339
      %v357 = vmul.f32 %v318, %v339
      %v358 = vmul.f32 %v319, %v339
      %v359 = vmul.f32 %v320, %v339
      %v360 = vmul.f32 %v321, %v339
      %v361 = vmul.f32 %v322, %v339
      %v362 = vmul.f32 %v323, %v339
      %v363 = vmul.f32 %v324, %v339
      %v364 = vmul.f32 %v325, %v339
      %v365 = vmul.f32 %v326, %v339
      %v366 = vmul.f32 %v327, %v339
      %v367 = vmul.f32 %v328, %v339
      %v368 = vmul.f32 %v329, %v339
      %v369 = vmul.f32 %v330, %v339
      %v370 = vmul.f32 %v331, %v339
      %v371 = vmul.f32 %v332, %v339
      %v372 = vmul.f32 %v333, %v339
      %v373 = vld [vmem:[%s2] sm:$0x1]
      %v375 = vlaneseq
      %v376 = vshrl.u32 %v375, 7
      %v377 = vsub.s32 0, %v376
      %v378 = vrot.slane %v373, %v377
      %v380 = vadd.f32 %v341, %v378
      %v381 = vadd.f32 %v342, %v378
      %v382 = vadd.f32 %v343, %v378
      %v383 = vadd.f32 %v344, %v378
      %v384 = vadd.f32 %v345, %v378
      %v385 = vadd.f32 %v346, %v378
      %v386 = vadd.f32 %v347, %v378
      %v387 = vadd.f32 %v348, %v378
      %v388 = vadd.f32 %v349, %v378
      %v389 = vadd.f32 %v350, %v378
      %v390 = vadd.f32 %v351, %v378
      %v391 = vadd.f32 %v352, %v378
      %v392 = vadd.f32 %v353, %v378
      %v393 = vadd.f32 %v354, %v378
      %v394 = vadd.f32 %v355, %v378
      %v395 = vadd.f32 %v356, %v378
      %v396 = vadd.f32 %v357, %v378
      %v397 = vadd.f32 %v358, %v378
      %v398 = vadd.f32 %v359, %v378
      %v399 = vadd.f32 %v360, %v378
      %v400 = vadd.f32 %v361, %v378
      %v401 = vadd.f32 %v362, %v378
      %v402 = vadd.f32 %v363, %v378
      %v403 = vadd.f32 %v364, %v378
      %v404 = vadd.f32 %v365, %v378
      %v405 = vadd.f32 %v366, %v378
      %v406 = vadd.f32 %v367, %v378
      %v407 = vadd.f32 %v368, %v378
      %v408 = vadd.f32 %v369, %v378
      %v409 = vadd.f32 %v370, %v378
      %v410 = vadd.f32 %v371, %v378
      %v411 = vadd.f32 %v372, %v378
      %v412 = vmax.f32 %v380, 0.0
      %v413 = vmax.f32 %v381, 0.0
      %v414 = vmax.f32 %v382, 0.0
      %v415 = vmax.f32 %v383, 0.0
      %v416 = vmax.f32 %v384, 0.0
      %v417 = vmax.f32 %v385, 0.0
      %v418 = vmax.f32 %v386, 0.0
      %v419 = vmax.f32 %v387, 0.0
      %v420 = vmax.f32 %v388, 0.0
      %v421 = vmax.f32 %v389, 0.0
      %v422 = vmax.f32 %v390, 0.0
      %v423 = vmax.f32 %v391, 0.0
      %v424 = vmax.f32 %v392, 0.0
      %v425 = vmax.f32 %v393, 0.0
      %v426 = vmax.f32 %v394, 0.0
      %v427 = vmax.f32 %v395, 0.0
      %v428 = vmax.f32 %v396, 0.0
      %v429 = vmax.f32 %v397, 0.0
      %v430 = vmax.f32 %v398, 0.0
      %v431 = vmax.f32 %v399, 0.0
      %v432 = vmax.f32 %v400, 0.0
      %v433 = vmax.f32 %v401, 0.0
      %v434 = vmax.f32 %v402, 0.0
      %v435 = vmax.f32 %v403, 0.0
      %v436 = vmax.f32 %v404, 0.0
      %v437 = vmax.f32 %v405, 0.0
      %v438 = vmax.f32 %v406, 0.0
      %v439 = vmax.f32 %v407, 0.0
      %v440 = vmax.f32 %v408, 0.0
      %v441 = vmax.f32 %v409, 0.0
      %v442 = vmax.f32 %v410, 0.0
      %v443 = vmax.f32 %v411, 0.0
      %v444 = vpack.c.bf16 %v413, %v412
      %v445 = vpack.c.bf16 %v415, %v414
      %v446 = vpack.c.bf16 %v417, %v416
      %v447 = vpack.c.bf16 %v419, %v418
      %v448 = vpack.c.bf16 %v421, %v420
      %v449 = vpack.c.bf16 %v423, %v422
      %v450 = vpack.c.bf16 %v425, %v424
      %v451 = vpack.c.bf16 %v427, %v426
      %v452 = vpack.c.bf16 %v429, %v428
      %v453 = vpack.c.bf16 %v431, %v430
      %v454 = vpack.c.bf16 %v433, %v432
      %v455 = vpack.c.bf16 %v435, %v434
      %v456 = vpack.c.bf16 %v437, %v436
      %v457 = vpack.c.bf16 %v439, %v438
      %v458 = vpack.c.bf16 %v441, %v440
      %v459 = vpack.c.bf16 %v443, %v442
      %v460 = vld [vmem:[%s3] sm:$0x3]
      %vm461 = vcmask 31744
      %v463 = vsel %vm461, %v444, 0
      %v466 = vsel %vm461, %v445, 0
      %v469 = vsel %vm461, %v446, 0
      %v472 = vsel %vm461, %v447, 0
      %v475 = vsel %vm461, %v448, 0
      %v478 = vsel %vm461, %v449, 0
      %v481 = vsel %vm461, %v450, 0
      %v484 = vsel %vm461, %v451, 0
      %v487 = vsel %vm461, %v452, 0
      %v490 = vsel %vm461, %v453, 0
      %v493 = vsel %vm461, %v454, 0
      %v496 = vsel %vm461, %v455, 0
      %v499 = vsel %vm461, %v456, 0
      %v502 = vsel %vm461, %v457, 0
      %v505 = vsel %vm461, %v458, 0
      %v508 = vsel %vm461, %v459, 0
      %vm510 = vcmask 1041408
      %v512 = vsel %vm510, %v460, 0
      %514 = vmatprep.subr.bf16.mxu0 0
      %515 = vmatpush1.bf16.msra.mxu0 %v512
      %516 = vmatprep.subr.bf16.mxu0 0
      %517 = vmatpush1.bf16.msra.mxu0 0
      %518 = vmatprep.subr.bf16.mxu0 0
      %519 = vmatpush1.bf16.msra.mxu0 0
      %520 = vmatprep.subr.bf16.mxu0 0
      %521 = vmatpush1.bf16.msra.mxu0 0
      %522 = vmatprep.subr.bf16.mxu0 0
      %523 = vmatpush1.bf16.msra.mxu0 0
      %524 = vmatprep.subr.bf16.mxu0 0
      %525 = vmatpush1.bf16.msra.mxu0 0
      %526 = vmatprep.subr.bf16.mxu0 0
      %527 = vmatpush1.bf16.msra.mxu0 0
      %528 = vmatprep.subr.bf16.mxu0 0
      %529 = vmatpush1.bf16.msra.mxu0 0
      %530 = vmatprep.subr.bf16.mxu0 0
      %531 = vmatpush1.bf16.msra.mxu0 0
      %532 = vmatprep.subr.bf16.mxu0 0
      %533 = vmatpush1.bf16.msra.mxu0 0
      %534 = vmatprep.subr.bf16.mxu0 0
      %535 = vmatpush1.bf16.msra.mxu0 0
      %536 = vmatprep.subr.bf16.mxu0 0
      %537 = vmatpush1.bf16.msra.mxu0 0
      %538 = vmatprep.subr.bf16.mxu0 0
      %539 = vmatpush1.bf16.msra.mxu0 0
      %540 = vmatprep.subr.bf16.mxu0 0
      %541 = vmatpush1.bf16.msra.mxu0 0
      %542 = vmatprep.subr.bf16.mxu0 0
      %543 = vmatpush1.bf16.msra.mxu0 0
      %544 = vmatprep.subr.bf16.mxu0 0
      %545 = vmatpush1.bf16.msra.mxu0 0
      %546 = vmatprep.mubr.bf16.mxu0 0
      %547 = vmatmul.mubr.bf16.gmra.mrb[0].mxu0 %v463
      %v548 = vpop.f32.mrb[0].mxu0
      %v549 = vadd.f32 0.0, %v548
      %v550 = vpop.f32.mrb[0].mxu0
      %v551 = vpop.f32.mrb[0].mxu0
      %v552 = vadd.f32 0.0, %v551
      %v553 = vpop.f32.mrb[0].mxu0
      %554 = vmatprep.mubr.bf16.mxu0 0
      %555 = vmatmul.mubr.bf16.gmra.mrb[0].mxu0 %v466
      %v556 = vpop.f32.mrb[0].mxu0
      %v557 = vadd.f32 0.0, %v556
      %v558 = vpop.f32.mrb[0].mxu0
      %v559 = vpop.f32.mrb[0].mxu0
      %v560 = vadd.f32 0.0, %v559
      %v561 = vpop.f32.mrb[0].mxu0
      %562 = vmatprep.mubr.bf16.mxu0 0
      %563 = vmatmul.mubr.bf16.gmra.mrb[0].mxu0 %v469
      %v564 = vpop.f32.mrb[0].mxu0
      %v565 = vadd.f32 0.0, %v564
      %v566 = vpop.f32.mrb[0].mxu0
      %v567 = vpop.f32.mrb[0].mxu0
      %v568 = vadd.f32 0.0, %v567
      %v569 = vpop.f32.mrb[0].mxu0
      %570 = vmatprep.mubr.bf16.mxu0 0
      %571 = vmatmul.mubr.bf16.gmra.mrb[0].mxu0 %v472
      %v572 = vpop.f32.mrb[0].mxu0
      %v573 = vadd.f32 0.0, %v572
      %v574 = vpop.f32.mrb[0].mxu0
      %v575 = vpop.f32.mrb[0].mxu0
      %v576 = vadd.f32 0.0, %v575
      %v577 = vpop.f32.mrb[0].mxu0
      %578 = vmatprep.mubr.bf16.mxu0 0
      %579 = vmatmul.mubr.bf16.gmra.mrb[0].mxu0 %v475
      %v580 = vpop.f32.mrb[0].mxu0
      %v581 = vadd.f32 0.0, %v580
      %v582 = vpop.f32.mrb[0].mxu0
      %v583 = vpop.f32.mrb[0].mxu0
      %v584 = vadd.f32 0.0, %v583
      %v585 = vpop.f32.mrb[0].mxu0
      %586 = vmatprep.mubr.bf16.mxu0 0
      %587 = vmatmul.mubr.bf16.gmra.mrb[0].mxu0 %v478
      %v588 = vpop.f32.mrb[0].mxu0
      %v589 = vadd.f32 0.0, %v588
      %v590 = vpop.f32.mrb[0].mxu0
      %v591 = vpop.f32.mrb[0].mxu0
      %v592 = vadd.f32 0.0, %v591
      %v593 = vpop.f32.mrb[0].mxu0
      %594 = vmatprep.mubr.bf16.mxu0 0
      %595 = vmatmul.mubr.bf16.gmra.mrb[0].mxu0 %v481
      %v596 = vpop.f32.mrb[0].mxu0
      %v597 = vadd.f32 0.0, %v596
      %v598 = vpop.f32.mrb[0].mxu0
      %v599 = vpop.f32.mrb[0].mxu0
      %v600 = vadd.f32 0.0, %v599
      %v601 = vpop.f32.mrb[0].mxu0
      %602 = vmatprep.mubr.bf16.mxu0 0
      %603 = vmatmul.mubr.bf16.gmra.mrb[0].mxu0 %v484
      %v604 = vpop.f32.mrb[0].mxu0
      %v605 = vadd.f32 0.0, %v604
      %v606 = vpop.f32.mrb[0].mxu0
      %v607 = vpop.f32.mrb[0].mxu0
      %v608 = vadd.f32 0.0, %v607
      %v609 = vpop.f32.mrb[0].mxu0
      %610 = vmatprep.mubr.bf16.mxu0 0
      %611 = vmatmul.mubr.bf16.gmra.mrb[0].mxu0 %v487
      %v612 = vpop.f32.mrb[0].mxu0
      %v613 = vadd.f32 0.0, %v612
      %v614 = vpop.f32.mrb[0].mxu0
      %v615 = vpop.f32.mrb[0].mxu0
      %v616 = vadd.f32 0.0, %v615
      %v617 = vpop.f32.mrb[0].mxu0
      %618 = vmatprep.mubr.bf16.mxu0 0
      %619 = vmatmul.mubr.bf16.gmra.mrb[0].mxu0 %v490
      %v620 = vpop.f32.mrb[0].mxu0
      %v621 = vadd.f32 0.0, %v620
      %v622 = vpop.f32.mrb[0].mxu0
      %v623 = vpop.f32.mrb[0].mxu0
      %v624 = vadd.f32 0.0, %v623
      %v625 = vpop.f32.mrb[0].mxu0
      %626 = vmatprep.mubr.bf16.mxu0 0
      %627 = vmatmul.mubr.bf16.gmra.mrb[0].mxu0 %v493
      %v628 = vpop.f32.mrb[0].mxu0
      %v629 = vadd.f32 0.0, %v628
      %v630 = vpop.f32.mrb[0].mxu0
      %v631 = vpop.f32.mrb[0].mxu0
      %v632 = vadd.f32 0.0, %v631
      %v633 = vpop.f32.mrb[0].mxu0
      %634 = vmatprep.mubr.bf16.mxu0 0
      %635 = vmatmul.mubr.bf16.gmra.mrb[0].mxu0 %v496
      %v636 = vpop.f32.mrb[0].mxu0
      %v637 = vadd.f32 0.0, %v636
      %v638 = vpop.f32.mrb[0].mxu0
      %v639 = vpop.f32.mrb[0].mxu0
      %v640 = vadd.f32 0.0, %v639
      %v641 = vpop.f32.mrb[0].mxu0
      %642 = vmatprep.mubr.bf16.mxu0 0
      %643 = vmatmul.mubr.bf16.gmra.mrb[0].mxu0 %v499
      %v644 = vpop.f32.mrb[0].mxu0
      %v645 = vadd.f32 0.0, %v644
      %v646 = vpop.f32.mrb[0].mxu0
      %v647 = vpop.f32.mrb[0].mxu0
      %v648 = vadd.f32 0.0, %v647
      %v649 = vpop.f32.mrb[0].mxu0
      %650 = vmatprep.mubr.bf16.mxu0 0
      %651 = vmatmul.mubr.bf16.gmra.mrb[0].mxu0 %v502
      %v652 = vpop.f32.mrb[0].mxu0
      %v653 = vadd.f32 0.0, %v652
      %v654 = vpop.f32.mrb[0].mxu0
      %v655 = vpop.f32.mrb[0].mxu0
      %v656 = vadd.f32 0.0, %v655
      %v657 = vpop.f32.mrb[0].mxu0
      %658 = vmatprep.mubr.bf16.mxu0 0
      %659 = vmatmul.mubr.bf16.gmra.mrb[0].mxu0 %v505
      %v660 = vpop.f32.mrb[0].mxu0
      %v661 = vadd.f32 0.0, %v660
      %v662 = vpop.f32.mrb[0].mxu0
      %v663 = vpop.f32.mrb[0].mxu0
      %v664 = vadd.f32 0.0, %v663
      %v665 = vpop.f32.mrb[0].mxu0
      %666 = vmatprep.mubr.bf16.mxu0 0
      %667 = vmatmul.mubr.bf16.gmra.mrb[0].mxu0 %v508
      %v668 = vpop.f32.mrb[0].mxu0
      %v669 = vadd.f32 0.0, %v668
      %v670 = vpop.f32.mrb[0].mxu0
      %v671 = vpop.f32.mrb[0].mxu0
      %v672 = vadd.f32 0.0, %v671
      %v673 = vpop.f32.mrb[0].mxu0
      %674 = vdwg.mxu0
      %v675 = vpack.c.bf16 %v552, %v549
      %v676 = vpack.c.bf16 %v560, %v557
      %v677 = vpack.c.bf16 %v568, %v565
      %v678 = vpack.c.bf16 %v576, %v573
      %v679 = vpack.c.bf16 %v584, %v581
      %v680 = vpack.c.bf16 %v592, %v589
      %v681 = vpack.c.bf16 %v600, %v597
      %v682 = vpack.c.bf16 %v608, %v605
      %v683 = vpack.c.bf16 %v616, %v613
      %v684 = vpack.c.bf16 %v624, %v621
      %v685 = vpack.c.bf16 %v632, %v629
      %v686 = vpack.c.bf16 %v640, %v637
      %v687 = vpack.c.bf16 %v648, %v645
      %v688 = vpack.c.bf16 %v656, %v653
      %v689 = vpack.c.bf16 %v664, %v661
      %v690 = vpack.c.bf16 %v672, %v669
      %v707 = vunpack.c.l.b16 %v675
      %v708 = vunpack.c.h.b16 %v675
      %v709 = vunpack.c.l.b16 %v676
      %v710 = vunpack.c.h.b16 %v676
      %v711 = vunpack.c.l.b16 %v677
      %v712 = vunpack.c.h.b16 %v677
      %v713 = vunpack.c.l.b16 %v678
      %v714 = vunpack.c.h.b16 %v678
      %v715 = vunpack.c.l.b16 %v679
      %v716 = vunpack.c.h.b16 %v679
      %v717 = vunpack.c.l.b16 %v680
      %v718 = vunpack.c.h.b16 %v680
      %v719 = vunpack.c.l.b16 %v681
      %v720 = vunpack.c.h.b16 %v681
      %v721 = vunpack.c.l.b16 %v682
      %v722 = vunpack.c.h.b16 %v682
      %v723 = vunpack.c.l.b16 %v683
      %v724 = vunpack.c.h.b16 %v683
      %v725 = vunpack.c.l.b16 %v684
      %v726 = vunpack.c.h.b16 %v684
      %v727 = vunpack.c.l.b16 %v685
      %v728 = vunpack.c.h.b16 %v685
      %v729 = vunpack.c.l.b16 %v686
      %v730 = vunpack.c.h.b16 %v686
      %v731 = vunpack.c.l.b16 %v687
      %v732 = vunpack.c.h.b16 %v687
      %v733 = vunpack.c.l.b16 %v688
      %v734 = vunpack.c.h.b16 %v688
      %v735 = vunpack.c.l.b16 %v689
      %v736 = vunpack.c.h.b16 %v689
      %v737 = vunpack.c.l.b16 %v690
      %v738 = vunpack.c.h.b16 %v690
      %v739 = vpack.c.b16 %v707, %v707
      %v740 = vpack.c.b16 %v708, %v708
      %v741 = vpack.c.b16 %v709, %v709
      %v742 = vpack.c.b16 %v710, %v710
      %v743 = vpack.c.b16 %v711, %v711
      %v744 = vpack.c.b16 %v712, %v712
      %v745 = vpack.c.b16 %v713, %v713
      %v746 = vpack.c.b16 %v714, %v714
      %v747 = vpack.c.b16 %v715, %v715
      %v748 = vpack.c.b16 %v716, %v716
      %v749 = vpack.c.b16 %v717, %v717
      %v750 = vpack.c.b16 %v718, %v718
      %v751 = vpack.c.b16 %v719, %v719
      %v752 = vpack.c.b16 %v720, %v720
      %v753 = vpack.c.b16 %v721, %v721
      %v754 = vpack.c.b16 %v722, %v722
      %v755 = vpack.c.b16 %v723, %v723
      %v756 = vpack.c.b16 %v724, %v724
      %v757 = vpack.c.b16 %v725, %v725
      %v758 = vpack.c.b16 %v726, %v726
      %v759 = vpack.c.b16 %v727, %v727
      %v760 = vpack.c.b16 %v728, %v728
      %v761 = vpack.c.b16 %v729, %v729
      %v762 = vpack.c.b16 %v730, %v730
      %v763 = vpack.c.b16 %v731, %v731
      %v764 = vpack.c.b16 %v732, %v732
      %v765 = vpack.c.b16 %v733, %v733
      %v766 = vpack.c.b16 %v734, %v734
      %v767 = vpack.c.b16 %v735, %v735
      %v768 = vpack.c.b16 %v736, %v736
      %v769 = vpack.c.b16 %v737, %v737
      %v770 = vpack.c.b16 %v738, %v738
      %vm803 = vcmask 125952
      %804 = vst.msk [vmem:[%s262] sm:$0xf] %vm803, %v739
      %805 = vst.msk [vmem:[%s262 + $0x4] sm:$0xf] %vm803, %v740
      %806 = vst.msk [vmem:[%s262 + $0x8] sm:$0xf] %vm803, %v741
      %807 = vst.msk [vmem:[%s262 + $0xc] sm:$0xf] %vm803, %v742
      %808 = vst.msk [vmem:[%s262 + $0x10] sm:$0xf] %vm803, %v743
      %809 = vst.msk [vmem:[%s262 + $0x14] sm:$0xf] %vm803, %v744
      %810 = vst.msk [vmem:[%s262 + $0x18] sm:$0xf] %vm803, %v745
      %811 = vst.msk [vmem:[%s262 + $0x1c] sm:$0xf] %vm803, %v746
      %812 = vst.msk [vmem:[%s262 + $0x20] sm:$0xf] %vm803, %v747
      %813 = vst.msk [vmem:[%s262 + $0x24] sm:$0xf] %vm803, %v748
      %814 = vst.msk [vmem:[%s262 + $0x28] sm:$0xf] %vm803, %v749
      %815 = vst.msk [vmem:[%s262 + $0x2c] sm:$0xf] %vm803, %v750
      %816 = vst.msk [vmem:[%s262 + $0x30] sm:$0xf] %vm803, %v751
      %817 = vst.msk [vmem:[%s262 + $0x34] sm:$0xf] %vm803, %v752
      %818 = vst.msk [vmem:[%s262 + $0x38] sm:$0xf] %vm803, %v753
      %819 = vst.msk [vmem:[%s262 + $0x3c] sm:$0xf] %vm803, %v754
      %820 = vst.msk [vmem:[%s262 + $0x40] sm:$0xf] %vm803, %v755
      %821 = vst.msk [vmem:[%s262 + $0x44] sm:$0xf] %vm803, %v756
      %822 = vst.msk [vmem:[%s262 + $0x48] sm:$0xf] %vm803, %v757
      %823 = vst.msk [vmem:[%s262 + $0x4c] sm:$0xf] %vm803, %v758
      %824 = vst.msk [vmem:[%s262 + $0x50] sm:$0xf] %vm803, %v759
      %825 = vst.msk [vmem:[%s262 + $0x54] sm:$0xf] %vm803, %v760
      %826 = vst.msk [vmem:[%s262 + $0x58] sm:$0xf] %vm803, %v761
      %827 = vst.msk [vmem:[%s262 + $0x5c] sm:$0xf] %vm803, %v762
      %828 = vst.msk [vmem:[%s262 + $0x60] sm:$0xf] %vm803, %v763
      %829 = vst.msk [vmem:[%s262 + $0x64] sm:$0xf] %vm803, %v764
      %830 = vst.msk [vmem:[%s262 + $0x68] sm:$0xf] %vm803, %v765
      %831 = vst.msk [vmem:[%s262 + $0x6c] sm:$0xf] %vm803, %v766
      %832 = vst.msk [vmem:[%s262 + $0x70] sm:$0xf] %vm803, %v767
      %833 = vst.msk [vmem:[%s262 + $0x74] sm:$0xf] %vm803, %v768
      %834 = vst.msk [vmem:[%s262 + $0x78] sm:$0xf] %vm803, %v769
      %835 = vst.msk [vmem:[%s262 + $0x7c] sm:$0xf] %vm803, %v770
      %v836 = vunpack.c.l.bf16 %v675
      %v837 = vunpack.c.h.bf16 %v675
      %v838 = vunpack.c.l.bf16 %v676
      %v839 = vunpack.c.h.bf16 %v676
      %v840 = vunpack.c.l.bf16 %v677
      %v841 = vunpack.c.h.bf16 %v677
      %v842 = vunpack.c.l.bf16 %v678
      %v843 = vunpack.c.h.bf16 %v678
      %v844 = vunpack.c.l.bf16 %v679
      %v845 = vunpack.c.h.bf16 %v679
      %v846 = vunpack.c.l.bf16 %v680
      %v847 = vunpack.c.h.bf16 %v680
      %v848 = vunpack.c.l.bf16 %v681
      %v849 = vunpack.c.h.bf16 %v681
      %v850 = vunpack.c.l.bf16 %v682
      %v851 = vunpack.c.h.bf16 %v682
      %v852 = vunpack.c.l.bf16 %v683
      %v853 = vunpack.c.h.bf16 %v683
      %v854 = vunpack.c.l.bf16 %v684
      %v855 = vunpack.c.h.bf16 %v684
      %v856 = vunpack.c.l.bf16 %v685
      %v857 = vunpack.c.h.bf16 %v685
      %v858 = vunpack.c.l.bf16 %v686
      %v859 = vunpack.c.h.bf16 %v686
      %v860 = vunpack.c.l.bf16 %v687
      %v861 = vunpack.c.h.bf16 %v687
      %v862 = vunpack.c.l.bf16 %v688
      %v863 = vunpack.c.h.bf16 %v688
      %v864 = vunpack.c.l.bf16 %v689
      %v865 = vunpack.c.h.bf16 %v689
      %v866 = vunpack.c.l.bf16 %v690
      %v867 = vunpack.c.h.bf16 %v690
      %vm868 = vcmask 130048
      %v869 = vsel %vm868, %v836, 0.0
      %v870 = vsel %vm868, %v837, 0.0
      %v871 = vadd.f32 %v869, %v870
      %v872 = vsel %vm868, %v838, 0.0
      %v873 = vadd.f32 %v871, %v872
      %v874 = vsel %vm868, %v839, 0.0
      %v875 = vadd.f32 %v873, %v874
      %v876 = vsel %vm868, %v840, 0.0
      %v877 = vadd.f32 %v875, %v876
      %v878 = vsel %vm868, %v841, 0.0
      %v879 = vadd.f32 %v877, %v878
      %v880 = vsel %vm868, %v842, 0.0
      %v881 = vadd.f32 %v879, %v880
      %v882 = vsel %vm868, %v843, 0.0
      %v883 = vadd.f32 %v881, %v882
      %v884 = vsel %vm868, %v844, 0.0
      %v885 = vadd.f32 %v883, %v884
      %v886 = vsel %vm868, %v845, 0.0
      %v887 = vadd.f32 %v885, %v886
      %v888 = vsel %vm868, %v846, 0.0
      %v889 = vadd.f32 %v887, %v888
      %v890 = vsel %vm868, %v847, 0.0
      %v891 = vadd.f32 %v889, %v890
      %v892 = vsel %vm868, %v848, 0.0
      %v893 = vadd.f32 %v891, %v892
      %v894 = vsel %vm868, %v849, 0.0
      %v895 = vadd.f32 %v893, %v894
      %v896 = vsel %vm868, %v850, 0.0
      %v897 = vadd.f32 %v895, %v896
      %v898 = vsel %vm868, %v851, 0.0
      %v899 = vadd.f32 %v897, %v898
      %v900 = vsel %vm868, %v852, 0.0
      %v901 = vadd.f32 %v899, %v900
      %v902 = vsel %vm868, %v853, 0.0
      %v903 = vadd.f32 %v901, %v902
      %v904 = vsel %vm868, %v854, 0.0
      %v905 = vadd.f32 %v903, %v904
      %v906 = vsel %vm868, %v855, 0.0
      %v907 = vadd.f32 %v905, %v906
      %v908 = vsel %vm868, %v856, 0.0
      %v909 = vadd.f32 %v907, %v908
      %v910 = vsel %vm868, %v857, 0.0
      %v911 = vadd.f32 %v909, %v910
      %v912 = vsel %vm868, %v858, 0.0
      %v913 = vadd.f32 %v911, %v912
      %v914 = vsel %vm868, %v859, 0.0
      %v915 = vadd.f32 %v913, %v914
      %v916 = vsel %vm868, %v860, 0.0
      %v917 = vadd.f32 %v915, %v916
      %v918 = vsel %vm868, %v861, 0.0
      %v919 = vadd.f32 %v917, %v918
      %v920 = vsel %vm868, %v862, 0.0
      %v921 = vadd.f32 %v919, %v920
      %v922 = vsel %vm868, %v863, 0.0
      %v923 = vadd.f32 %v921, %v922
      %v924 = vsel %vm868, %v864, 0.0
      %v925 = vadd.f32 %v923, %v924
      %v926 = vsel %vm868, %v865, 0.0
      %v927 = vadd.f32 %v925, %v926
      %v928 = vsel %vm868, %v866, 0.0
      %v929 = vadd.f32 %v927, %v928
      %v930 = vsel %vm868, %v867, 0.0
      %v931 = vadd.f32 %v929, %v930
      %v932 = vrot.slane %v931, 4
      %v933 = vadd.f32 %v931, %v932
      %v934 = vrot.slane %v933, 2
      %v935 = vadd.f32 %v933, %v934
      %v936 = vrot.slane %v935, 1
      %v937 = vadd.f32 %v935, %v936
      %vm938 = vcmask 122880
      %939 = vst.msk [vmem:[%s265] sm:$0x1] %vm938, %v937
      %v940 = vmul.f32 %v836, %v836
      %v941 = vmul.f32 %v837, %v837
      %v942 = vmul.f32 %v838, %v838
      %v943 = vmul.f32 %v839, %v839
      %v944 = vmul.f32 %v840, %v840
      %v945 = vmul.f32 %v841, %v841
      %v946 = vmul.f32 %v842, %v842
      %v947 = vmul.f32 %v843, %v843
      %v948 = vmul.f32 %v844, %v844
      %v949 = vmul.f32 %v845, %v845
      %v950 = vmul.f32 %v846, %v846
      %v951 = vmul.f32 %v847, %v847
      %v952 = vmul.f32 %v848, %v848
      %v953 = vmul.f32 %v849, %v849
      %v954 = vmul.f32 %v850, %v850
      %v955 = vmul.f32 %v851, %v851
      %v956 = vmul.f32 %v852, %v852
      %v957 = vmul.f32 %v853, %v853
      %v958 = vmul.f32 %v854, %v854
      %v959 = vmul.f32 %v855, %v855
      %v960 = vmul.f32 %v856, %v856
      %v961 = vmul.f32 %v857, %v857
      %v962 = vmul.f32 %v858, %v858
      %v963 = vmul.f32 %v859, %v859
      %v964 = vmul.f32 %v860, %v860
      %v965 = vmul.f32 %v861, %v861
      %v966 = vmul.f32 %v862, %v862
      %v967 = vmul.f32 %v863, %v863
      %v968 = vmul.f32 %v864, %v864
      %v969 = vmul.f32 %v865, %v865
      %v970 = vmul.f32 %v866, %v866
      %v971 = vmul.f32 %v867, %v867
      %v972 = vsel %vm868, %v940, 0.0
      %v973 = vsel %vm868, %v941, 0.0
      %v974 = vadd.f32 %v972, %v973
      %v975 = vsel %vm868, %v942, 0.0
      %v976 = vadd.f32 %v974, %v975
      %v977 = vsel %vm868, %v943, 0.0
      %v978 = vadd.f32 %v976, %v977
      %v979 = vsel %vm868, %v944, 0.0
      %v980 = vadd.f32 %v978, %v979
      %v981 = vsel %vm868, %v945, 0.0
      %v982 = vadd.f32 %v980, %v981
      %v983 = vsel %vm868, %v946, 0.0
      %v984 = vadd.f32 %v982, %v983
      %v985 = vsel %vm868, %v947, 0.0
      %v986 = vadd.f32 %v984, %v985
      %v987 = vsel %vm868, %v948, 0.0
      %v988 = vadd.f32 %v986, %v987
      %v989 = vsel %vm868, %v949, 0.0
      %v990 = vadd.f32 %v988, %v989
      %v991 = vsel %vm868, %v950, 0.0
      %v992 = vadd.f32 %v990, %v991
      %v993 = vsel %vm868, %v951, 0.0
      %v994 = vadd.f32 %v992, %v993
      %v995 = vsel %vm868, %v952, 0.0
      %v996 = vadd.f32 %v994, %v995
      %v997 = vsel %vm868, %v953, 0.0
      %v998 = vadd.f32 %v996, %v997
      %v999 = vsel %vm868, %v954, 0.0
      %v1000 = vadd.f32 %v998, %v999
      %v1001 = vsel %vm868, %v955, 0.0
      %v1002 = vadd.f32 %v1000, %v1001
      %v1003 = vsel %vm868, %v956, 0.0
      %v1004 = vadd.f32 %v1002, %v1003
      %v1005 = vsel %vm868, %v957, 0.0
      %v1006 = vadd.f32 %v1004, %v1005
      %v1007 = vsel %vm868, %v958, 0.0
      %v1008 = vadd.f32 %v1006, %v1007
      %v1009 = vsel %vm868, %v959, 0.0
      %v1010 = vadd.f32 %v1008, %v1009
      %v1011 = vsel %vm868, %v960, 0.0
      %v1012 = vadd.f32 %v1010, %v1011
      %v1013 = vsel %vm868, %v961, 0.0
      %v1014 = vadd.f32 %v1012, %v1013
      %v1015 = vsel %vm868, %v962, 0.0
      %v1016 = vadd.f32 %v1014, %v1015
      %v1017 = vsel %vm868, %v963, 0.0
      %v1018 = vadd.f32 %v1016, %v1017
      %v1019 = vsel %vm868, %v964, 0.0
      %v1020 = vadd.f32 %v1018, %v1019
      %v1021 = vsel %vm868, %v965, 0.0
      %v1022 = vadd.f32 %v1020, %v1021
      %v1023 = vsel %vm868, %v966, 0.0
      %v1024 = vadd.f32 %v1022, %v1023
      %v1025 = vsel %vm868, %v967, 0.0
      %v1026 = vadd.f32 %v1024, %v1025
      %v1027 = vsel %vm868, %v968, 0.0
      %v1028 = vadd.f32 %v1026, %v1027
      %v1029 = vsel %vm868, %v969, 0.0
      %v1030 = vadd.f32 %v1028, %v1029
      %v1031 = vsel %vm868, %v970, 0.0
      %v1032 = vadd.f32 %v1030, %v1031
      %v1033 = vsel %vm868, %v971, 0.0
      %v1034 = vadd.f32 %v1032, %v1033
      %v1035 = vrot.slane %v1034, 4
      %v1036 = vadd.f32 %v1034, %v1035
      %v1037 = vrot.slane %v1036, 2
      %v1038 = vadd.f32 %v1036, %v1037
      %v1039 = vrot.slane %v1038, 1
      %v1040 = vadd.f32 %v1038, %v1039
      %1041 = vst.msk [vmem:[%s268] sm:$0x1] %vm938, %v1040
      %p1042 = scmp.lt.s32.totalorder %s18, 1
      %s1043 = scalar_select %p1042, %s18, 1
      %s1044 = smul.addr %s1043, 32
      %s1045 = smul.addr %s1044, 4
      %s1046 = scalar_lea.vmem %s4, %s1045
      %p1047 = scmp.lt.s32.totalorder %s18, 1
      %s1048 = scalar_select %p1047, %s18, 1
      %s1049 = scalar_lea.vmem %s5, %s1048
      %p1050 = scmp.lt.s32.totalorder %s18, 1
      %s1051 = scalar_select %p1050, %s18, 1
      %s1052 = scalar_lea.vmem %s6, %s1051
      // Predicated region
      $region37: #{bottleneck_forward.6} parent=35 // pred_check
        %p1053 = pneg %p125
      $region38: #{bottleneck_forward.6} parent=35 // pred_check_branch
        %1055 = sbr.rel (%p1053) target = $region40
      $region39: #{bottleneck_forward.6} parent=35 // pred_region
        _
      $region40: #{bottleneck_forward.6} parent=35 // pred_fallthru
        _
      // Predicated region
      $region41: #{bottleneck_forward.6} parent=35 // pred_check
        %p1056 = pneg %p151
      $region42: #{bottleneck_forward.6} parent=35 // pred_check_branch
        %1058 = sbr.rel (%p1056) target = $region44
      $region43: #{bottleneck_forward.6} parent=35 // pred_region
        _
      $region44: #{bottleneck_forward.6} parent=35 // pred_fallthru
        _
      // Predicated region
      $region45: #{bottleneck_forward.6} parent=35 // pred_check
        %p1059 = pneg %p177
      $region46: #{bottleneck_forward.6} parent=35 // pred_check_branch
        %1061 = sbr.rel (%p1059) target = $region48
      $region47: #{bottleneck_forward.6} parent=35 // pred_region
        _
      $region48: #{bottleneck_forward.6} parent=35 // pred_fallthru
        _
    $region36: #{bottleneck_forward.6} parent=5 // pred_fallthru
      _
    %p1062 = scmp.le.s32.totalorder 2, %s13
    // Predicated region
    $region49: #{bottleneck_forward.6} parent=5 // pred_check
      %p1063 = pneg %p1062
    $region50: #{bottleneck_forward.6} parent=5 // pred_check_branch
      %1065 = sbr.rel (%p1063) target = $region52
    $region51: #{bottleneck_forward.6} parent=5 // pred_region
      %s1066 = ssub.s32 %s13, 2
      // Predicated region
      $region53: #{bottleneck_forward.6} parent=51 // pred_check
        %p1067 = pneg %p131
      $region54: #{bottleneck_forward.6} parent=51 // pred_check_branch
        %1069 = sbr.rel (%p1067) target = $region56
      $region55: #{bottleneck_forward.6} parent=51 // pred_region
        %p1070 = scmp.lt.s32.totalorder %s19, 1
        %s1071 = scalar_select %p1070, %s19, 1
        %s1072 = smul.addr %s1071, 32
        %s1073 = smul.addr %s1072, 4
        %s1074 = scalar_lea.vmem %s4, %s1073
      $region56: #{bottleneck_forward.6} parent=51 // pred_fallthru
        _
      // Predicated region
      $region57: #{bottleneck_forward.6} parent=51 // pred_check
        %p1075 = pneg %p157
      $region58: #{bottleneck_forward.6} parent=51 // pred_check_branch
        %1077 = sbr.rel (%p1075) target = $region60
      $region59: #{bottleneck_forward.6} parent=51 // pred_region
        %p1078 = scmp.lt.s32.totalorder %s19, 1
        %s1079 = scalar_select %p1078, %s19, 1
        %s1080 = scalar_lea.vmem %s5, %s1079
      $region60: #{bottleneck_forward.6} parent=51 // pred_fallthru
        _
      // Predicated region
      $region61: #{bottleneck_forward.6} parent=51 // pred_check
        %p1081 = pneg %p183
      $region62: #{bottleneck_forward.6} parent=51 // pred_check_branch
        %1083 = sbr.rel (%p1081) target = $region64
      $region63: #{bottleneck_forward.6} parent=51 // pred_region
        %p1084 = scmp.lt.s32.totalorder %s19, 1
        %s1085 = scalar_select %p1084, %s19, 1
        %s1086 = scalar_lea.vmem %s6, %s1085
      $region64: #{bottleneck_forward.6} parent=51 // pred_fallthru
        _
    $region52: #{bottleneck_forward.6} parent=5 // pred_fallthru
      _
  $region6: #{bottleneck_forward.6} parent=0 // loop_footer
    %s17 = sadd.s32 1, %s13
  $region7: #{bottleneck_forward.6} parent=0 // loop_footer_branch
    %12 = sbr.rel target = $region3
  $region8: #{bottleneck_forward.6} parent=0 // loop_exit
    _

// kernel: bottleneck_forward.7
$region0: #{bottleneck_forward.7}
  #allocation0 [shape = 'u32[]', space=smem, size = 0x4, offset = 0x4, fixed_abs, tag = 'smem constant byte address 0x4 - core index']
  #allocation1 [shape = 'u32[144,128]{1,0:T(1,128)}', space=vmem, size = 0x12000, scoped, tag = 'internal scratch']
  %s0 = inlined_call_operand.vmem [shape: bf16[2,256,16], index: 0, kind: input, shape index: {}]
  %s1 = inlined_call_operand.vmem [shape: f32[2,256,16], index: 1, kind: input, shape index: {}]
  %s2 = inlined_call_operand.vmem [shape: f32[1,16], index: 2, kind: input, shape index: {}]
  %s3 = inlined_call_operand.vmem [shape: f32[1,16], index: 3, kind: input, shape index: {}]
  %s4 = inlined_call_operand.vmem [shape: f32[2,256,16], index: 4, kind: output, shape index: {}]
  %s5 = sld [smem:[#allocation0]]
  $region49: #{bottleneck_forward.7} parent=0
    _
  %s7 = ssub.s32 1, %s5
  %s8 = scalar_select 0, %s7, %s5
  loop: start=0, step=1, limit=4
  $region2: #{bottleneck_forward.7} parent=0 // loop_pre_header
    _
  $region3: #{bottleneck_forward.7} parent=0 // loop_header
    %s10 = sphi 0, %s14
    %p11 = scmp.ge.s32.totalorder %s10, 4
    %s17 = sphi 0, %s29
    %s18 = sphi 0, %s25
    %s19 = sphi 0, %s17
    %s20 = sphi 0, %s18
    %s21 = sphi 0, %s19
    %s22 = sphi 0, %s20
    %s34 = sphi 0, %s36
    %s37 = sphi 0, %s34
    %s38 = sphi 0, %s37
    %s54 = sphi 0, %s38
    %s62 = sphi 0, %s64
    %s65 = sphi 0, %s62
    %s66 = sphi 0, %s65
    %s82 = sphi 0, %s66
    %s86 = sphi 0, %s86
    %s88 = sphi 0, %s86
    %s89 = sphi 0, %s88
    %s103 = sphi 0, %s89
    %s107 = sphi 0, %s107
    %s109 = sphi 0, %s107
    %s110 = sphi 0, %s109
    %s124 = sphi 0, %s110
    %s132 = sphi 0, %s134
    %s135 = sphi 0, %s132
    %s136 = sphi 0, %s135
    %s152 = sphi 0, %s136
  $region4: #{bottleneck_forward.7} parent=0 // loop_header_branch
    %13 = sbr.rel (%p11) target = $region8
  $region5: #{bottleneck_forward.7} parent=0 // loop_body
    %s15 = ssub.s32 %s10, 1
    %s16 = ssub.s32 %s10, 2
    %s23 = sadd.s32 1, %s18
    %p24 = scmp.ge.s32.totalorder %s23, 1
    %s25 = scalar_select %p24, 0, %s23
    %s26 = sadd.s32 1, %s17
    %s27 = scalar_select %p24, %s26, %s17
    %p28 = scmp.ge.s32.totalorder %s27, 2
    %s29 = scalar_select %p28, 0, %s27
    %s30 = ssub.s32 %s17, %s29
    %s31 = ssub.s32 %s18, %s25
    %s32 = sor.u32 %s30, %s31
    %p33 = scmp.eq.s32.totalorder %s32, 0
    %s35 = sadd.s32 %s34, 1
    %s36 = scalar_select %p33, %s34, %s35
    %p39 = pneg %p33
    %p40 = scmp.eq.s32.totalorder %s10, 1
    %p41 = por %p39, %p40
    %p42 = scmp.ne.s32.totalorder %s34, %s37
    %p43 = scmp.eq.s32.totalorder %s10, 0
    %p44 = por %p42, %p43
    %p45 = scmp.ne.s32.totalorder %s34, %s37
    %p46 = scmp.eq.s32.totalorder %s15, 1
    %p47 = por %p45, %p46
    %p48 = scmp.ne.s32.totalorder %s37, %s38
    %p49 = scmp.eq.s32.totalorder %s15, 0
    %p50 = por %p48, %p49
    %p51 = scmp.ne.s32.totalorder %s37, %s38
    %p52 = scmp.eq.s32.totalorder %s16, 1
    %p53 = por %p51, %p52
    %p55 = scmp.ne.s32.totalorder %s38, %s54
    %p56 = scmp.eq.s32.totalorder %s16, 0
    %p57 = por %p55, %p56
    %s58 = ssub.s32 %s17, %s29
    %s59 = ssub.s32 %s18, %s25
    %s60 = sor.u32 %s58, %s59
    %p61 = scmp.eq.s32.totalorder %s60, 0
    %s63 = sadd.s32 %s62, 1
    %s64 = scalar_select %p61, %s62, %s63
    %p67 = pneg %p61
    %p68 = scmp.eq.s32.totalorder %s10, 1
    %p69 = por %p67, %p68
    %p70 = scmp.ne.s32.totalorder %s62, %s65
    %p71 = scmp.eq.s32.totalorder %s10, 0
    %p72 = por %p70, %p71
    %p73 = scmp.ne.s32.totalorder %s62, %s65
    %p74 = scmp.eq.s32.totalorder %s15, 1
    %p75 = por %p73, %p74
    %p76 = scmp.ne.s32.totalorder %s65, %s66
    %p77 = scmp.eq.s32.totalorder %s15, 0
    %p78 = por %p76, %p77
    %p79 = scmp.ne.s32.totalorder %s65, %s66
    %p80 = scmp.eq.s32.totalorder %s16, 1
    %p81 = por %p79, %p80
    %p83 = scmp.ne.s32.totalorder %s66, %s82
    %p84 = scmp.eq.s32.totalorder %s16, 0
    %p85 = por %p83, %p84
    %s87 = sadd.s32 %s86, 1
    %p90 = scmp.eq.s32.totalorder %s10, 1
    %p91 = scmp.ne.s32.totalorder %s86, %s88
    %p92 = scmp.eq.s32.totalorder %s10, 0
    %p93 = por %p91, %p92
    %p94 = scmp.ne.s32.totalorder %s86, %s88
    %p95 = scmp.eq.s32.totalorder %s15, 1
    %p96 = por %p94, %p95
    %p97 = scmp.ne.s32.totalorder %s88, %s89
    %p98 = scmp.eq.s32.totalorder %s15, 0
    %p99 = por %p97, %p98
    %p100 = scmp.ne.s32.totalorder %s88, %s89
    %p101 = scmp.eq.s32.totalorder %s16, 1
    %p102 = por %p100, %p101
    %p104 = scmp.ne.s32.totalorder %s89, %s103
    %p105 = scmp.eq.s32.totalorder %s16, 0
    %p106 = por %p104, %p105
    %s108 = sadd.s32 %s107, 1
    %p111 = scmp.eq.s32.totalorder %s10, 1
    %p112 = scmp.ne.s32.totalorder %s107, %s109
    %p113 = scmp.eq.s32.totalorder %s10, 0
    %p114 = por %p112, %p113
    %p115 = scmp.ne.s32.totalorder %s107, %s109
    %p116 = scmp.eq.s32.totalorder %s15, 1
    %p117 = por %p115, %p116
    %p118 = scmp.ne.s32.totalorder %s109, %s110
    %p119 = scmp.eq.s32.totalorder %s15, 0
    %p120 = por %p118, %p119
    %p121 = scmp.ne.s32.totalorder %s109, %s110
    %p122 = scmp.eq.s32.totalorder %s16, 1
    %p123 = por %p121, %p122
    %p125 = scmp.ne.s32.totalorder %s110, %s124
    %p126 = scmp.eq.s32.totalorder %s16, 0
    %p127 = por %p125, %p126
    %s128 = ssub.s32 %s17, %s29
    %s129 = ssub.s32 %s18, %s25
    %s130 = sor.u32 %s128, %s129
    %p131 = scmp.eq.s32.totalorder %s130, 0
    %s133 = sadd.s32 %s132, 1
    %s134 = scalar_select %p131, %s132, %s133
    %p137 = pneg %p131
    %p138 = scmp.eq.s32.totalorder %s10, 1
    %p139 = por %p137, %p138
    %p140 = scmp.ne.s32.totalorder %s132, %s135
    %p141 = scmp.eq.s32.totalorder %s10, 0
    %p142 = por %p140, %p141
    %p143 = scmp.ne.s32.totalorder %s132, %s135
    %p144 = scmp.eq.s32.totalorder %s15, 1
    %p145 = por %p143, %p144
    %p146 = scmp.ne.s32.totalorder %s135, %s136
    %p147 = scmp.eq.s32.totalorder %s15, 0
    %p148 = por %p146, %p147
    %p149 = scmp.ne.s32.totalorder %s135, %s136
    %p150 = scmp.eq.s32.totalorder %s16, 1
    %p151 = por %p149, %p150
    %p153 = scmp.ne.s32.totalorder %s136, %s152
    %p154 = scmp.eq.s32.totalorder %s16, 0
    %p155 = por %p153, %p154
    %p156 = scmp.le.s32.totalorder 1, %s10
    %p157 = scmp.lt.s32.totalorder %s10, 3
    %p158 = pnand %p156, %p157
    %p159 = pneg %p158
    // Predicated region
    $region9: #{bottleneck_forward.7} parent=5 // pred_check
      _
    $region10: #{bottleneck_forward.7} parent=5 // pred_check_branch
      %161 = sbr.rel (%p158) target = $region12
    $region11: #{bottleneck_forward.7} parent=5 // pred_region
      %s162 = ssub.s32 %s10, 1
      // Predicated region
      $region13: #{bottleneck_forward.7} parent=11 // pred_check
        %p163 = pneg %p99
      $region14: #{bottleneck_forward.7} parent=11 // pred_check_branch
        %165 = sbr.rel (%p163) target = $region16
      $region15: #{bottleneck_forward.7} parent=11 // pred_region
        _
      $region16: #{bottleneck_forward.7} parent=11 // pred_fallthru
        _
      // Predicated region
      $region17: #{bottleneck_forward.7} parent=11 // pred_check
        %p166 = pneg %p120
      $region18: #{bottleneck_forward.7} parent=11 // pred_check_branch
        %168 = sbr.rel (%p166) target = $region20
      $region19: #{bottleneck_forward.7} parent=11 // pred_region
        _
      $region20: #{bottleneck_forward.7} parent=11 // pred_fallthru
        _
    $region12: #{bottleneck_forward.7} parent=5 // pred_fallthru
      _
    %p169 = scmp.lt.s32.totalorder %s10, 2
    // Predicated region
    $region21: #{bottleneck_forward.7} parent=5 // pred_check
      %p170 = pneg %p169
    $region22: #{bottleneck_forward.7} parent=5 // pred_check_branch
      %172 = sbr.rel (%p170) target = $region24
    $region23: #{bottleneck_forward.7} parent=5 // pred_region
      // Predicated region
      $region25: #{bottleneck_forward.7} parent=23 // pred_check
        %p173 = pneg %p44
      $region26: #{bottleneck_forward.7} parent=23 // pred_check_branch
        %175 = sbr.rel (%p173) target = $region28
      $region27: #{bottleneck_forward.7} parent=23 // pred_region
        %s176 = smul.u32 32, %s18
        %p177 = scmp.lt.s32.totalorder %s17, 1
        %s178 = scalar_select %p177, %s17, 1
        %p179 = scmp.lt.s32.totalorder %s176, 31
        %s180 = scalar_select %p179, %s176, 31
        %s181 = smul.addr %s178, 32
        %s182 = sadd.s32 %s180, %s181
        %s183 = smul.addr %s182, 4
        %s184 = scalar_lea.vmem %s0, %s183
        %s185 = smul.u32 32, %s18
      $region28: #{bottleneck_forward.7} parent=23 // pred_fallthru
        _
      // Predicated region
      $region29: #{bottleneck_forward.7} parent=23 // pred_check
        %p186 = pneg %p72
      $region30: #{bottleneck_forward.7} parent=23 // pred_check_branch
        %188 = sbr.rel (%p186) target = $region32
      $region31: #{bottleneck_forward.7} parent=23 // pred_region
        %s189 = smul.u32 32, %s18
        %p190 = scmp.lt.s32.totalorder %s17, 1
        %s191 = scalar_select %p190, %s17, 1
        %p192 = scmp.lt.s32.totalorder %s189, 31
        %s193 = scalar_select %p192, %s189, 31
        %s194 = smul.addr %s191, 32
        %s195 = sadd.s32 %s193, %s194
        %s196 = smul.addr %s195, 8
        %s197 = scalar_lea.vmem %s1, %s196
        %s198 = smul.u32 32, %s18
      $region32: #{bottleneck_forward.7} parent=23 // pred_fallthru
        _
    $region24: #{bottleneck_forward.7} parent=5 // pred_fallthru
      _
    %p199 = scmp.le.s32.totalorder 1, %s10
    %p200 = scmp.lt.s32.totalorder %s10, 3
    %p201 = pnand %p199, %p200
    %p202 = pneg %p201
    // Predicated region
    $region33: #{bottleneck_forward.7} parent=5 // pred_check
      _
    $region34: #{bottleneck_forward.7} parent=5 // pred_check_branch
      %204 = sbr.rel (%p201) target = $region36
    $region35: #{bottleneck_forward.7} parent=5 // pred_region
      %s205 = ssub.s32 %s10, 1
      %s206 = smul.u32 32, %s20
      %p207 = scmp.lt.s32.totalorder %s19, 1
      %s208 = scalar_select %p207, %s19, 1
      %p209 = scmp.lt.s32.totalorder %s206, 31
      %s210 = scalar_select %p209, %s206, 31
      %s211 = smul.addr %s208, 32
      %s212 = sadd.s32 %s210, %s211
      %s213 = smul.addr %s212, 4
      %s214 = scalar_lea.vmem %s0, %s213
      %p215 = pneg %p50
      %p216 = pneg %p47
      %s217 = smul.u32 32, %s20
      %p218 = scmp.lt.s32.totalorder %s19, 1
      %s219 = scalar_select %p218, %s19, 1
      %p220 = scmp.lt.s32.totalorder %s217, 31
      %s221 = scalar_select %p220, %s217, 31
      %s222 = smul.addr %s219, 32
      %s223 = sadd.s32 %s221, %s222
      %s224 = smul.addr %s223, 8
      %s225 = scalar_lea.vmem %s1, %s224
      %p226 = pneg %p78
      %p227 = pneg %p75
      %p228 = pneg %p99
      %p229 = pneg %p96
      %p230 = pneg %p120
      %p231 = pneg %p117
      %p232 = pneg %p148
      %p233 = pneg %p145
      %s234 = smul.u32 32, %s20
      %p235 = scmp.lt.s32.totalorder %s19, 1
      %s236 = scalar_select %p235, %s19, 1
      %p237 = scmp.lt.s32.totalorder %s234, 31
      %s238 = scalar_select %p237, %s234, 31
      %s239 = smul.addr %s236, 32
      %s240 = sadd.s32 %s238, %s239
      %s241 = smul.addr %s240, 8
      %s242 = scalar_lea.vmem %s4, %s241
      %s243 = smul.u32 32, %s20
      %p244 = scmp.lt.s32.totalorder %s19, 1
      %s245 = scalar_select %p244, %s19, 1
      %p246 = scmp.lt.s32.totalorder %s243, 31
      %s247 = scalar_select %p246, %s243, 31
      %s248 = smul.addr %s245, 32
      %s249 = sadd.s32 %s247, %s248
      %s250 = smul.addr %s249, 4
      %s251 = scalar_lea.vmem %s0, %s250
      %s252 = smul.u32 32, %s20
      %s253 = smul.u32 32, %s20
      %p254 = scmp.lt.s32.totalorder %s19, 1
      %s255 = scalar_select %p254, %s19, 1
      %p256 = scmp.lt.s32.totalorder %s253, 31
      %s257 = scalar_select %p256, %s253, 31
      %s258 = smul.addr %s255, 32
      %s259 = sadd.s32 %s257, %s258
      %s260 = smul.addr %s259, 8
      %s261 = scalar_lea.vmem %s1, %s260
      %s262 = smul.u32 32, %s20
      %s263 = smul.u32 32, %s20
      %p264 = scmp.lt.s32.totalorder %s19, 1
      %s265 = scalar_select %p264, %s19, 1
      %p266 = scmp.lt.s32.totalorder %s263, 31
      %s267 = scalar_select %p266, %s263, 31
      %s268 = smul.addr %s265, 32
      %s269 = sadd.s32 %s267, %s268
      %s270 = smul.addr %s269, 8
      %s271 = scalar_lea.vmem %s4, %s270
      %s272 = smul.u32 32, %s20
      %v273 = vld [vmem:[%s251] sm:$0xf]
      %v274 = vld [vmem:[%s251 + $0x4] sm:$0xf]
      %v275 = vld [vmem:[%s251 + $0x8] sm:$0xf]
      %v276 = vld [vmem:[%s251 + $0xc] sm:$0xf]
      %v277 = vld [vmem:[%s251 + $0x10] sm:$0xf]
      %v278 = vld [vmem:[%s251 + $0x14] sm:$0xf]
      %v279 = vld [vmem:[%s251 + $0x18] sm:$0xf]
      %v280 = vld [vmem:[%s251 + $0x1c] sm:$0xf]
      %v281 = vld [vmem:[%s251 + $0x20] sm:$0xf]
      %v282 = vld [vmem:[%s251 + $0x24] sm:$0xf]
      %v283 = vld [vmem:[%s251 + $0x28] sm:$0xf]
      %v284 = vld [vmem:[%s251 + $0x2c] sm:$0xf]
      %v285 = vld [vmem:[%s251 + $0x30] sm:$0xf]
      %v286 = vld [vmem:[%s251 + $0x34] sm:$0xf]
      %v287 = vld [vmem:[%s251 + $0x38] sm:$0xf]
      %v288 = vld [vmem:[%s251 + $0x3c] sm:$0xf]
      %v289 = vld [vmem:[%s251 + $0x40] sm:$0xf]
      %v290 = vld [vmem:[%s251 + $0x44] sm:$0xf]
      %v291 = vld [vmem:[%s251 + $0x48] sm:$0xf]
      %v292 = vld [vmem:[%s251 + $0x4c] sm:$0xf]
      %v293 = vld [vmem:[%s251 + $0x50] sm:$0xf]
      %v294 = vld [vmem:[%s251 + $0x54] sm:$0xf]
      %v295 = vld [vmem:[%s251 + $0x58] sm:$0xf]
      %v296 = vld [vmem:[%s251 + $0x5c] sm:$0xf]
      %v297 = vld [vmem:[%s251 + $0x60] sm:$0xf]
      %v298 = vld [vmem:[%s251 + $0x64] sm:$0xf]
      %v299 = vld [vmem:[%s251 + $0x68] sm:$0xf]
      %v300 = vld [vmem:[%s251 + $0x6c] sm:$0xf]
      %v301 = vld [vmem:[%s251 + $0x70] sm:$0xf]
      %v302 = vld [vmem:[%s251 + $0x74] sm:$0xf]
      %v303 = vld [vmem:[%s251 + $0x78] sm:$0xf]
      %v304 = vld [vmem:[%s251 + $0x7c] sm:$0xf]
      %v305 = vunpack.c.l.bf16 %v273
      %v306 = vunpack.c.l.bf16 %v274
      %v307 = vunpack.c.l.bf16 %v275
      %v308 = vunpack.c.l.bf16 %v276
      %v309 = vunpack.c.l.bf16 %v277
      %v310 = vunpack.c.l.bf16 %v278
      %v311 = vunpack.c.l.bf16 %v279
      %v312 = vunpack.c.l.bf16 %v280
      %v313 = vunpack.c.l.bf16 %v281
      %v314 = vunpack.c.l.bf16 %v282
      %v315 = vunpack.c.l.bf16 %v283
      %v316 = vunpack.c.l.bf16 %v284
      %v317 = vunpack.c.l.bf16 %v285
      %v318 = vunpack.c.l.bf16 %v286
      %v319 = vunpack.c.l.bf16 %v287
      %v320 = vunpack.c.l.bf16 %v288
      %v321 = vunpack.c.l.bf16 %v289
      %v322 = vunpack.c.l.bf16 %v290
      %v323 = vunpack.c.l.bf16 %v291
      %v324 = vunpack.c.l.bf16 %v292
      %v325 = vunpack.c.l.bf16 %v293
      %v326 = vunpack.c.l.bf16 %v294
      %v327 = vunpack.c.l.bf16 %v295
      %v328 = vunpack.c.l.bf16 %v296
      %v329 = vunpack.c.l.bf16 %v297
      %v330 = vunpack.c.l.bf16 %v298
      %v331 = vunpack.c.l.bf16 %v299
      %v332 = vunpack.c.l.bf16 %v300
      %v333 = vunpack.c.l.bf16 %v301
      %v334 = vunpack.c.l.bf16 %v302
      %v335 = vunpack.c.l.bf16 %v303
      %v336 = vunpack.c.l.bf16 %v304
      %v337 = vld [vmem:[%s2] sm:$0x1]
      %v339 = vlaneseq
      %v340 = vshrl.u32 %v339, 7
      %v341 = vsub.s32 0, %v340
      %v342 = vrot.slane %v337, %v341
      %v344 = vmul.f32 %v305, %v342
      %v345 = vmul.f32 %v306, %v342
      %v346 = vmul.f32 %v307, %v342
      %v347 = vmul.f32 %v308, %v342
      %v348 = vmul.f32 %v309, %v342
      %v349 = vmul.f32 %v310, %v342
      %v350 = vmul.f32 %v311, %v342
      %v351 = vmul.f32 %v312, %v342
      %v352 = vmul.f32 %v313, %v342
      %v353 = vmul.f32 %v314, %v342
      %v354 = vmul.f32 %v315, %v342
      %v355 = vmul.f32 %v316, %v342
      %v356 = vmul.f32 %v317, %v342
      %v357 = vmul.f32 %v318, %v342
      %v358 = vmul.f32 %v319, %v342
      %v359 = vmul.f32 %v320, %v342
      %v360 = vmul.f32 %v321, %v342
      %v361 = vmul.f32 %v322, %v342
      %v362 = vmul.f32 %v323, %v342
      %v363 = vmul.f32 %v324, %v342
      %v364 = vmul.f32 %v325, %v342
      %v365 = vmul.f32 %v326, %v342
      %v366 = vmul.f32 %v327, %v342
      %v367 = vmul.f32 %v328, %v342
      %v368 = vmul.f32 %v329, %v342
      %v369 = vmul.f32 %v330, %v342
      %v370 = vmul.f32 %v331, %v342
      %v371 = vmul.f32 %v332, %v342
      %v372 = vmul.f32 %v333, %v342
      %v373 = vmul.f32 %v334, %v342
      %v374 = vmul.f32 %v335, %v342
      %v375 = vmul.f32 %v336, %v342
      %v376 = vld [vmem:[%s3] sm:$0x1]
      %v378 = vlaneseq
      %v379 = vshrl.u32 %v378, 7
      %v380 = vsub.s32 0, %v379
      %v381 = vrot.slane %v376, %v380
      %v383 = vadd.f32 %v344, %v381
      %v384 = vadd.f32 %v345, %v381
      %v385 = vadd.f32 %v346, %v381
      %v386 = vadd.f32 %v347, %v381
      %v387 = vadd.f32 %v348, %v381
      %v388 = vadd.f32 %v349, %v381
      %v389 = vadd.f32 %v350, %v381
      %v390 = vadd.f32 %v351, %v381
      %v391 = vadd.f32 %v352, %v381
      %v392 = vadd.f32 %v353, %v381
      %v393 = vadd.f32 %v354, %v381
      %v394 = vadd.f32 %v355, %v381
      %v395 = vadd.f32 %v356, %v381
      %v396 = vadd.f32 %v357, %v381
      %v397 = vadd.f32 %v358, %v381
      %v398 = vadd.f32 %v359, %v381
      %v399 = vadd.f32 %v360, %v381
      %v400 = vadd.f32 %v361, %v381
      %v401 = vadd.f32 %v362, %v381
      %v402 = vadd.f32 %v363, %v381
      %v403 = vadd.f32 %v364, %v381
      %v404 = vadd.f32 %v365, %v381
      %v405 = vadd.f32 %v366, %v381
      %v406 = vadd.f32 %v367, %v381
      %v407 = vadd.f32 %v368, %v381
      %v408 = vadd.f32 %v369, %v381
      %v409 = vadd.f32 %v370, %v381
      %v410 = vadd.f32 %v371, %v381
      %v411 = vadd.f32 %v372, %v381
      %v412 = vadd.f32 %v373, %v381
      %v413 = vadd.f32 %v374, %v381
      %v414 = vadd.f32 %v375, %v381
      %v415 = vld [vmem:[%s261] sm:$0xff]
      %v416 = vld [vmem:[%s261 + $0x8] sm:$0xff]
      %v417 = vld [vmem:[%s261 + $0x10] sm:$0xff]
      %v418 = vld [vmem:[%s261 + $0x18] sm:$0xff]
      %v419 = vld [vmem:[%s261 + $0x20] sm:$0xff]
      %v420 = vld [vmem:[%s261 + $0x28] sm:$0xff]
      %v421 = vld [vmem:[%s261 + $0x30] sm:$0xff]
      %v422 = vld [vmem:[%s261 + $0x38] sm:$0xff]
      %v423 = vld [vmem:[%s261 + $0x40] sm:$0xff]
      %v424 = vld [vmem:[%s261 + $0x48] sm:$0xff]
      %v425 = vld [vmem:[%s261 + $0x50] sm:$0xff]
      %v426 = vld [vmem:[%s261 + $0x58] sm:$0xff]
      %v427 = vld [vmem:[%s261 + $0x60] sm:$0xff]
      %v428 = vld [vmem:[%s261 + $0x68] sm:$0xff]
      %v429 = vld [vmem:[%s261 + $0x70] sm:$0xff]
      %v430 = vld [vmem:[%s261 + $0x78] sm:$0xff]
      %v431 = vld [vmem:[%s261 + $0x80] sm:$0xff]
      %v432 = vld [vmem:[%s261 + $0x88] sm:$0xff]
      %v433 = vld [vmem:[%s261 + $0x90] sm:$0xff]
      %v434 = vld [vmem:[%s261 + $0x98] sm:$0xff]
      %v435 = vld [vmem:[%s261 + $0xa0] sm:$0xff]
      %v436 = vld [vmem:[%s261 + $0xa8] sm:$0xff]
      %v437 = vld [vmem:[%s261 + $0xb0] sm:$0xff]
      %v438 = vld [vmem:[%s261 + $0xb8] sm:$0xff]
      %v439 = vld [vmem:[%s261 + $0xc0] sm:$0xff]
      %v440 = vld [vmem:[%s261 + $0xc8] sm:$0xff]
      %v441 = vld [vmem:[%s261 + $0xd0] sm:$0xff]
      %v442 = vld [vmem:[%s261 + $0xd8] sm:$0xff]
      %v443 = vld [vmem:[%s261 + $0xe0] sm:$0xff]
      %v444 = vld [vmem:[%s261 + $0xe8] sm:$0xff]
      %v445 = vld [vmem:[%s261 + $0xf0] sm:$0xff]
      %v446 = vld [vmem:[%s261 + $0xf8] sm:$0xff]
      %v447 = vadd.f32 %v383, %v415
      %v448 = vadd.f32 %v384, %v416
      %v449 = vadd.f32 %v385, %v417
      %v450 = vadd.f32 %v386, %v418
      %v451 = vadd.f32 %v387, %v419
      %v452 = vadd.f32 %v388, %v420
      %v453 = vadd.f32 %v389, %v421
      %v454 = vadd.f32 %v390, %v422
      %v455 = vadd.f32 %v391, %v423
      %v456 = vadd.f32 %v392, %v424
      %v457 = vadd.f32 %v393, %v425
      %v458 = vadd.f32 %v394, %v426
      %v459 = vadd.f32 %v395, %v427
      %v460 = vadd.f32 %v396, %v428
      %v461 = vadd.f32 %v397, %v429
      %v462 = vadd.f32 %v398, %v430
      %v463 = vadd.f32 %v399, %v431
      %v464 = vadd.f32 %v400, %v432
      %v465 = vadd.f32 %v401, %v433
      %v466 = vadd.f32 %v402, %v434
      %v467 = vadd.f32 %v403, %v435
      %v468 = vadd.f32 %v404, %v436
      %v469 = vadd.f32 %v405, %v437
      %v470 = vadd.f32 %v406, %v438
      %v471 = vadd.f32 %v407, %v439
      %v472 = vadd.f32 %v408, %v440
      %v473 = vadd.f32 %v409, %v441
      %v474 = vadd.f32 %v410, %v442
      %v475 = vadd.f32 %v411, %v443
      %v476 = vadd.f32 %v412, %v444
      %v477 = vadd.f32 %v413, %v445
      %v478 = vadd.f32 %v414, %v446
      %v479 = vmax.f32 %v447, 0.0
      %v480 = vmax.f32 %v448, 0.0
      %v481 = vmax.f32 %v449, 0.0
      %v482 = vmax.f32 %v450, 0.0
      %v483 = vmax.f32 %v451, 0.0
      %v484 = vmax.f32 %v452, 0.0
      %v485 = vmax.f32 %v453, 0.0
      %v486 = vmax.f32 %v454, 0.0
      %v487 = vmax.f32 %v455, 0.0
      %v488 = vmax.f32 %v456, 0.0
      %v489 = vmax.f32 %v457, 0.0
      %v490 = vmax.f32 %v458, 0.0
      %v491 = vmax.f32 %v459, 0.0
      %v492 = vmax.f32 %v460, 0.0
      %v493 = vmax.f32 %v461, 0.0
      %v494 = vmax.f32 %v462, 0.0
      %v495 = vmax.f32 %v463, 0.0
      %v496 = vmax.f32 %v464, 0.0
      %v497 = vmax.f32 %v465, 0.0
      %v498 = vmax.f32 %v466, 0.0
      %v499 = vmax.f32 %v467, 0.0
      %v500 = vmax.f32 %v468, 0.0
      %v501 = vmax.f32 %v469, 0.0
      %v502 = vmax.f32 %v470, 0.0
      %v503 = vmax.f32 %v471, 0.0
      %v504 = vmax.f32 %v472, 0.0
      %v505 = vmax.f32 %v473, 0.0
      %v506 = vmax.f32 %v474, 0.0
      %v507 = vmax.f32 %v475, 0.0
      %v508 = vmax.f32 %v476, 0.0
      %v509 = vmax.f32 %v477, 0.0
      %v510 = vmax.f32 %v478, 0.0
      %vm511 = vcmask 130048
      %512 = vst.msk [vmem:[%s271] sm:$0xff] %vm511, %v479
      %513 = vst.msk [vmem:[%s271 + $0x8] sm:$0xff] %vm511, %v480
      %514 = vst.msk [vmem:[%s271 + $0x10] sm:$0xff] %vm511, %v481
      %515 = vst.msk [vmem:[%s271 + $0x18] sm:$0xff] %vm511, %v482
      %516 = vst.msk [vmem:[%s271 + $0x20] sm:$0xff] %vm511, %v483
      %517 = vst.msk [vmem:[%s271 + $0x28] sm:$0xff] %vm511, %v484
      %518 = vst.msk [vmem:[%s271 + $0x30] sm:$0xff] %vm511, %v485
      %519 = vst.msk [vmem:[%s271 + $0x38] sm:$0xff] %vm511, %v486
      %520 = vst.msk [vmem:[%s271 + $0x40] sm:$0xff] %vm511, %v487
      %521 = vst.msk [vmem:[%s271 + $0x48] sm:$0xff] %vm511, %v488
      %522 = vst.msk [vmem:[%s271 + $0x50] sm:$0xff] %vm511, %v489
      %523 = vst.msk [vmem:[%s271 + $0x58] sm:$0xff] %vm511, %v490
      %524 = vst.msk [vmem:[%s271 + $0x60] sm:$0xff] %vm511, %v491
      %525 = vst.msk [vmem:[%s271 + $0x68] sm:$0xff] %vm511, %v492
      %526 = vst.msk [vmem:[%s271 + $0x70] sm:$0xff] %vm511, %v493
      %527 = vst.msk [vmem:[%s271 + $0x78] sm:$0xff] %vm511, %v494
      %528 = vst.msk [vmem:[%s271 + $0x80] sm:$0xff] %vm511, %v495
      %529 = vst.msk [vmem:[%s271 + $0x88] sm:$0xff] %vm511, %v496
      %530 = vst.msk [vmem:[%s271 + $0x90] sm:$0xff] %vm511, %v497
      %531 = vst.msk [vmem:[%s271 + $0x98] sm:$0xff] %vm511, %v498
      %532 = vst.msk [vmem:[%s271 + $0xa0] sm:$0xff] %vm511, %v499
      %533 = vst.msk [vmem:[%s271 + $0xa8] sm:$0xff] %vm511, %v500
      %534 = vst.msk [vmem:[%s271 + $0xb0] sm:$0xff] %vm511, %v501
      %535 = vst.msk [vmem:[%s271 + $0xb8] sm:$0xff] %vm511, %v502
      %536 = vst.msk [vmem:[%s271 + $0xc0] sm:$0xff] %vm511, %v503
      %537 = vst.msk [vmem:[%s271 + $0xc8] sm:$0xff] %vm511, %v504
      %538 = vst.msk [vmem:[%s271 + $0xd0] sm:$0xff] %vm511, %v505
      %539 = vst.msk [vmem:[%s271 + $0xd8] sm:$0xff] %vm511, %v506
      %540 = vst.msk [vmem:[%s271 + $0xe0] sm:$0xff] %vm511, %v507
      %541 = vst.msk [vmem:[%s271 + $0xe8] sm:$0xff] %vm511, %v508
      %542 = vst.msk [vmem:[%s271 + $0xf0] sm:$0xff] %vm511, %v509
      %543 = vst.msk [vmem:[%s271 + $0xf8] sm:$0xff] %vm511, %v510
      %s544 = smul.u32 32, %s20
      %p545 = scmp.lt.s32.totalorder %s19, 1
      %s546 = scalar_select %p545, %s19, 1
      %p547 = scmp.lt.s32.totalorder %s544, 31
      %s548 = scalar_select %p547, %s544, 31
      %s549 = smul.addr %s546, 32
      %s550 = sadd.s32 %s548, %s549
      %s551 = smul.addr %s550, 8
      %s552 = scalar_lea.vmem %s4, %s551
      // Predicated region
      $region37: #{bottleneck_forward.7} parent=35 // pred_check
        %p553 = pneg %p145
      $region38: #{bottleneck_forward.7} parent=35 // pred_check_branch
        %555 = sbr.rel (%p553) target = $region40
      $region39: #{bottleneck_forward.7} parent=35 // pred_region
        %s556 = smul.u32 32, %s20
      $region40: #{bottleneck_forward.7} parent=35 // pred_fallthru
        _
    $region36: #{bottleneck_forward.7} parent=5 // pred_fallthru
      _
    %p557 = scmp.le.s32.totalorder 2, %s10
    // Predicated region
    $region41: #{bottleneck_forward.7} parent=5 // pred_check
      %p558 = pneg %p557
    $region42: #{bottleneck_forward.7} parent=5 // pred_check_branch
      %560 = sbr.rel (%p558) target = $region44
    $region43: #{bottleneck_forward.7} parent=5 // pred_region
      %s561 = ssub.s32 %s10, 2
      // Predicated region
      $region45: #{bottleneck_forward.7} parent=43 // pred_check
        %p562 = pneg %p151
      $region46: #{bottleneck_forward.7} parent=43 // pred_check_branch
        %564 = sbr.rel (%p562) target = $region48
      $region47: #{bottleneck_forward.7} parent=43 // pred_region
        %s565 = smul.u32 32, %s22
        %p566 = scmp.lt.s32.totalorder %s21, 1
        %s567 = scalar_select %p566, %s21, 1
        %p568 = scmp.lt.s32.totalorder %s565, 31
        %s569 = scalar_select %p568, %s565, 31
        %s570 = smul.addr %s567, 32
        %s571 = sadd.s32 %s569, %s570
        %s572 = smul.addr %s571, 8
        %s573 = scalar_lea.vmem %s4, %s572
      $region48: #{bottleneck_forward.7} parent=43 // pred_fallthru
        _
    $region44: #{bottleneck_forward.7} parent=5 // pred_fallthru
      _
  $region6: #{bottleneck_forward.7} parent=0 // loop_footer
    %s14 = sadd.s32 1, %s10
  $region7: #{bottleneck_forward.7} parent=0 // loop_footer_branch
    %9 = sbr.rel target = $region3
  $region8: #{bottleneck_forward.7} parent=0 // loop_exit
    _

// kernel: bottleneck_forward.5
$region0: #{bottleneck_forward.5}
  #allocation0 [shape = 'u32[]', space=smem, size = 0x4, offset = 0x4, fixed_abs, tag = 'smem constant byte address 0x4 - core index']
  #allocation1 [shape = 'u32[144,128]{1,0:T(1,128)}', space=vmem, size = 0x12000, scoped, tag = 'internal scratch']
  #allocation2 [shape = 'bf16[328,4]{1,0:T(8,128)(2,1)}', space=vmem, size = 0x14800, scoped, tag = 'scratch operand']
  %s0 = inlined_call_operand.vmem [shape: bf16[2,256,4], index: 0, kind: input, shape index: {}]
  %s1 = inlined_call_operand.vmem [shape: f32[1,4], index: 1, kind: input, shape index: {}]
  %s2 = inlined_call_operand.vmem [shape: f32[1,4], index: 2, kind: input, shape index: {}]
  %s3 = inlined_call_operand.vmem [shape: bf16[36,4], index: 3, kind: input, shape index: {}]
  %s4 = inlined_call_operand.vmem [shape: bf16[2,256,4], index: 4, kind: output, shape index: {0}]
  %s5 = inlined_call_operand.vmem [shape: f32[2,1,4], index: 5, kind: output, shape index: {1}]
  %s6 = inlined_call_operand.vmem [shape: f32[2,1,4], index: 6, kind: output, shape index: {2}]
  %7 = xla_tuple %s4, %s5, %s6
  %s8 = sld [smem:[#allocation0]]
  $region65: #{bottleneck_forward.5} parent=0
    _
  %s10 = ssub.s32 1, %s8
  %s11 = scalar_select 0, %s10, %s8
  loop: start=0, step=1, limit=4
  $region2: #{bottleneck_forward.5} parent=0 // loop_pre_header
    _
  $region3: #{bottleneck_forward.5} parent=0 // loop_header
    %s13 = sphi 0, %s17
    %p14 = scmp.ge.s32.totalorder %s13, 4
    %s23 = sphi 0, %s25
    %s26 = sphi 0, %s23
    %s27 = sphi 0, %s26
    %s43 = sphi 0, %s27
    %s47 = sphi 0, %s47
    %s49 = sphi 0, %s47
    %s50 = sphi 0, %s49
    %s64 = sphi 0, %s50
    %s68 = sphi 0, %s68
    %s70 = sphi 0, %s68
    %s71 = sphi 0, %s70
    %s85 = sphi 0, %s71
    %s89 = sphi 0, %s89
    %s91 = sphi 0, %s89
    %s92 = sphi 0, %s91
    %s106 = sphi 0, %s92
    %s112 = sphi 0, %s114
    %s115 = sphi 0, %s112
    %s116 = sphi 0, %s115
    %s132 = sphi 0, %s116
    %s138 = sphi 0, %s140
    %s141 = sphi 0, %s138
    %s142 = sphi 0, %s141
    %s158 = sphi 0, %s142
    %s164 = sphi 0, %s166
    %s167 = sphi 0, %s164
    %s168 = sphi 0, %s167
    %s184 = sphi 0, %s168
  $region4: #{bottleneck_forward.5} parent=0 // loop_header_branch
    %16 = sbr.rel (%p14) target = $region8
  $region5: #{bottleneck_forward.5} parent=0 // loop_body
    %s18 = ssub.s32 %s13, 1
    %s19 = ssub.s32 %s13, 2
    %s20 = sadd.s32 %s13, 1
    %s21 = ssub.s32 %s13, %s20
    %p22 = scmp.eq.s32.totalorder %s21, 0
    %s24 = sadd.s32 %s23, 1
    %s25 = scalar_select %p22, %s23, %s24
    %p28 = pneg %p22
    %p29 = scmp.eq.s32.totalorder %s13, 1
    %p30 = por %p28, %p29
    %p31 = scmp.ne.s32.totalorder %s23, %s26
    %p32 = scmp.eq.s32.totalorder %s13, 0
    %p33 = por %p31, %p32
    %p34 = scmp.ne.s32.totalorder %s23, %s26
    %p35 = scmp.eq.s32.totalorder %s18, 1
    %p36 = por %p34, %p35
    %p37 = scmp.ne.s32.totalorder %s26, %s27
    %p38 = scmp.eq.s32.totalorder %s18, 0
    %p39 = por %p37, %p38
    %p40 = scmp.ne.s32.totalorder %s26, %s27
    %p41 = scmp.eq.s32.totalorder %s19, 1
    %p42 = por %p40, %p41
    %p44 = scmp.ne.s32.totalorder %s27, %s43
    %p45 = scmp.eq.s32.totalorder %s19, 0
    %p46 = por %p44, %p45
    %s48 = sadd.s32 %s47, 1
    %p51 = scmp.eq.s32.totalorder %s13, 1
    %p52 = scmp.ne.s32.totalorder %s47, %s49
    %p53 = scmp.eq.s32.totalorder %s13, 0
    %p54 = por %p52, %p53
    %p55 = scmp.ne.s32.totalorder %s47, %s49
    %p56 = scmp.eq.s32.totalorder %s18, 1
    %p57 = por %p55, %p56
    %p58 = scmp.ne.s32.totalorder %s49, %s50
    %p59 = scmp.eq.s32.totalorder %s18, 0
    %p60 = por %p58, %p59
    %p61 = scmp.ne.s32.totalorder %s49, %s50
    %p62 = scmp.eq.s32.totalorder %s19, 1
    %p63 = por %p61, %p62
    %p65 = scmp.ne.s32.totalorder %s50, %s64
    %p66 = scmp.eq.s32.totalorder %s19, 0
    %p67 = por %p65, %p66
    %s69 = sadd.s32 %s68, 1
    %p72 = scmp.eq.s32.totalorder %s13, 1
    %p73 = scmp.ne.s32.totalorder %s68, %s70
    %p74 = scmp.eq.s32.totalorder %s13, 0
    %p75 = por %p73, %p74
    %p76 = scmp.ne.s32.totalorder %s68, %s70
    %p77 = scmp.eq.s32.totalorder %s18, 1
    %p78 = por %p76, %p77
    %p79 = scmp.ne.s32.totalorder %s70, %s71
    %p80 = scmp.eq.s32.totalorder %s18, 0
    %p81 = por %p79, %p80
    %p82 = scmp.ne.s32.totalorder %s70, %s71
    %p83 = scmp.eq.s32.totalorder %s19, 1
    %p84 = por %p82, %p83
    %p86 = scmp.ne.s32.totalorder %s71, %s85
    %p87 = scmp.eq.s32.totalorder %s19, 0
    %p88 = por %p86, %p87
    %s90 = sadd.s32 %s89, 1
    %p93 = scmp.eq.s32.totalorder %s13, 1
    %p94 = scmp.ne.s32.totalorder %s89, %s91
    %p95 = scmp.eq.s32.totalorder %s13, 0
    %p96 = por %p94, %p95
    %p97 = scmp.ne.s32.totalorder %s89, %s91
    %p98 = scmp.eq.s32.totalorder %s18, 1
    %p99 = por %p97, %p98
    %p100 = scmp.ne.s32.totalorder %s91, %s92
    %p101 = scmp.eq.s32.totalorder %s18, 0
    %p102 = por %p100, %p101
    %p103 = scmp.ne.s32.totalorder %s91, %s92
    %p104 = scmp.eq.s32.totalorder %s19, 1
    %p105 = por %p103, %p104
    %p107 = scmp.ne.s32.totalorder %s92, %s106
    %p108 = scmp.eq.s32.totalorder %s19, 0
    %p109 = por %p107, %p108
    %s110 = ssub.s32 %s13, %s20
    %p111 = scmp.eq.s32.totalorder %s110, 0
    %s113 = sadd.s32 %s112, 1
    %s114 = scalar_select %p111, %s112, %s113
    %p117 = pneg %p111
    %p118 = scmp.eq.s32.totalorder %s13, 1
    %p119 = por %p117, %p118
    %p120 = scmp.ne.s32.totalorder %s112, %s115
    %p121 = scmp.eq.s32.totalorder %s13, 0
    %p122 = por %p120, %p121
    %p123 = scmp.ne.s32.totalorder %s112, %s115
    %p124 = scmp.eq.s32.totalorder %s18, 1
    %p125 = por %p123, %p124
    %p126 = scmp.ne.s32.totalorder %s115, %s116
    %p127 = scmp.eq.s32.totalorder %s18, 0
    %p128 = por %p126, %p127
    %p129 = scmp.ne.s32.totalorder %s115, %s116
    %p130 = scmp.eq.s32.totalorder %s19, 1
    %p131 = por %p129, %p130
    %p133 = scmp.ne.s32.totalorder %s116, %s132
    %p134 = scmp.eq.s32.totalorder %s19, 0
    %p135 = por %p133, %p134
    %s136 = ssub.s32 %s13, %s20
    %p137 = scmp.eq.s32.totalorder %s136, 0
    %s139 = sadd.s32 %s138, 1
    %s140 = scalar_select %p137, %s138, %s139
    %p143 = pneg %p137
    %p144 = scmp.eq.s32.totalorder %s13, 1
    %p145 = por %p143, %p144
    %p146 = scmp.ne.s32.totalorder %s138, %s141
    %p147 = scmp.eq.s32.totalorder %s13, 0
    %p148 = por %p146, %p147
    %p149 = scmp.ne.s32.totalorder %s138, %s141
    %p150 = scmp.eq.s32.totalorder %s18, 1
    %p151 = por %p149, %p150
    %p152 = scmp.ne.s32.totalorder %s141, %s142
    %p153 = scmp.eq.s32.totalorder %s18, 0
    %p154 = por %p152, %p153
    %p155 = scmp.ne.s32.totalorder %s141, %s142
    %p156 = scmp.eq.s32.totalorder %s19, 1
    %p157 = por %p155, %p156
    %p159 = scmp.ne.s32.totalorder %s142, %s158
    %p160 = scmp.eq.s32.totalorder %s19, 0
    %p161 = por %p159, %p160
    %s162 = ssub.s32 %s13, %s20
    %p163 = scmp.eq.s32.totalorder %s162, 0
    %s165 = sadd.s32 %s164, 1
    %s166 = scalar_select %p163, %s164, %s165
    %p169 = pneg %p163
    %p170 = scmp.eq.s32.totalorder %s13, 1
    %p171 = por %p169, %p170
    %p172 = scmp.ne.s32.totalorder %s164, %s167
    %p173 = scmp.eq.s32.totalorder %s13, 0
    %p174 = por %p172, %p173
    %p175 = scmp.ne.s32.totalorder %s164, %s167
    %p176 = scmp.eq.s32.totalorder %s18, 1
    %p177 = por %p175, %p176
    %p178 = scmp.ne.s32.totalorder %s167, %s168
    %p179 = scmp.eq.s32.totalorder %s18, 0
    %p180 = por %p178, %p179
    %p181 = scmp.ne.s32.totalorder %s167, %s168
    %p182 = scmp.eq.s32.totalorder %s19, 1
    %p183 = por %p181, %p182
    %p185 = scmp.ne.s32.totalorder %s168, %s184
    %p186 = scmp.eq.s32.totalorder %s19, 0
    %p187 = por %p185, %p186
    %p188 = scmp.le.s32.totalorder 1, %s13
    %p189 = scmp.lt.s32.totalorder %s13, 3
    %p190 = pnand %p188, %p189
    %p191 = pneg %p190
    // Predicated region
    $region9: #{bottleneck_forward.5} parent=5 // pred_check
      _
    $region10: #{bottleneck_forward.5} parent=5 // pred_check_branch
      %193 = sbr.rel (%p190) target = $region12
    $region11: #{bottleneck_forward.5} parent=5 // pred_region
      %s194 = ssub.s32 %s13, 1
      // Predicated region
      $region13: #{bottleneck_forward.5} parent=11 // pred_check
        %p195 = pneg %p60
      $region14: #{bottleneck_forward.5} parent=11 // pred_check_branch
        %197 = sbr.rel (%p195) target = $region16
      $region15: #{bottleneck_forward.5} parent=11 // pred_region
        _
      $region16: #{bottleneck_forward.5} parent=11 // pred_fallthru
        _
      // Predicated region
      $region17: #{bottleneck_forward.5} parent=11 // pred_check
        %p198 = pneg %p81
      $region18: #{bottleneck_forward.5} parent=11 // pred_check_branch
        %200 = sbr.rel (%p198) target = $region20
      $region19: #{bottleneck_forward.5} parent=11 // pred_region
        _
      $region20: #{bottleneck_forward.5} parent=11 // pred_fallthru
        _
      // Predicated region
      $region21: #{bottleneck_forward.5} parent=11 // pred_check
        %p201 = pneg %p102
      $region22: #{bottleneck_forward.5} parent=11 // pred_check_branch
        %203 = sbr.rel (%p201) target = $region24
      $region23: #{bottleneck_forward.5} parent=11 // pred_region
        _
      $region24: #{bottleneck_forward.5} parent=11 // pred_fallthru
        _
    $region12: #{bottleneck_forward.5} parent=5 // pred_fallthru
      _
    %p204 = scmp.lt.s32.totalorder %s13, 2
    // Predicated region
    $region25: #{bottleneck_forward.5} parent=5 // pred_check
      %p205 = pneg %p204
    $region26: #{bottleneck_forward.5} parent=5 // pred_check_branch
      %207 = sbr.rel (%p205) target = $region28
    $region27: #{bottleneck_forward.5} parent=5 // pred_region
      // Predicated region
      $region29: #{bottleneck_forward.5} parent=27 // pred_check
        %p208 = pneg %p33
      $region30: #{bottleneck_forward.5} parent=27 // pred_check_branch
        %210 = sbr.rel (%p208) target = $region32
      $region31: #{bottleneck_forward.5} parent=27 // pred_region
        %p211 = scmp.lt.s32.totalorder %s13, 1
        %s212 = scalar_select %p211, %s13, 1
        %s213 = smul.addr %s212, 32
        %s214 = smul.addr %s213, 4
        %s215 = scalar_lea.vmem %s0, %s214
      $region32: #{bottleneck_forward.5} parent=27 // pred_fallthru
        _
    $region28: #{bottleneck_forward.5} parent=5 // pred_fallthru
      _
    %p216 = scmp.le.s32.totalorder 1, %s13
    %p217 = scmp.lt.s32.totalorder %s13, 3
    %p218 = pnand %p216, %p217
    %p219 = pneg %p218
    // Predicated region
    $region33: #{bottleneck_forward.5} parent=5 // pred_check
      _
    $region34: #{bottleneck_forward.5} parent=5 // pred_check_branch
      %221 = sbr.rel (%p218) target = $region36
    $region35: #{bottleneck_forward.5} parent=5 // pred_region
      %s222 = ssub.s32 %s13, 1
      %p223 = scmp.lt.s32.totalorder %s18, 1
      %s224 = scalar_select %p223, %s18, 1
      %s225 = smul.addr %s224, 32
      %s226 = smul.addr %s225, 4
      %s227 = scalar_lea.vmem %s0, %s226
      %p228 = pneg %p39
      %p229 = pneg %p36
      %p230 = pneg %p60
      %p231 = pneg %p57
      %p232 = pneg %p81
      %p233 = pneg %p78
      %p234 = pneg %p102
      %p235 = pneg %p99
      %p236 = pneg %p128
      %p237 = pneg %p125
      %p238 = scmp.lt.s32.totalorder %s18, 1
      %s239 = scalar_select %p238, %s18, 1
      %s240 = smul.addr %s239, 32
      %s241 = smul.addr %s240, 4
      %s242 = scalar_lea.vmem %s4, %s241
      %p243 = pneg %p154
      %p244 = pneg %p151
      %p245 = scmp.lt.s32.totalorder %s18, 1
      %s246 = scalar_select %p245, %s18, 1
      %s247 = scalar_lea.vmem %s5, %s246
      %p248 = pneg %p180
      %p249 = pneg %p177
      %p250 = scmp.lt.s32.totalorder %s18, 1
      %s251 = scalar_select %p250, %s18, 1
      %s252 = scalar_lea.vmem %s6, %s251
      %p253 = scmp.lt.s32.totalorder %s18, 1
      %s254 = scalar_select %p253, %s18, 1
      %s255 = smul.addr %s254, 32
      %s256 = smul.addr %s255, 4
      %s257 = scalar_lea.vmem %s0, %s256
      %p258 = scmp.lt.s32.totalorder %s18, 1
      %s259 = scalar_select %p258, %s18, 1
      %s260 = smul.addr %s259, 32
      %s261 = smul.addr %s260, 4
      %s262 = scalar_lea.vmem %s4, %s261
      %p263 = scmp.lt.s32.totalorder %s18, 1
      %s264 = scalar_select %p263, %s18, 1
      %s265 = scalar_lea.vmem %s5, %s264
      %p266 = scmp.lt.s32.totalorder %s18, 1
      %s267 = scalar_select %p266, %s18, 1
      %s268 = scalar_lea.vmem %s6, %s267
      %vm270 = vcmask 27648
      %271 = vst.msk [vmem:[#allocation2] sm:$0xf] %vm270, 0
      %272 = vst.msk [vmem:[#allocation2 + $0x4] sm:$0xf] %vm270, 0
      %273 = vst.msk [vmem:[#allocation2 + $0x8] sm:$0xf] %vm270, 0
      %274 = vst.msk [vmem:[#allocation2 + $0xc] sm:$0xf] %vm270, 0
      %275 = vst.msk [vmem:[#allocation2 + $0x10] sm:$0xf] %vm270, 0
      %276 = vst.msk [vmem:[#allocation2 + $0x14] sm:$0xf] %vm270, 0
      %277 = vst.msk [vmem:[#allocation2 + $0x18] sm:$0xf] %vm270, 0
      %278 = vst.msk [vmem:[#allocation2 + $0x1c] sm:$0xf] %vm270, 0
      %279 = vst.msk [vmem:[#allocation2 + $0x20] sm:$0xf] %vm270, 0
      %280 = vst.msk [vmem:[#allocation2 + $0x24] sm:$0xf] %vm270, 0
      %281 = vst.msk [vmem:[#allocation2 + $0x28] sm:$0xf] %vm270, 0
      %282 = vst.msk [vmem:[#allocation2 + $0x2c] sm:$0xf] %vm270, 0
      %283 = vst.msk [vmem:[#allocation2 + $0x30] sm:$0xf] %vm270, 0
      %284 = vst.msk [vmem:[#allocation2 + $0x34] sm:$0xf] %vm270, 0
      %285 = vst.msk [vmem:[#allocation2 + $0x38] sm:$0xf] %vm270, 0
      %286 = vst.msk [vmem:[#allocation2 + $0x3c] sm:$0xf] %vm270, 0
      %287 = vst.msk [vmem:[#allocation2 + $0x40] sm:$0xf] %vm270, 0
      %288 = vst.msk [vmem:[#allocation2 + $0x44] sm:$0xf] %vm270, 0
      %289 = vst.msk [vmem:[#allocation2 + $0x48] sm:$0xf] %vm270, 0
      %290 = vst.msk [vmem:[#allocation2 + $0x4c] sm:$0xf] %vm270, 0
      %291 = vst.msk [vmem:[#allocation2 + $0x50] sm:$0xf] %vm270, 0
      %292 = vst.msk [vmem:[#allocation2 + $0x54] sm:$0xf] %vm270, 0
      %293 = vst.msk [vmem:[#allocation2 + $0x58] sm:$0xf] %vm270, 0
      %294 = vst.msk [vmem:[#allocation2 + $0x5c] sm:$0xf] %vm270, 0
      %295 = vst.msk [vmem:[#allocation2 + $0x60] sm:$0xf] %vm270, 0
      %296 = vst.msk [vmem:[#allocation2 + $0x64] sm:$0xf] %vm270, 0
      %297 = vst.msk [vmem:[#allocation2 + $0x68] sm:$0xf] %vm270, 0
      %298 = vst.msk [vmem:[#allocation2 + $0x6c] sm:$0xf] %vm270, 0
      %299 = vst.msk [vmem:[#allocation2 + $0x70] sm:$0xf] %vm270, 0
      %300 = vst.msk [vmem:[#allocation2 + $0x74] sm:$0xf] %vm270, 0
      %301 = vst.msk [vmem:[#allocation2 + $0x78] sm:$0xf] %vm270, 0
      %302 = vst.msk [vmem:[#allocation2 + $0x7c] sm:$0xf] %vm270, 0
      %303 = vst.msk [vmem:[#allocation2 + $0x80] sm:$0xf] %vm270, 0
      %304 = vst.msk [vmem:[#allocation2 + $0x84] sm:$0xf] %vm270, 0
      %305 = vst.msk [vmem:[#allocation2 + $0x88] sm:$0xf] %vm270, 0
      %306 = vst.msk [vmem:[#allocation2 + $0x8c] sm:$0xf] %vm270, 0
      %307 = vst.msk [vmem:[#allocation2 + $0x90] sm:$0xf] %vm270, 0
      %308 = vst.msk [vmem:[#allocation2 + $0x94] sm:$0xf] %vm270, 0
      %309 = vst.msk [vmem:[#allocation2 + $0x98] sm:$0xf] %vm270, 0
      %310 = vst.msk [vmem:[#allocation2 + $0x9c] sm:$0xf] %vm270, 0
      %311 = vst.msk [vmem:[#allocation2 + $0xa0] sm:$0xf] %vm270, 0
      %v312 = vld [vmem:[%s257] sm:$0xf]
      %v313 = vld [vmem:[%s257 + $0x4] sm:$0xf]
      %v314 = vld [vmem:[%s257 + $0x8] sm:$0xf]
      %v315 = vld [vmem:[%s257 + $0xc] sm:$0xf]
      %v316 = vld [vmem:[%s257 + $0x10] sm:$0xf]
      %v317 = vld [vmem:[%s257 + $0x14] sm:$0xf]
      %v318 = vld [vmem:[%s257 + $0x18] sm:$0xf]
      %v319 = vld [vmem:[%s257 + $0x1c] sm:$0xf]
      %v320 = vld [vmem:[%s257 + $0x20] sm:$0xf]
      %v321 = vld [vmem:[%s257 + $0x24] sm:$0xf]
      %v322 = vld [vmem:[%s257 + $0x28] sm:$0xf]
      %v323 = vld [vmem:[%s257 + $0x2c] sm:$0xf]
      %v324 = vld [vmem:[%s257 + $0x30] sm:$0xf]
      %v325 = vld [vmem:[%s257 + $0x34] sm:$0xf]
      %v326 = vld [vmem:[%s257 + $0x38] sm:$0xf]
      %v327 = vld [vmem:[%s257 + $0x3c] sm:$0xf]
      %v328 = vld [vmem:[%s257 + $0x40] sm:$0xf]
      %v329 = vld [vmem:[%s257 + $0x44] sm:$0xf]
      %v330 = vld [vmem:[%s257 + $0x48] sm:$0xf]
      %v331 = vld [vmem:[%s257 + $0x4c] sm:$0xf]
      %v332 = vld [vmem:[%s257 + $0x50] sm:$0xf]
      %v333 = vld [vmem:[%s257 + $0x54] sm:$0xf]
      %v334 = vld [vmem:[%s257 + $0x58] sm:$0xf]
      %v335 = vld [vmem:[%s257 + $0x5c] sm:$0xf]
      %v336 = vld [vmem:[%s257 + $0x60] sm:$0xf]
      %v337 = vld [vmem:[%s257 + $0x64] sm:$0xf]
      %v338 = vld [vmem:[%s257 + $0x68] sm:$0xf]
      %v339 = vld [vmem:[%s257 + $0x6c] sm:$0xf]
      %v340 = vld [vmem:[%s257 + $0x70] sm:$0xf]
      %v341 = vld [vmem:[%s257 + $0x74] sm:$0xf]
      %v342 = vld [vmem:[%s257 + $0x78] sm:$0xf]
      %v343 = vld [vmem:[%s257 + $0x7c] sm:$0xf]
      %v344 = vunpack.c.l.bf16 %v312
      %v345 = vunpack.c.l.bf16 %v313
      %v346 = vunpack.c.l.bf16 %v314
      %v347 = vunpack.c.l.bf16 %v315
      %v348 = vunpack.c.l.bf16 %v316
      %v349 = vunpack.c.l.bf16 %v317
      %v350 = vunpack.c.l.bf16 %v318
      %v351 = vunpack.c.l.bf16 %v319
      %v352 = vunpack.c.l.bf16 %v320
      %v353 = vunpack.c.l.bf16 %v321
      %v354 = vunpack.c.l.bf16 %v322
      %v355 = vunpack.c.l.bf16 %v323
      %v356 = vunpack.c.l.bf16 %v324
      %v357 = vunpack.c.l.bf16 %v325
      %v358 = vunpack.c.l.bf16 %v326
      %v359 = vunpack.c.l.bf16 %v327
      %v360 = vunpack.c.l.bf16 %v328
      %v361 = vunpack.c.l.bf16 %v329
      %v362 = vunpack.c.l.bf16 %v330
      %v363 = vunpack.c.l.bf16 %v331
      %v364 = vunpack.c.l.bf16 %v332
      %v365 = vunpack.c.l.bf16 %v333
      %v366 = vunpack.c.l.bf16 %v334
      %v367 = vunpack.c.l.bf16 %v335
      %v368 = vunpack.c.l.bf16 %v336
      %v369 = vunpack.c.l.bf16 %v337
      %v370 = vunpack.c.l.bf16 %v338
      %v371 = vunpack.c.l.bf16 %v339
      %v372 = vunpack.c.l.bf16 %v340
      %v373 = vunpack.c.l.bf16 %v341
      %v374 = vunpack.c.l.bf16 %v342
      %v375 = vunpack.c.l.bf16 %v343
      %v376 = vld [vmem:[%s1] sm:$0x1]
      %v378 = vlaneseq
      %v379 = vshrl.u32 %v378, 7
      %v380 = vsub.s32 0, %v379
      %v381 = vrot.slane %v376, %v380
      %v383 = vmul.f32 %v344, %v381
      %v384 = vmul.f32 %v345, %v381
      %v385 = vmul.f32 %v346, %v381
      %v386 = vmul.f32 %v347, %v381
      %v387 = vmul.f32 %v348, %v381
      %v388 = vmul.f32 %v349, %v381
      %v389 = vmul.f32 %v350, %v381
      %v390 = vmul.f32 %v351, %v381
      %v391 = vmul.f32 %v352, %v381
      %v392 = vmul.f32 %v353, %v381
      %v393 = vmul.f32 %v354, %v381
      %v394 = vmul.f32 %v355, %v381
      %v395 = vmul.f32 %v356, %v381
      %v396 = vmul.f32 %v357, %v381
      %v397 = vmul.f32 %v358, %v381
      %v398 = vmul.f32 %v359, %v381
      %v399 = vmul.f32 %v360, %v381
      %v400 = vmul.f32 %v361, %v381
      %v401 = vmul.f32 %v362, %v381
      %v402 = vmul.f32 %v363, %v381
      %v403 = vmul.f32 %v364, %v381
      %v404 = vmul.f32 %v365, %v381
      %v405 = vmul.f32 %v366, %v381
      %v406 = vmul.f32 %v367, %v381
      %v407 = vmul.f32 %v368, %v381
      %v408 = vmul.f32 %v369, %v381
      %v409 = vmul.f32 %v370, %v381
      %v410 = vmul.f32 %v371, %v381
      %v411 = vmul.f32 %v372, %v381
      %v412 = vmul.f32 %v373, %v381
      %v413 = vmul.f32 %v374, %v381
      %v414 = vmul.f32 %v375, %v381
      %v415 = vld [vmem:[%s2] sm:$0x1]
      %v417 = vlaneseq
      %v418 = vshrl.u32 %v417, 7
      %v419 = vsub.s32 0, %v418
      %v420 = vrot.slane %v415, %v419
      %v422 = vadd.f32 %v383, %v420
      %v423 = vadd.f32 %v384, %v420
      %v424 = vadd.f32 %v385, %v420
      %v425 = vadd.f32 %v386, %v420
      %v426 = vadd.f32 %v387, %v420
      %v427 = vadd.f32 %v388, %v420
      %v428 = vadd.f32 %v389, %v420
      %v429 = vadd.f32 %v390, %v420
      %v430 = vadd.f32 %v391, %v420
      %v431 = vadd.f32 %v392, %v420
      %v432 = vadd.f32 %v393, %v420
      %v433 = vadd.f32 %v394, %v420
      %v434 = vadd.f32 %v395, %v420
      %v435 = vadd.f32 %v396, %v420
      %v436 = vadd.f32 %v397, %v420
      %v437 = vadd.f32 %v398, %v420
      %v438 = vadd.f32 %v399, %v420
      %v439 = vadd.f32 %v400, %v420
      %v440 = vadd.f32 %v401, %v420
      %v441 = vadd.f32 %v402, %v420
      %v442 = vadd.f32 %v403, %v420
      %v443 = vadd.f32 %v404, %v420
      %v444 = vadd.f32 %v405, %v420
      %v445 = vadd.f32 %v406, %v420
      %v446 = vadd.f32 %v407, %v420
      %v447 = vadd.f32 %v408, %v420
      %v448 = vadd.f32 %v409, %v420
      %v449 = vadd.f32 %v410, %v420
      %v450 = vadd.f32 %v411, %v420
      %v451 = vadd.f32 %v412, %v420
      %v452 = vadd.f32 %v413, %v420
      %v453 = vadd.f32 %v414, %v420
      %v454 = vmax.f32 %v422, 0.0
      %v455 = vmax.f32 %v423, 0.0
      %v456 = vmax.f32 %v424, 0.0
      %v457 = vmax.f32 %v425, 0.0
      %v458 = vmax.f32 %v426, 0.0
      %v459 = vmax.f32 %v427, 0.0
      %v460 = vmax.f32 %v428, 0.0
      %v461 = vmax.f32 %v429, 0.0
      %v462 = vmax.f32 %v430, 0.0
      %v463 = vmax.f32 %v431, 0.0
      %v464 = vmax.f32 %v432, 0.0
      %v465 = vmax.f32 %v433, 0.0
      %v466 = vmax.f32 %v434, 0.0
      %v467 = vmax.f32 %v435, 0.0
      %v468 = vmax.f32 %v436, 0.0
      %v469 = vmax.f32 %v437, 0.0
      %v470 = vmax.f32 %v438, 0.0
      %v471 = vmax.f32 %v439, 0.0
      %v472 = vmax.f32 %v440, 0.0
      %v473 = vmax.f32 %v441, 0.0
      %v474 = vmax.f32 %v442, 0.0
      %v475 = vmax.f32 %v443, 0.0
      %v476 = vmax.f32 %v444, 0.0
      %v477 = vmax.f32 %v445, 0.0
      %v478 = vmax.f32 %v446, 0.0
      %v479 = vmax.f32 %v447, 0.0
      %v480 = vmax.f32 %v448, 0.0
      %v481 = vmax.f32 %v449, 0.0
      %v482 = vmax.f32 %v450, 0.0
      %v483 = vmax.f32 %v451, 0.0
      %v484 = vmax.f32 %v452, 0.0
      %v485 = vmax.f32 %v453, 0.0
      %v486 = vpack.c.bf16 %v455, %v454
      %v487 = vpack.c.bf16 %v457, %v456
      %v488 = vpack.c.bf16 %v459, %v458
      %v489 = vpack.c.bf16 %v461, %v460
      %v490 = vpack.c.bf16 %v463, %v462
      %v491 = vpack.c.bf16 %v465, %v464
      %v492 = vpack.c.bf16 %v467, %v466
      %v493 = vpack.c.bf16 %v469, %v468
      %v494 = vpack.c.bf16 %v471, %v470
      %v495 = vpack.c.bf16 %v473, %v472
      %v496 = vpack.c.bf16 %v475, %v474
      %v497 = vpack.c.bf16 %v477, %v476
      %v498 = vpack.c.bf16 %v479, %v478
      %v499 = vpack.c.bf16 %v481, %v480
      %v500 = vpack.c.bf16 %v483, %v482
      %v501 = vpack.c.bf16 %v485, %v484
      %v503 = vunpack.c.l.b16 %v486
      %v504 = vunpack.c.h.b16 %v486
      %v505 = vpack.c.b16 %v503, %v503
      %v506 = vpack.c.b16 %v504, %v504
      %vm507 = vsmask.f32 1280
      %vm508 = vsmask.f32 5392
      %vm509 = vmor %vm507, %vm508
      %v511 = vshrl.u32 %v505, 16
      %v513 = vrot.slane %v511, 6
      %v514 = vshll.u32 %v505, 16
      %v516 = vrot.slane %v514, 7
      %v517 = vor.u32 %v513, %v516
      %v518 = vrot.slane %v517, 4
      %v520 = vshrl.u32 %v506, 16
      %v522 = vrot.slane %v520, 6
      %v523 = vshll.u32 %v506, 16
      %v525 = vrot.slane %v523, 7
      %v526 = vor.u32 %v522, %v525
      %v527 = vsel %vm509, %v518, %v526
      %v528 = vrot.slane %v526, 4
      %vm532 = vcmask 27649
      %vm533 = vsmask.f32 7942
      %vm534 = vmand %vm532, %vm533
      %v535 = vld [vmem:[#allocation2 + $0x8] sm:$0xe]
      %v536 = vsel %vm534, %v517, %v535
      %537 = vst [vmem:[#allocation2 + $0x8] sm:$0xe] %v536
      %538 = vst.msk [vmem:[#allocation2 + $0xc] sm:$0xf] %vm270, %v527
      %vm539 = vcmask 25600
      %vm540 = vmand %vm539, %vm507
      %v541 = vld [vmem:[#allocation2 + $0x10] sm:$0x3]
      %v542 = vsel %vm540, %v528, %v541
      %543 = vst [vmem:[#allocation2 + $0x10] sm:$0x3] %v542
      %v545 = vunpack.c.l.b16 %v487
      %v546 = vunpack.c.h.b16 %v487
      %v547 = vpack.c.b16 %v545, %v545
      %v548 = vpack.c.b16 %v546, %v546
      %vm549 = vsmask.f32 2304
      %vm550 = vsmask.f32 6416
      %vm551 = vmor %vm549, %vm550
      %v553 = vshrl.u32 %v547, 16
      %v555 = vrot.slane %v553, 5
      %v556 = vshll.u32 %v547, 16
      %v558 = vrot.slane %v556, 6
      %v559 = vor.u32 %v555, %v558
      %v560 = vrot.slane %v559, 4
      %v562 = vshrl.u32 %v548, 16
      %v564 = vrot.slane %v562, 5
      %v565 = vshll.u32 %v548, 16
      %v567 = vrot.slane %v565, 6
      %v568 = vor.u32 %v564, %v567
      %v569 = vsel %vm551, %v560, %v568
      %v570 = vrot.slane %v568, 4
      %vm574 = vcmask 27650
      %vm575 = vsmask.f32 7946
      %vm576 = vmand %vm574, %vm575
      %v577 = vld [vmem:[#allocation2 + $0x10] sm:$0xc]
      %v578 = vsel %vm576, %v559, %v577
      %579 = vst [vmem:[#allocation2 + $0x10] sm:$0xc] %v578
      %580 = vst.msk [vmem:[#allocation2 + $0x14] sm:$0xf] %vm270, %v569
      %vm581 = vcmask 26624
      %vm582 = vmand %vm581, %vm549
      %v583 = vld [vmem:[#allocation2 + $0x18] sm:$0x7]
      %v584 = vsel %vm582, %v570, %v583
      %585 = vst [vmem:[#allocation2 + $0x18] sm:$0x7] %v584
      %v587 = vunpack.c.l.b16 %v488
      %v588 = vunpack.c.h.b16 %v488
      %v589 = vpack.c.b16 %v587, %v587
      %v590 = vpack.c.b16 %v588, %v588
      %vm591 = vsmask.f32 3328
      %vm592 = vsmask.f32 7440
      %vm593 = vmor %vm591, %vm592
      %v595 = vshll.u32 %v589, 16
      %v597 = vrot.slane %v595, 5
      %v598 = vshrl.u32 %v589, 16
      %v600 = vrot.slane %v598, 4
      %v601 = vor.u32 %v600, %v597
      %v602 = vrot.slane %v601, 4
      %v604 = vshll.u32 %v590, 16
      %v606 = vrot.slane %v604, 5
      %v607 = vsel %vm593, %v602, %v606
      %v608 = vshrl.u32 %v590, 16
      %v610 = vrot.slane %v608, 4
      %v611 = vor.u32 %v610, %v606
      %v612 = vrot.slane %v611, 4
      %vm616 = vcmask 27651
      %vm617 = vsmask.f32 7950
      %vm618 = vmand %vm616, %vm617
      %v619 = vld [vmem:[#allocation2 + $0x18] sm:$0x8]
      %v620 = vsel %vm618, %v597, %v619
      %621 = vst [vmem:[#allocation2 + $0x18] sm:$0x8] %v620
      %622 = vst.msk [vmem:[#allocation2 + $0x1c] sm:$0xf] %vm270, %v607
      %vm623 = vcmask 27648
      %vm624 = vmand %vm623, %vm591
      %v625 = vld [vmem:[#allocation2 + $0x20] sm:$0xf]
      %v626 = vsel %vm624, %v612, %v625
      %627 = vst [vmem:[#allocation2 + $0x20] sm:$0xf] %v626
      %v629 = vunpack.c.l.b16 %v489
      %v630 = vunpack.c.h.b16 %v489
      %v631 = vpack.c.b16 %v629, %v629
      %v632 = vpack.c.b16 %v630, %v630
      %vm633 = vsmask.f32 256
      %vm634 = vsmask.f32 4368
      %vm635 = vmor %vm633, %vm634
      %v637 = vshrl.u32 %v631, 16
      %v639 = vrot.slane %v637, 7
      %v640 = vshll.u32 %v631, 16
      %v642 = vor.u32 %v639, %v640
      %v643 = vrot.slane %v639, 4
      %v645 = vshrl.u32 %v632, 16
      %v647 = vrot.slane %v645, 7
      %v648 = vshll.u32 %v632, 16
      %v650 = vor.u32 %v647, %v648
      %v651 = vsel %vm635, %v643, %v650
      %v652 = vrot.slane %v647, 4
      %vm656 = vsmask.f32 7938
      %vm657 = vmand %vm623, %vm656
      %v658 = vld [vmem:[#allocation2 + $0x24] sm:$0xf]
      %v659 = vsel %vm657, %v642, %v658
      %660 = vst [vmem:[#allocation2 + $0x24] sm:$0xf] %v659
      %661 = vst.msk [vmem:[#allocation2 + $0x28] sm:$0xf] %vm270, %v651
      %vm662 = vcmask 24576
      %vm663 = vmand %vm662, %vm633
      %v664 = vld [vmem:[#allocation2 + $0x2c] sm:$0x1]
      %v665 = vsel %vm663, %v652, %v664
      %666 = vst [vmem:[#allocation2 + $0x2c] sm:$0x1] %v665
      %v668 = vunpack.c.l.b16 %v490
      %v669 = vunpack.c.h.b16 %v490
      %v670 = vpack.c.b16 %v668, %v668
      %v671 = vpack.c.b16 %v669, %v669
      %v673 = vshrl.u32 %v670, 16
      %v675 = vrot.slane %v673, 6
      %v676 = vshll.u32 %v670, 16
      %v678 = vrot.slane %v676, 7
      %v679 = vor.u32 %v675, %v678
      %v680 = vrot.slane %v679, 4
      %v682 = vshrl.u32 %v671, 16
      %v684 = vrot.slane %v682, 6
      %v685 = vshll.u32 %v671, 16
      %v687 = vrot.slane %v685, 7
      %v688 = vor.u32 %v684, %v687
      %v689 = vsel %vm509, %v680, %v688
      %v690 = vrot.slane %v688, 4
      %v694 = vld [vmem:[#allocation2 + $0x2c] sm:$0xe]
      %v695 = vsel %vm534, %v679, %v694
      %696 = vst [vmem:[#allocation2 + $0x2c] sm:$0xe] %v695
      %697 = vst.msk [vmem:[#allocation2 + $0x30] sm:$0xf] %vm270, %v689
      %v698 = vld [vmem:[#allocation2 + $0x34] sm:$0x3]
      %v699 = vsel %vm540, %v690, %v698
      %700 = vst [vmem:[#allocation2 + $0x34] sm:$0x3] %v699
      %v702 = vunpack.c.l.b16 %v491
      %v703 = vunpack.c.h.b16 %v491
      %v704 = vpack.c.b16 %v702, %v702
      %v705 = vpack.c.b16 %v703, %v703
      %v707 = vshrl.u32 %v704, 16
      %v709 = vrot.slane %v707, 5
      %v710 = vshll.u32 %v704, 16
      %v712 = vrot.slane %v710, 6
      %v713 = vor.u32 %v709, %v712
      %v714 = vrot.slane %v713, 4
      %v716 = vshrl.u32 %v705, 16
      %v718 = vrot.slane %v716, 5
      %v719 = vshll.u32 %v705, 16
      %v721 = vrot.slane %v719, 6
      %v722 = vor.u32 %v718, %v721
      %v723 = vsel %vm551, %v714, %v722
      %v724 = vrot.slane %v722, 4
      %v728 = vld [vmem:[#allocation2 + $0x34] sm:$0xc]
      %v729 = vsel %vm576, %v713, %v728
      %730 = vst [vmem:[#allocation2 + $0x34] sm:$0xc] %v729
      %731 = vst.msk [vmem:[#allocation2 + $0x38] sm:$0xf] %vm270, %v723
      %v732 = vld [vmem:[#allocation2 + $0x3c] sm:$0x7]
      %v733 = vsel %vm582, %v724, %v732
      %734 = vst [vmem:[#allocation2 + $0x3c] sm:$0x7] %v733
      %v736 = vunpack.c.l.b16 %v492
      %v737 = vunpack.c.h.b16 %v492
      %v738 = vpack.c.b16 %v736, %v736
      %v739 = vpack.c.b16 %v737, %v737
      %v741 = vshll.u32 %v738, 16
      %v743 = vrot.slane %v741, 5
      %v744 = vshrl.u32 %v738, 16
      %v746 = vrot.slane %v744, 4
      %v747 = vor.u32 %v746, %v743
      %v748 = vrot.slane %v747, 4
      %v750 = vshll.u32 %v739, 16
      %v752 = vrot.slane %v750, 5
      %v753 = vsel %vm593, %v748, %v752
      %v754 = vshrl.u32 %v739, 16
      %v756 = vrot.slane %v754, 4
      %v757 = vor.u32 %v756, %v752
      %v758 = vrot.slane %v757, 4
      %v762 = vld [vmem:[#allocation2 + $0x3c] sm:$0x8]
      %v763 = vsel %vm618, %v743, %v762
      %764 = vst [vmem:[#allocation2 + $0x3c] sm:$0x8] %v763
      %765 = vst.msk [vmem:[#allocation2 + $0x40] sm:$0xf] %vm270, %v753
      %v766 = vld [vmem:[#allocation2 + $0x44] sm:$0xf]
      %v767 = vsel %vm624, %v758, %v766
      %768 = vst [vmem:[#allocation2 + $0x44] sm:$0xf] %v767
      %v770 = vunpack.c.l.b16 %v493
      %v771 = vunpack.c.h.b16 %v493
      %v772 = vpack.c.b16 %v770, %v770
      %v773 = vpack.c.b16 %v771, %v771
      %v775 = vshrl.u32 %v772, 16
      %v777 = vrot.slane %v775, 7
      %v778 = vshll.u32 %v772, 16
      %v780 = vor.u32 %v777, %v778
      %v781 = vrot.slane %v777, 4
      %v783 = vshrl.u32 %v773, 16
      %v785 = vrot.slane %v783, 7
      %v786 = vshll.u32 %v773, 16
      %v788 = vor.u32 %v785, %v786
      %v789 = vsel %vm635, %v781, %v788
      %v790 = vrot.slane %v785, 4
      %v794 = vld [vmem:[#allocation2 + $0x48] sm:$0xf]
      %v795 = vsel %vm657, %v780, %v794
      %796 = vst [vmem:[#allocation2 + $0x48] sm:$0xf] %v795
      %797 = vst.msk [vmem:[#allocation2 + $0x4c] sm:$0xf] %vm270, %v789
      %v798 = vld [vmem:[#allocation2 + $0x50] sm:$0x1]
      %v799 = vsel %vm663, %v790, %v798
      %800 = vst [vmem:[#allocation2 + $0x50] sm:$0x1] %v799
      %v802 = vunpack.c.l.b16 %v494
      %v803 = vunpack.c.h.b16 %v494
      %v804 = vpack.c.b16 %v802, %v802
      %v805 = vpack.c.b16 %v803, %v803
      %v807 = vshrl.u32 %v804, 16
      %v809 = vrot.slane %v807, 6
      %v810 = vshll.u32 %v804, 16
      %v812 = vrot.slane %v810, 7
      %v813 = vor.u32 %v809, %v812
      %v814 = vrot.slane %v813, 4
      %v816 = vshrl.u32 %v805, 16
      %v818 = vrot.slane %v816, 6
      %v819 = vshll.u32 %v805, 16
      %v821 = vrot.slane %v819, 7
      %v822 = vor.u32 %v818, %v821
      %v823 = vsel %vm509, %v814, %v822
      %v824 = vrot.slane %v822, 4
      %v828 = vld [vmem:[#allocation2 + $0x50] sm:$0xe]
      %v829 = vsel %vm534, %v813, %v828
      %830 = vst [vmem:[#allocation2 + $0x50] sm:$0xe] %v829
      %831 = vst.msk [vmem:[#allocation2 + $0x54] sm:$0xf] %vm270, %v823
      %v832 = vld [vmem:[#allocation2 + $0x58] sm:$0x3]
      %v833 = vsel %vm540, %v824, %v832
      %834 = vst [vmem:[#allocation2 + $0x58] sm:$0x3] %v833
      %v836 = vunpack.c.l.b16 %v495
      %v837 = vunpack.c.h.b16 %v495
      %v838 = vpack.c.b16 %v836, %v836
      %v839 = vpack.c.b16 %v837, %v837
      %v841 = vshrl.u32 %v838, 16
      %v843 = vrot.slane %v841, 5
      %v844 = vshll.u32 %v838, 16
      %v846 = vrot.slane %v844, 6
      %v847 = vor.u32 %v843, %v846
      %v848 = vrot.slane %v847, 4
      %v850 = vshrl.u32 %v839, 16
      %v852 = vrot.slane %v850, 5
      %v853 = vshll.u32 %v839, 16
      %v855 = vrot.slane %v853, 6
      %v856 = vor.u32 %v852, %v855
      %v857 = vsel %vm551, %v848, %v856
      %v858 = vrot.slane %v856, 4
      %v862 = vld [vmem:[#allocation2 + $0x58] sm:$0xc]
      %v863 = vsel %vm576, %v847, %v862
      %864 = vst [vmem:[#allocation2 + $0x58] sm:$0xc] %v863
      %865 = vst.msk [vmem:[#allocation2 + $0x5c] sm:$0xf] %vm270, %v857
      %v866 = vld [vmem:[#allocation2 + $0x60] sm:$0x7]
      %v867 = vsel %vm582, %v858, %v866
      %868 = vst [vmem:[#allocation2 + $0x60] sm:$0x7] %v867
      %v870 = vunpack.c.l.b16 %v496
      %v871 = vunpack.c.h.b16 %v496
      %v872 = vpack.c.b16 %v870, %v870
      %v873 = vpack.c.b16 %v871, %v871
      %v875 = vshll.u32 %v872, 16
      %v877 = vrot.slane %v875, 5
      %v878 = vshrl.u32 %v872, 16
      %v880 = vrot.slane %v878, 4
      %v881 = vor.u32 %v880, %v877
      %v882 = vrot.slane %v881, 4
      %v884 = vshll.u32 %v873, 16
      %v886 = vrot.slane %v884, 5
      %v887 = vsel %vm593, %v882, %v886
      %v888 = vshrl.u32 %v873, 16
      %v890 = vrot.slane %v888, 4
      %v891 = vor.u32 %v890, %v886
      %v892 = vrot.slane %v891, 4
      %v896 = vld [vmem:[#allocation2 + $0x60] sm:$0x8]
      %v897 = vsel %vm618, %v877, %v896
      %898 = vst [vmem:[#allocation2 + $0x60] sm:$0x8] %v897
      %899 = vst.msk [vmem:[#allocation2 + $0x64] sm:$0xf] %vm270, %v887
      %v900 = vld [vmem:[#allocation2 + $0x68] sm:$0xf]
      %v901 = vsel %vm624, %v892, %v900
      %902 = vst [vmem:[#allocation2 + $0x68] sm:$0xf] %v901
      %v904 = vunpack.c.l.b16 %v497
      %v905 = vunpack.c.h.b16 %v497
      %v906 = vpack.c.b16 %v904, %v904
      %v907 = vpack.c.b16 %v905, %v905
      %v909 = vshrl.u32 %v906, 16
      %v911 = vrot.slane %v909, 7
      %v912 = vshll.u32 %v906, 16
      %v914 = vor.u32 %v911, %v912
      %v915 = vrot.slane %v911, 4
      %v917 = vshrl.u32 %v907, 16
      %v919 = vrot.slane %v917, 7
      %v920 = vshll.u32 %v907, 16
      %v922 = vor.u32 %v919, %v920
      %v923 = vsel %vm635, %v915, %v922
      %v924 = vrot.slane %v919, 4
      %v928 = vld [vmem:[#allocation2 + $0x6c] sm:$0xf]
      %v929 = vsel %vm657, %v914, %v928
      %930 = vst [vmem:[#allocation2 + $0x6c] sm:$0xf] %v929
      %931 = vst.msk [vmem:[#allocation2 + $0x70] sm:$0xf] %vm270, %v923
      %v932 = vld [vmem:[#allocation2 + $0x74] sm:$0x1]
      %v933 = vsel %vm663, %v924, %v932
      %934 = vst [vmem:[#allocation2 + $0x74] sm:$0x1] %v933
      %v936 = vunpack.c.l.b16 %v498
      %v937 = vunpack.c.h.b16 %v498
      %v938 = vpack.c.b16 %v936, %v936
      %v939 = vpack.c.b16 %v937, %v937
      %v941 = vshrl.u32 %v938, 16
      %v943 = vrot.slane %v941, 6
      %v944 = vshll.u32 %v938, 16
      %v946 = vrot.slane %v944, 7
      %v947 = vor.u32 %v943, %v946
      %v948 = vrot.slane %v947, 4
      %v950 = vshrl.u32 %v939, 16
      %v952 = vrot.slane %v950, 6
      %v953 = vshll.u32 %v939, 16
      %v955 = vrot.slane %v953, 7
      %v956 = vor.u32 %v952, %v955
      %v957 = vsel %vm509, %v948, %v956
      %v958 = vrot.slane %v956, 4
      %v962 = vld [vmem:[#allocation2 + $0x74] sm:$0xe]
      %v963 = vsel %vm534, %v947, %v962
      %964 = vst [vmem:[#allocation2 + $0x74] sm:$0xe] %v963
      %965 = vst.msk [vmem:[#allocation2 + $0x78] sm:$0xf] %vm270, %v957
      %v966 = vld [vmem:[#allocation2 + $0x7c] sm:$0x3]
      %v967 = vsel %vm540, %v958, %v966
      %968 = vst [vmem:[#allocation2 + $0x7c] sm:$0x3] %v967
      %v970 = vunpack.c.l.b16 %v499
      %v971 = vunpack.c.h.b16 %v499
      %v972 = vpack.c.b16 %v970, %v970
      %v973 = vpack.c.b16 %v971, %v971
      %v975 = vshrl.u32 %v972, 16
      %v977 = vrot.slane %v975, 5
      %v978 = vshll.u32 %v972, 16
      %v980 = vrot.slane %v978, 6
      %v981 = vor.u32 %v977, %v980
      %v982 = vrot.slane %v981, 4
      %v984 = vshrl.u32 %v973, 16
      %v986 = vrot.slane %v984, 5
      %v987 = vshll.u32 %v973, 16
      %v989 = vrot.slane %v987, 6
      %v990 = vor.u32 %v986, %v989
      %v991 = vsel %vm551, %v982, %v990
      %v992 = vrot.slane %v990, 4
      %v996 = vld [vmem:[#allocation2 + $0x7c] sm:$0xc]
      %v997 = vsel %vm576, %v981, %v996
      %998 = vst [vmem:[#allocation2 + $0x7c] sm:$0xc] %v997
      %999 = vst.msk [vmem:[#allocation2 + $0x80] sm:$0xf] %vm270, %v991
      %v1000 = vld [vmem:[#allocation2 + $0x84] sm:$0x7]
      %v1001 = vsel %vm582, %v992, %v1000
      %1002 = vst [vmem:[#allocation2 + $0x84] sm:$0x7] %v1001
      %v1004 = vunpack.c.l.b16 %v500
      %v1005 = vunpack.c.h.b16 %v500
      %v1006 = vpack.c.b16 %v1004, %v1004
      %v1007 = vpack.c.b16 %v1005, %v1005
      %v1009 = vshll.u32 %v1006, 16
      %v1011 = vrot.slane %v1009, 5
      %v1012 = vshrl.u32 %v1006, 16
      %v1014 = vrot.slane %v1012, 4
      %v1015 = vor.u32 %v1014, %v1011
      %v1016 = vrot.slane %v1015, 4
      %v1018 = vshll.u32 %v1007, 16
      %v1020 = vrot.slane %v1018, 5
      %v1021 = vsel %vm593, %v1016, %v1020
      %v1022 = vshrl.u32 %v1007, 16
      %v1024 = vrot.slane %v1022, 4
      %v1025 = vor.u32 %v1024, %v1020
      %v1026 = vrot.slane %v1025, 4
      %v1030 = vld [vmem:[#allocation2 + $0x84] sm:$0x8]
      %v1031 = vsel %vm618, %v1011, %v1030
      %1032 = vst [vmem:[#allocation2 + $0x84] sm:$0x8] %v1031
      %1033 = vst.msk [vmem:[#allocation2 + $0x88] sm:$0xf] %vm270, %v1021
      %v1034 = vld [vmem:[#allocation2 + $0x8c] sm:$0xf]
      %v1035 = vsel %vm624, %v1026, %v1034
      %1036 = vst [vmem:[#allocation2 + $0x8c] sm:$0xf] %v1035
      %v1038 = vunpack.c.l.b16 %v501
      %v1039 = vunpack.c.h.b16 %v501
      %v1040 = vpack.c.b16 %v1038, %v1038
      %v1041 = vpack.c.b16 %v1039, %v1039
      %v1043 = vshrl.u32 %v1040, 16
      %v1045 = vrot.slane %v1043, 7
      %v1046 = vshll.u32 %v1040, 16
      %v1048 = vor.u32 %v1045, %v1046
      %v1049 = vrot.slane %v1045, 4
      %v1051 = vshrl.u32 %v1041, 16
      %v1053 = vrot.slane %v1051, 7
      %v1054 = vshll.u32 %v1041, 16
      %v1056 = vor.u32 %v1053, %v1054
      %v1057 = vsel %vm635, %v1049, %v1056
      %v1058 = vrot.slane %v1053, 4
      %v1062 = vld [vmem:[#allocation2 + $0x90] sm:$0xf]
      %v1063 = vsel %vm657, %v1048, %v1062
      %1064 = vst [vmem:[#allocation2 + $0x90] sm:$0xf] %v1063
      %1065 = vst.msk [vmem:[#allocation2 + $0x94] sm:$0xf] %vm270, %v1057
      %v1066 = vld [vmem:[#allocation2 + $0x98] sm:$0x1]
      %v1067 = vsel %vm663, %v1058, %v1066
      %1068 = vst [vmem:[#allocation2 + $0x98] sm:$0x1] %v1067
      %v1069 = vld [vmem:[#allocation2] sm:$0xf]
      %v1070 = vld [vmem:[#allocation2 + $0x4] sm:$0xf]
      %v1071 = vld [vmem:[#allocation2 + $0x8] sm:$0xf]
      %v1072 = vld [vmem:[#allocation2 + $0xc] sm:$0xf]
      %v1073 = vld [vmem:[#allocation2 + $0x10] sm:$0xf]
      %v1074 = vld [vmem:[#allocation2 + $0x14] sm:$0xf]
      %v1075 = vld [vmem:[#allocation2 + $0x18] sm:$0xf]
      %v1076 = vld [vmem:[#allocation2 + $0x1c] sm:$0xf]
      %v1077 = vld [vmem:[#allocation2 + $0x20] sm:$0xf]
      %v1078 = vld [vmem:[#allocation2 + $0x24] sm:$0xf]
      %v1079 = vld [vmem:[#allocation2 + $0x28] sm:$0xf]
      %v1080 = vld [vmem:[#allocation2 + $0x2c] sm:$0xf]
      %v1081 = vld [vmem:[#allocation2 + $0x30] sm:$0xf]
      %v1082 = vld [vmem:[#allocation2 + $0x34] sm:$0xf]
      %v1083 = vld [vmem:[#allocation2 + $0x38] sm:$0xf]
      %v1084 = vld [vmem:[#allocation2 + $0x3c] sm:$0xf]
      %v1085 = vld [vmem:[#allocation2 + $0x40] sm:$0xf]
      %v1086 = vld [vmem:[#allocation2 + $0x44] sm:$0xf]
      %v1087 = vld [vmem:[#allocation2 + $0x48] sm:$0x1]
      %v1088 = vld [vmem:[#allocation2] sm:$0xe]
      %v1089 = vld [vmem:[#allocation2 + $0x8] sm:$0xe]
      %v1090 = vld [vmem:[#allocation2 + $0x48] sm:$0xf]
      %v1091 = vld [vmem:[#allocation2 + $0x4c] sm:$0xf]
      %v1092 = vld [vmem:[#allocation2 + $0x50] sm:$0x1]
      %v1093 = vld [vmem:[#allocation2 + $0x50] sm:$0x3]
      %v1094 = vld [vmem:[#allocation2 + $0x8] sm:$0xc]
      %v1095 = vld [vmem:[#allocation2 + $0x10] sm:$0xc]
      %v1096 = vld [vmem:[#allocation2 + $0x50] sm:$0xf]
      %v1097 = vld [vmem:[#allocation2 + $0x54] sm:$0xf]
      %v1098 = vld [vmem:[#allocation2 + $0x58] sm:$0x3]
      %v1099 = vld [vmem:[#allocation2 + $0x58] sm:$0x7]
      %v1100 = vld [vmem:[#allocation2 + $0x10] sm:$0x8]
      %v1119 = vunpack.c.l.b16 %v1069
      %v1120 = vunpack.c.l.b16 %v1070
      %v1121 = vunpack.c.l.b16 %v1071
      %v1122 = vunpack.c.l.b16 %v1072
      %v1123 = vunpack.c.l.b16 %v1073
      %v1124 = vunpack.c.l.b16 %v1074
      %v1125 = vunpack.c.l.b16 %v1075
      %v1126 = vunpack.c.l.b16 %v1076
      %v1127 = vunpack.c.l.b16 %v1077
      %v1128 = vunpack.c.l.b16 %v1078
      %v1129 = vunpack.c.l.b16 %v1079
      %v1130 = vunpack.c.l.b16 %v1080
      %v1131 = vunpack.c.l.b16 %v1081
      %v1132 = vunpack.c.l.b16 %v1082
      %v1133 = vunpack.c.l.b16 %v1083
      %v1134 = vunpack.c.l.b16 %v1084
      %v1135 = vunpack.c.l.b16 %v1085
      %v1136 = vunpack.c.l.b16 %v1086
      %v1137 = vpack.c.b16 %v1120, %v1119
      %v1138 = vpack.c.b16 %v1122, %v1121
      %v1139 = vpack.c.b16 %v1124, %v1123
      %v1140 = vpack.c.b16 %v1126, %v1125
      %v1141 = vpack.c.b16 %v1128, %v1127
      %v1142 = vpack.c.b16 %v1130, %v1129
      %v1143 = vpack.c.b16 %v1132, %v1131
      %v1144 = vpack.c.b16 %v1134, %v1133
      %v1145 = vpack.c.b16 %v1136, %v1135
      %v1147 = vunpack.c.l.b16 %v1087
      %v1148 = vpack.c.b16 %v1147, %v1147
      %vm1149 = vsmask.f32 7424
      %v1151 = vshrl.u32 %v1137, 16
      %v1153 = vshll.u32 %v1137, 16
      %v1155 = vrot.slane %v1153, 1
      %v1156 = vor.u32 %v1151, %v1155
      %v1158 = vshll.u32 %v1138, 16
      %v1160 = vrot.slane %v1158, 1
      %v1161 = vsel %vm1149, %v1156, %v1160
      %v1162 = vshrl.u32 %v1138, 16
      %v1164 = vor.u32 %v1162, %v1160
      %v1166 = vshll.u32 %v1139, 16
      %v1168 = vrot.slane %v1166, 1
      %v1169 = vsel %vm1149, %v1164, %v1168
      %v1170 = vshrl.u32 %v1139, 16
      %v1172 = vor.u32 %v1170, %v1168
      %v1174 = vshll.u32 %v1140, 16
      %v1176 = vrot.slane %v1174, 1
      %v1177 = vsel %vm1149, %v1172, %v1176
      %v1178 = vshrl.u32 %v1140, 16
      %v1180 = vor.u32 %v1178, %v1176
      %v1182 = vshll.u32 %v1141, 16
      %v1184 = vrot.slane %v1182, 1
      %v1185 = vsel %vm1149, %v1180, %v1184
      %v1186 = vshrl.u32 %v1141, 16
      %v1188 = vor.u32 %v1186, %v1184
      %v1190 = vshll.u32 %v1142, 16
      %v1192 = vrot.slane %v1190, 1
      %v1193 = vsel %vm1149, %v1188, %v1192
      %v1194 = vshrl.u32 %v1142, 16
      %v1196 = vor.u32 %v1194, %v1192
      %v1198 = vshll.u32 %v1143, 16
      %v1200 = vrot.slane %v1198, 1
      %v1201 = vsel %vm1149, %v1196, %v1200
      %v1202 = vshrl.u32 %v1143, 16
      %v1204 = vor.u32 %v1202, %v1200
      %v1206 = vshll.u32 %v1144, 16
      %v1208 = vrot.slane %v1206, 1
      %v1209 = vsel %vm1149, %v1204, %v1208
      %v1210 = vshrl.u32 %v1144, 16
      %v1212 = vor.u32 %v1210, %v1208
      %v1214 = vshll.u32 %v1145, 16
      %v1216 = vrot.slane %v1214, 1
      %v1217 = vsel %vm1149, %v1212, %v1216
      %v1218 = vshrl.u32 %v1145, 16
      %v1220 = vor.u32 %v1218, %v1216
      %v1222 = vshll.u32 %v1148, 16
      %v1224 = vrot.slane %v1222, 1
      %v1225 = vsel %vm1149, %v1220, %v1224
      %1226 = vrot.lane.b32.xlu0 %v1161, 4
      %v1227 = vpop.permute.xlu0 %1226
      %1228 = vrot.lane.b32.xlu0 %v1169, 4
      %v1229 = vpop.permute.xlu0 %1228
      %1230 = vrot.lane.b32.xlu0 %v1177, 4
      %v1231 = vpop.permute.xlu0 %1230
      %1232 = vrot.lane.b32.xlu0 %v1185, 4
      %v1233 = vpop.permute.xlu0 %1232
      %1234 = vrot.lane.b32.xlu0 %v1193, 4
      %v1235 = vpop.permute.xlu0 %1234
      %1236 = vrot.lane.b32.xlu0 %v1201, 4
      %v1237 = vpop.permute.xlu0 %1236
      %1238 = vrot.lane.b32.xlu0 %v1209, 4
      %v1239 = vpop.permute.xlu0 %1238
      %1240 = vrot.lane.b32.xlu0 %v1217, 4
      %v1241 = vpop.permute.xlu0 %1240
      %1242 = vrot.lane.b32.xlu0 %v1225, 4
      %v1243 = vpop.permute.xlu0 %1242
      %v1245 = vunpack.c.l.b16 %v1088
      %v1246 = vpack.c.b16 %v1120, %v1245
      %vm1247 = vcmask 1046528
      %v1248 = vrot.slane %v1246, 1
      %v1249 = vrot.slane %v1138, 1
      %v1250 = vsel %vm1247, %v1248, %v1249
      %v1251 = vrot.slane %v1139, 1
      %v1252 = vsel %vm1247, %v1249, %v1251
      %v1253 = vrot.slane %v1140, 1
      %v1254 = vsel %vm1247, %v1251, %v1253
      %v1255 = vrot.slane %v1141, 1
      %v1256 = vsel %vm1247, %v1253, %v1255
      %v1257 = vrot.slane %v1142, 1
      %v1258 = vsel %vm1247, %v1255, %v1257
      %v1259 = vrot.slane %v1143, 1
      %v1260 = vsel %vm1247, %v1257, %v1259
      %v1261 = vrot.slane %v1144, 1
      %v1262 = vsel %vm1247, %v1259, %v1261
      %v1263 = vrot.slane %v1145, 1
      %v1264 = vsel %vm1247, %v1261, %v1263
      %v1265 = vrot.slane %v1148, 1
      %v1266 = vsel %vm1247, %v1263, %v1265
      %1267 = vrot.lane.b32.xlu0 %v1250, 8
      %v1268 = vpop.permute.xlu0 %1267
      %1269 = vrot.lane.b32.xlu0 %v1252, 8
      %v1270 = vpop.permute.xlu0 %1269
      %1271 = vrot.lane.b32.xlu0 %v1254, 8
      %v1272 = vpop.permute.xlu0 %1271
      %1273 = vrot.lane.b32.xlu0 %v1256, 8
      %v1274 = vpop.permute.xlu0 %1273
      %1275 = vrot.lane.b32.xlu0 %v1258, 8
      %v1276 = vpop.permute.xlu0 %1275
      %1277 = vrot.lane.b32.xlu0 %v1260, 8
      %v1278 = vpop.permute.xlu0 %1277
      %1279 = vrot.lane.b32.xlu0 %v1262, 8
      %v1280 = vpop.permute.xlu0 %1279
      %1281 = vrot.lane.b32.xlu0 %v1264, 8
      %v1282 = vpop.permute.xlu0 %1281
      %1283 = vrot.lane.b32.xlu0 %v1266, 8
      %v1284 = vpop.permute.xlu0 %1283
      %v1289 = vunpack.c.l.b16 %v1089
      %v1290 = vunpack.c.l.b16 %v1090
      %v1291 = vunpack.c.l.b16 %v1091
      %v1292 = vunpack.c.l.b16 %v1092
      %v1293 = vpack.c.b16 %v1122, %v1289
      %v1294 = vpack.c.b16 %v1291, %v1290
      %v1295 = vpack.c.b16 %v1292, %v1292
      %v1296 = vrot.slane %v1293, 1
      %v1297 = vsel %vm1247, %v1296, %v1251
      %v1298 = vrot.slane %v1294, 1
      %v1299 = vsel %vm1247, %v1263, %v1298
      %v1300 = vrot.slane %v1295, 1
      %v1301 = vsel %vm1247, %v1298, %v1300
      %1302 = vrot.lane.b32.xlu0 %v1297, 12
      %v1303 = vpop.permute.xlu0 %1302
      %1304 = vrot.lane.b32.xlu0 %v1254, 12
      %v1305 = vpop.permute.xlu0 %1304
      %1306 = vrot.lane.b32.xlu0 %v1256, 12
      %v1307 = vpop.permute.xlu0 %1306
      %1308 = vrot.lane.b32.xlu0 %v1258, 12
      %v1309 = vpop.permute.xlu0 %1308
      %1310 = vrot.lane.b32.xlu0 %v1260, 12
      %v1311 = vpop.permute.xlu0 %1310
      %1312 = vrot.lane.b32.xlu0 %v1262, 12
      %v1313 = vpop.permute.xlu0 %1312
      %1314 = vrot.lane.b32.xlu0 %v1264, 12
      %v1315 = vpop.permute.xlu0 %1314
      %1316 = vrot.lane.b32.xlu0 %v1299, 12
      %v1317 = vpop.permute.xlu0 %1316
      %1318 = vrot.lane.b32.xlu0 %v1301, 12
      %v1319 = vpop.permute.xlu0 %1318
      %v1321 = vunpack.c.l.b16 %v1093
      %v1322 = vpack.c.b16 %v1321, %v1321
      %vm1323 = vsmask.f32 6400
      %v1325 = vshrl.u32 %v1293, 16
      %v1327 = vrot.slane %v1325, 1
      %v1328 = vshll.u32 %v1293, 16
      %v1330 = vrot.slane %v1328, 2
      %v1331 = vor.u32 %v1327, %v1330
      %v1332 = vrot.slane %v1170, 1
      %v1333 = vrot.slane %v1166, 2
      %v1334 = vor.u32 %v1332, %v1333
      %v1335 = vsel %vm1323, %v1331, %v1334
      %v1336 = vrot.slane %v1178, 1
      %v1337 = vrot.slane %v1174, 2
      %v1338 = vor.u32 %v1336, %v1337
      %v1339 = vsel %vm1323, %v1334, %v1338
      %v1340 = vrot.slane %v1186, 1
      %v1341 = vrot.slane %v1182, 2
      %v1342 = vor.u32 %v1340, %v1341
      %v1343 = vsel %vm1323, %v1338, %v1342
      %v1344 = vrot.slane %v1194, 1
      %v1345 = vrot.slane %v1190, 2
      %v1346 = vor.u32 %v1344, %v1345
      %v1347 = vsel %vm1323, %v1342, %v1346
      %v1348 = vrot.slane %v1202, 1
      %v1349 = vrot.slane %v1198, 2
      %v1350 = vor.u32 %v1348, %v1349
      %v1351 = vsel %vm1323, %v1346, %v1350
      %v1352 = vrot.slane %v1210, 1
      %v1353 = vrot.slane %v1206, 2
      %v1354 = vor.u32 %v1352, %v1353
      %v1355 = vsel %vm1323, %v1350, %v1354
      %v1356 = vrot.slane %v1218, 1
      %v1357 = vrot.slane %v1214, 2
      %v1358 = vor.u32 %v1356, %v1357
      %v1359 = vsel %vm1323, %v1354, %v1358
      %v1361 = vshrl.u32 %v1294, 16
      %v1363 = vrot.slane %v1361, 1
      %v1364 = vshll.u32 %v1294, 16
      %v1366 = vrot.slane %v1364, 2
      %v1367 = vor.u32 %v1363, %v1366
      %v1368 = vsel %vm1323, %v1358, %v1367
      %v1370 = vshrl.u32 %v1322, 16
      %v1372 = vrot.slane %v1370, 1
      %v1373 = vshll.u32 %v1322, 16
      %v1375 = vrot.slane %v1373, 2
      %v1376 = vor.u32 %v1372, %v1375
      %v1377 = vsel %vm1323, %v1367, %v1376
      %1378 = vrot.lane.b32.xlu0 %v1335, 16
      %v1379 = vpop.permute.xlu0 %1378
      %1380 = vrot.lane.b32.xlu0 %v1339, 16
      %v1381 = vpop.permute.xlu0 %1380
      %1382 = vrot.lane.b32.xlu0 %v1343, 16
      %v1383 = vpop.permute.xlu0 %1382
      %1384 = vrot.lane.b32.xlu0 %v1347, 16
      %v1385 = vpop.permute.xlu0 %1384
      %1386 = vrot.lane.b32.xlu0 %v1351, 16
      %v1387 = vpop.permute.xlu0 %1386
      %1388 = vrot.lane.b32.xlu0 %v1355, 16
      %v1389 = vpop.permute.xlu0 %1388
      %1390 = vrot.lane.b32.xlu0 %v1359, 16
      %v1391 = vpop.permute.xlu0 %1390
      %1392 = vrot.lane.b32.xlu0 %v1368, 16
      %v1393 = vpop.permute.xlu0 %1392
      %1394 = vrot.lane.b32.xlu0 %v1377, 16
      %v1395 = vpop.permute.xlu0 %1394
      %v1397 = vunpack.c.l.b16 %v1094
      %v1398 = vpack.c.b16 %v1122, %v1397
      %vm1399 = vcmask 1045504
      %v1400 = vrot.slane %v1398, 2
      %v1401 = vrot.slane %v1139, 2
      %v1402 = vsel %vm1399, %v1400, %v1401
      %v1403 = vrot.slane %v1140, 2
      %v1404 = vsel %vm1399, %v1401, %v1403
      %v1405 = vrot.slane %v1141, 2
      %v1406 = vsel %vm1399, %v1403, %v1405
      %v1407 = vrot.slane %v1142, 2
      %v1408 = vsel %vm1399, %v1405, %v1407
      %v1409 = vrot.slane %v1143, 2
      %v1410 = vsel %vm1399, %v1407, %v1409
      %v1411 = vrot.slane %v1144, 2
      %v1412 = vsel %vm1399, %v1409, %v1411
      %v1413 = vrot.slane %v1145, 2
      %v1414 = vsel %vm1399, %v1411, %v1413
      %v1415 = vrot.slane %v1294, 2
      %v1416 = vsel %vm1399, %v1413, %v1415
      %v1417 = vrot.slane %v1322, 2
      %v1418 = vsel %vm1399, %v1415, %v1417
      %1419 = vrot.lane.b32.xlu0 %v1402, 20
      %v1420 = vpop.permute.xlu0 %1419
      %1421 = vrot.lane.b32.xlu0 %v1404, 20
      %v1422 = vpop.permute.xlu0 %1421
      %1423 = vrot.lane.b32.xlu0 %v1406, 20
      %v1424 = vpop.permute.xlu0 %1423
      %1425 = vrot.lane.b32.xlu0 %v1408, 20
      %v1426 = vpop.permute.xlu0 %1425
      %1427 = vrot.lane.b32.xlu0 %v1410, 20
      %v1428 = vpop.permute.xlu0 %1427
      %1429 = vrot.lane.b32.xlu0 %v1412, 20
      %v1430 = vpop.permute.xlu0 %1429
      %1431 = vrot.lane.b32.xlu0 %v1414, 20
      %v1432 = vpop.permute.xlu0 %1431
      %1433 = vrot.lane.b32.xlu0 %v1416, 20
      %v1434 = vpop.permute.xlu0 %1433
      %1435 = vrot.lane.b32.xlu0 %v1418, 20
      %v1436 = vpop.permute.xlu0 %1435
      %v1441 = vunpack.c.l.b16 %v1095
      %v1442 = vunpack.c.l.b16 %v1096
      %v1443 = vunpack.c.l.b16 %v1097
      %v1444 = vunpack.c.l.b16 %v1098
      %v1445 = vpack.c.b16 %v1124, %v1441
      %v1446 = vpack.c.b16 %v1443, %v1442
      %v1447 = vpack.c.b16 %v1444, %v1444
      %v1448 = vrot.slane %v1445, 2
      %v1449 = vsel %vm1399, %v1448, %v1403
      %v1450 = vrot.slane %v1446, 2
      %v1451 = vsel %vm1399, %v1415, %v1450
      %v1452 = vrot.slane %v1447, 2
      %v1453 = vsel %vm1399, %v1450, %v1452
      %1454 = vrot.lane.b32.xlu0 %v1449, 24
      %v1455 = vpop.permute.xlu0 %1454
      %1456 = vrot.lane.b32.xlu0 %v1406, 24
      %v1457 = vpop.permute.xlu0 %1456
      %1458 = vrot.lane.b32.xlu0 %v1408, 24
      %v1459 = vpop.permute.xlu0 %1458
      %1460 = vrot.lane.b32.xlu0 %v1410, 24
      %v1461 = vpop.permute.xlu0 %1460
      %1462 = vrot.lane.b32.xlu0 %v1412, 24
      %v1463 = vpop.permute.xlu0 %1462
      %1464 = vrot.lane.b32.xlu0 %v1414, 24
      %v1465 = vpop.permute.xlu0 %1464
      %1466 = vrot.lane.b32.xlu0 %v1416, 24
      %v1467 = vpop.permute.xlu0 %1466
      %1468 = vrot.lane.b32.xlu0 %v1451, 24
      %v1469 = vpop.permute.xlu0 %1468
      %1470 = vrot.lane.b32.xlu0 %v1453, 24
      %v1471 = vpop.permute.xlu0 %1470
      %v1473 = vunpack.c.l.b16 %v1099
      %v1474 = vpack.c.b16 %v1473, %v1473
      %vm1475 = vsmask.f32 5376
      %v1477 = vshrl.u32 %v1445, 16
      %v1479 = vrot.slane %v1477, 2
      %v1480 = vshll.u32 %v1445, 16
      %v1482 = vrot.slane %v1480, 3
      %v1483 = vor.u32 %v1479, %v1482
      %v1484 = vrot.slane %v1178, 2
      %v1485 = vrot.slane %v1174, 3
      %v1486 = vor.u32 %v1484, %v1485
      %v1487 = vsel %vm1475, %v1483, %v1486
      %v1488 = vrot.slane %v1186, 2
      %v1489 = vrot.slane %v1182, 3
      %v1490 = vor.u32 %v1488, %v1489
      %v1491 = vsel %vm1475, %v1486, %v1490
      %v1492 = vrot.slane %v1194, 2
      %v1493 = vrot.slane %v1190, 3
      %v1494 = vor.u32 %v1492, %v1493
      %v1495 = vsel %vm1475, %v1490, %v1494
      %v1496 = vrot.slane %v1202, 2
      %v1497 = vrot.slane %v1198, 3
      %v1498 = vor.u32 %v1496, %v1497
      %v1499 = vsel %vm1475, %v1494, %v1498
      %v1500 = vrot.slane %v1210, 2
      %v1501 = vrot.slane %v1206, 3
      %v1502 = vor.u32 %v1500, %v1501
      %v1503 = vsel %vm1475, %v1498, %v1502
      %v1504 = vrot.slane %v1218, 2
      %v1505 = vrot.slane %v1214, 3
      %v1506 = vor.u32 %v1504, %v1505
      %v1507 = vsel %vm1475, %v1502, %v1506
      %v1508 = vrot.slane %v1361, 2
      %v1509 = vrot.slane %v1364, 3
      %v1510 = vor.u32 %v1508, %v1509
      %v1511 = vsel %vm1475, %v1506, %v1510
      %v1513 = vshrl.u32 %v1446, 16
      %v1515 = vrot.slane %v1513, 2
      %v1516 = vshll.u32 %v1446, 16
      %v1518 = vrot.slane %v1516, 3
      %v1519 = vor.u32 %v1515, %v1518
      %v1520 = vsel %vm1475, %v1510, %v1519
      %v1522 = vshrl.u32 %v1474, 16
      %v1524 = vrot.slane %v1522, 2
      %v1525 = vshll.u32 %v1474, 16
      %v1527 = vrot.slane %v1525, 3
      %v1528 = vor.u32 %v1524, %v1527
      %v1529 = vsel %vm1475, %v1519, %v1528
      %1530 = vrot.lane.b32.xlu0 %v1487, 28
      %v1531 = vpop.permute.xlu0 %1530
      %1532 = vrot.lane.b32.xlu0 %v1491, 28
      %v1533 = vpop.permute.xlu0 %1532
      %1534 = vrot.lane.b32.xlu0 %v1495, 28
      %v1535 = vpop.permute.xlu0 %1534
      %1536 = vrot.lane.b32.xlu0 %v1499, 28
      %v1537 = vpop.permute.xlu0 %1536
      %1538 = vrot.lane.b32.xlu0 %v1503, 28
      %v1539 = vpop.permute.xlu0 %1538
      %1540 = vrot.lane.b32.xlu0 %v1507, 28
      %v1541 = vpop.permute.xlu0 %1540
      %1542 = vrot.lane.b32.xlu0 %v1511, 28
      %v1543 = vpop.permute.xlu0 %1542
      %1544 = vrot.lane.b32.xlu0 %v1520, 28
      %v1545 = vpop.permute.xlu0 %1544
      %1546 = vrot.lane.b32.xlu0 %v1529, 28
      %v1547 = vpop.permute.xlu0 %1546
      %v1549 = vunpack.c.l.b16 %v1100
      %v1550 = vpack.c.b16 %v1124, %v1549
      %vm1551 = vcmask 1044480
      %v1552 = vrot.slane %v1550, 3
      %v1553 = vrot.slane %v1140, 3
      %v1554 = vsel %vm1551, %v1552, %v1553
      %v1555 = vrot.slane %v1141, 3
      %v1556 = vsel %vm1551, %v1553, %v1555
      %v1557 = vrot.slane %v1142, 3
      %v1558 = vsel %vm1551, %v1555, %v1557
      %v1559 = vrot.slane %v1143, 3
      %v1560 = vsel %vm1551, %v1557, %v1559
      %v1561 = vrot.slane %v1144, 3
      %v1562 = vsel %vm1551, %v1559, %v1561
      %v1563 = vrot.slane %v1145, 3
      %v1564 = vsel %vm1551, %v1561, %v1563
      %v1565 = vrot.slane %v1294, 3
      %v1566 = vsel %vm1551, %v1563, %v1565
      %v1567 = vrot.slane %v1446, 3
      %v1568 = vsel %vm1551, %v1565, %v1567
      %v1569 = vrot.slane %v1474, 3
      %v1570 = vsel %vm1551, %v1567, %v1569
      %1571 = vrot.lane.b32.xlu0 %v1554, 32
      %v1572 = vpop.permute.xlu0 %1571
      %1573 = vrot.lane.b32.xlu0 %v1556, 32
      %v1574 = vpop.permute.xlu0 %1573
      %1575 = vrot.lane.b32.xlu0 %v1558, 32
      %v1576 = vpop.permute.xlu0 %1575
      %1577 = vrot.lane.b32.xlu0 %v1560, 32
      %v1578 = vpop.permute.xlu0 %1577
      %1579 = vrot.lane.b32.xlu0 %v1562, 32
      %v1580 = vpop.permute.xlu0 %1579
      %1581 = vrot.lane.b32.xlu0 %v1564, 32
      %v1582 = vpop.permute.xlu0 %1581
      %1583 = vrot.lane.b32.xlu0 %v1566, 32
      %v1584 = vpop.permute.xlu0 %1583
      %1585 = vrot.lane.b32.xlu0 %v1568, 32
      %v1586 = vpop.permute.xlu0 %1585
      %1587 = vrot.lane.b32.xlu0 %v1570, 32
      %v1588 = vpop.permute.xlu0 %1587
      %vm1589 = vcmask 31744
      %v1591 = vsel %vm1589, %v1137, %v1227
      %v1593 = vsel %vm1589, %v1138, %v1229
      %v1595 = vsel %vm1589, %v1139, %v1231
      %v1597 = vsel %vm1589, %v1140, %v1233
      %v1599 = vsel %vm1589, %v1141, %v1235
      %v1601 = vsel %vm1589, %v1142, %v1237
      %v1603 = vsel %vm1589, %v1143, %v1239
      %v1605 = vsel %vm1589, %v1144, %v1241
      %v1607 = vsel %vm1589, %v1145, %v1243
      %vm1608 = vcmask 64512
      %v1610 = vsel %vm1608, %v1591, %v1268
      %v1612 = vsel %vm1608, %v1593, %v1270
      %v1614 = vsel %vm1608, %v1595, %v1272
      %v1616 = vsel %vm1608, %v1597, %v1274
      %v1618 = vsel %vm1608, %v1599, %v1276
      %v1620 = vsel %vm1608, %v1601, %v1278
      %v1622 = vsel %vm1608, %v1603, %v1280
      %v1624 = vsel %vm1608, %v1605, %v1282
      %v1626 = vsel %vm1608, %v1607, %v1284
      %vm1627 = vcmask 97280
      %v1629 = vsel %vm1627, %v1610, %v1303
      %v1631 = vsel %vm1627, %v1612, %v1305
      %v1633 = vsel %vm1627, %v1614, %v1307
      %v1635 = vsel %vm1627, %v1616, %v1309
      %v1637 = vsel %vm1627, %v1618, %v1311
      %v1639 = vsel %vm1627, %v1620, %v1313
      %v1641 = vsel %vm1627, %v1622, %v1315
      %v1643 = vsel %vm1627, %v1624, %v1317
      %v1645 = vsel %vm1627, %v1626, %v1319
      %vm1646 = vcmask 130048
      %v1648 = vsel %vm1646, %v1629, %v1379
      %v1650 = vsel %vm1646, %v1631, %v1381
      %v1652 = vsel %vm1646, %v1633, %v1383
      %v1654 = vsel %vm1646, %v1635, %v1385
      %v1656 = vsel %vm1646, %v1637, %v1387
      %v1658 = vsel %vm1646, %v1639, %v1389
      %v1660 = vsel %vm1646, %v1641, %v1391
      %v1662 = vsel %vm1646, %v1643, %v1393
      %v1664 = vsel %vm1646, %v1645, %v1395
      %vm1665 = vcmask 162816
      %v1667 = vsel %vm1665, %v1648, %v1420
      %v1669 = vsel %vm1665, %v1650, %v1422
      %v1671 = vsel %vm1665, %v1652, %v1424
      %v1673 = vsel %vm1665, %v1654, %v1426
      %v1675 = vsel %vm1665, %v1656, %v1428
      %v1677 = vsel %vm1665, %v1658, %v1430
      %v1679 = vsel %vm1665, %v1660, %v1432
      %v1681 = vsel %vm1665, %v1662, %v1434
      %v1683 = vsel %vm1665, %v1664, %v1436
      %vm1684 = vcmask 195584
      %v1686 = vsel %vm1684, %v1667, %v1455
      %v1688 = vsel %vm1684, %v1669, %v1457
      %v1690 = vsel %vm1684, %v1671, %v1459
      %v1692 = vsel %vm1684, %v1673, %v1461
      %v1694 = vsel %vm1684, %v1675, %v1463
      %v1696 = vsel %vm1684, %v1677, %v1465
      %v1698 = vsel %vm1684, %v1679, %v1467
      %v1700 = vsel %vm1684, %v1681, %v1469
      %v1702 = vsel %vm1684, %v1683, %v1471
      %vm1703 = vcmask 228352
      %v1705 = vsel %vm1703, %v1686, %v1531
      %v1707 = vsel %vm1703, %v1688, %v1533
      %v1709 = vsel %vm1703, %v1690, %v1535
      %v1711 = vsel %vm1703, %v1692, %v1537
      %v1713 = vsel %vm1703, %v1694, %v1539
      %v1715 = vsel %vm1703, %v1696, %v1541
      %v1717 = vsel %vm1703, %v1698, %v1543
      %v1719 = vsel %vm1703, %v1700, %v1545
      %v1721 = vsel %vm1703, %v1702, %v1547
      %vm1722 = vcmask 261120
      %v1724 = vsel %vm1722, %v1705, %v1572
      %v1726 = vsel %vm1722, %v1707, %v1574
      %v1728 = vsel %vm1722, %v1709, %v1576
      %v1730 = vsel %vm1722, %v1711, %v1578
      %v1732 = vsel %vm1722, %v1713, %v1580
      %v1734 = vsel %vm1722, %v1715, %v1582
      %v1736 = vsel %vm1722, %v1717, %v1584
      %v1738 = vsel %vm1722, %v1719, %v1586
      %v1740 = vsel %vm1722, %v1721, %v1588
      %v1741 = vld [vmem:[%s3] sm:$0xf]
      %v1742 = vld [vmem:[%s3 + $0x4] sm:$0xf]
      %v1743 = vld [vmem:[%s3 + $0x8] sm:$0xf]
      %v1744 = vld [vmem:[%s3 + $0xc] sm:$0xf]
      %v1745 = vld [vmem:[%s3 + $0x10] sm:$0x3]
      %v1751 = vunpack.c.l.b16 %v1741
      %v1752 = vunpack.c.l.b16 %v1742
      %v1753 = vunpack.c.l.b16 %v1743
      %v1754 = vunpack.c.l.b16 %v1744
      %v1755 = vunpack.c.l.b16 %v1745
      %v1756 = vpack.c.b16 %v1752, %v1751
      %v1757 = vpack.c.b16 %v1754, %v1753
      %v1758 = vpack.c.b16 %v1755, %v1755
      %vm1761 = vcmask 293888
      %v1762 = vsel %vm1761, %v1724, 0
      %v1764 = vsel %vm1761, %v1726, 0
      %v1766 = vsel %vm1761, %v1728, 0
      %v1768 = vsel %vm1761, %v1730, 0
      %v1770 = vsel %vm1761, %v1732, 0
      %v1772 = vsel %vm1761, %v1734, 0
      %v1774 = vsel %vm1761, %v1736, 0
      %v1776 = vsel %vm1761, %v1738, 0
      %v1778 = vsel %vm1761, %v1740, 0
      %vm1780 = vcmask 1041408
      %v1782 = vsel %vm1780, %v1758, 0
      %1784 = vmatprep.subr.bf16.mxu0 0
      %1785 = vmatpush1.bf16.msra.mxu0 %v1756
      %1786 = vmatprep.subr.bf16.mxu0 0
      %1787 = vmatpush1.bf16.msra.mxu0 %v1757
      %1788 = vmatprep.subr.bf16.mxu0 0
      %1789 = vmatpush1.bf16.msra.mxu0 %v1782
      %1790 = vmatprep.subr.bf16.mxu0 0
      %1791 = vmatpush1.bf16.msra.mxu0 0
      %1792 = vmatprep.subr.bf16.mxu0 0
      %1793 = vmatpush1.bf16.msra.mxu0 0
      %1794 = vmatprep.subr.bf16.mxu0 0
      %1795 = vmatpush1.bf16.msra.mxu0 0
      %1796 = vmatprep.subr.bf16.mxu0 0
      %1797 = vmatpush1.bf16.msra.mxu0 0
      %1798 = vmatprep.subr.bf16.mxu0 0
      %1799 = vmatpush1.bf16.msra.mxu0 0
      %1800 = vmatprep.subr.bf16.mxu0 0
      %1801 = vmatpush1.bf16.msra.mxu0 0
      %1802 = vmatprep.subr.bf16.mxu0 0
      %1803 = vmatpush1.bf16.msra.mxu0 0
      %1804 = vmatprep.subr.bf16.mxu0 0
      %1805 = vmatpush1.bf16.msra.mxu0 0
      %1806 = vmatprep.subr.bf16.mxu0 0
      %1807 = vmatpush1.bf16.msra.mxu0 0
      %1808 = vmatprep.subr.bf16.mxu0 0
      %1809 = vmatpush1.bf16.msra.mxu0 0
      %1810 = vmatprep.subr.bf16.mxu0 0
      %1811 = vmatpush1.bf16.msra.mxu0 0
      %1812 = vmatprep.subr.bf16.mxu0 0
      %1813 = vmatpush1.bf16.msra.mxu0 0
      %1814 = vmatprep.subr.bf16.mxu0 0
      %1815 = vmatpush1.bf16.msra.mxu0 0
      %1816 = vmatprep.mubr.bf16.mxu0 0
      %1817 = vmatmul.mubr.bf16.gmra.mrb[0].mxu0 %v1762
      %v1818 = vpop.f32.mrb[0].mxu0
      %v1819 = vadd.f32 0.0, %v1818
      %v1820 = vpop.f32.mrb[0].mxu0
      %v1821 = vpop.f32.mrb[0].mxu0
      %v1822 = vadd.f32 0.0, %v1821
      %v1823 = vpop.f32.mrb[0].mxu0
      %1824 = vmatprep.mubr.bf16.mxu0 0
      %1825 = vmatmul.mubr.bf16.gmra.mrb[0].mxu0 %v1764
      %v1826 = vpop.f32.mrb[0].mxu0
      %v1827 = vadd.f32 0.0, %v1826
      %v1828 = vpop.f32.mrb[0].mxu0
      %v1829 = vpop.f32.mrb[0].mxu0
      %v1830 = vadd.f32 0.0, %v1829
      %v1831 = vpop.f32.mrb[0].mxu0
      %1832 = vmatprep.mubr.bf16.mxu0 0
      %1833 = vmatmul.mubr.bf16.gmra.mrb[0].mxu0 %v1766
      %v1834 = vpop.f32.mrb[0].mxu0
      %v1835 = vadd.f32 0.0, %v1834
      %v1836 = vpop.f32.mrb[0].mxu0
      %v1837 = vpop.f32.mrb[0].mxu0
      %v1838 = vadd.f32 0.0, %v1837
      %v1839 = vpop.f32.mrb[0].mxu0
      %1840 = vmatprep.mubr.bf16.mxu0 0
      %1841 = vmatmul.mubr.bf16.gmra.mrb[0].mxu0 %v1768
      %v1842 = vpop.f32.mrb[0].mxu0
      %v1843 = vadd.f32 0.0, %v1842
      %v1844 = vpop.f32.mrb[0].mxu0
      %v1845 = vpop.f32.mrb[0].mxu0
      %v1846 = vadd.f32 0.0, %v1845
      %v1847 = vpop.f32.mrb[0].mxu0
      %1848 = vmatprep.mubr.bf16.mxu0 0
      %1849 = vmatmul.mubr.bf16.gmra.mrb[0].mxu0 %v1770
      %v1850 = vpop.f32.mrb[0].mxu0
      %v1851 = vadd.f32 0.0, %v1850
      %v1852 = vpop.f32.mrb[0].mxu0
      %v1853 = vpop.f32.mrb[0].mxu0
      %v1854 = vadd.f32 0.0, %v1853
      %v1855 = vpop.f32.mrb[0].mxu0
      %1856 = vmatprep.mubr.bf16.mxu0 0
      %1857 = vmatmul.mubr.bf16.gmra.mrb[0].mxu0 %v1772
      %v1858 = vpop.f32.mrb[0].mxu0
      %v1859 = vadd.f32 0.0, %v1858
      %v1860 = vpop.f32.mrb[0].mxu0
      %v1861 = vpop.f32.mrb[0].mxu0
      %v1862 = vadd.f32 0.0, %v1861
      %v1863 = vpop.f32.mrb[0].mxu0
      %1864 = vmatprep.mubr.bf16.mxu0 0
      %1865 = vmatmul.mubr.bf16.gmra.mrb[0].mxu0 %v1774
      %v1866 = vpop.f32.mrb[0].mxu0
      %v1867 = vadd.f32 0.0, %v1866
      %v1868 = vpop.f32.mrb[0].mxu0
      %v1869 = vpop.f32.mrb[0].mxu0
      %v1870 = vadd.f32 0.0, %v1869
      %v1871 = vpop.f32.mrb[0].mxu0
      %1872 = vmatprep.mubr.bf16.mxu0 0
      %1873 = vmatmul.mubr.bf16.gmra.mrb[0].mxu0 %v1776
      %v1874 = vpop.f32.mrb[0].mxu0
      %v1875 = vadd.f32 0.0, %v1874
      %v1876 = vpop.f32.mrb[0].mxu0
      %v1877 = vpop.f32.mrb[0].mxu0
      %v1878 = vadd.f32 0.0, %v1877
      %v1879 = vpop.f32.mrb[0].mxu0
      %1880 = vmatprep.mubr.bf16.mxu0 0
      %1881 = vmatmul.mubr.bf16.gmra.mrb[0].mxu0 %v1778
      %v1882 = vpop.f32.mrb[0].mxu0
      %v1883 = vadd.f32 0.0, %v1882
      %v1884 = vpop.f32.mrb[0].mxu0
      %v1885 = vpop.f32.mrb[0].mxu0
      %v1886 = vadd.f32 0.0, %v1885
      %v1887 = vpop.f32.mrb[0].mxu0
      %1888 = vdwg.mxu0
      %vm1892 = vcmask 1045504
      %v1893 = vrot.slane %v1827, 2
      %v1894 = vrot.slane %v1830, 2
      %v1895 = vsel %vm1892, %v1893, %v1894
      %v1896 = vrot.slane %v1835, 2
      %v1897 = vsel %vm1892, %v1894, %v1896
      %vm1902 = vcmask 1043456
      %v1903 = vrot.slane %v1835, 4
      %v1904 = vrot.slane %v1838, 4
      %v1905 = vsel %vm1902, %v1903, %v1904
      %v1906 = vrot.slane %v1843, 4
      %v1907 = vsel %vm1902, %v1904, %v1906
      %v1912 = vrot.slane %v1843, 6
      %v1913 = vrot.slane %v1846, 6
      %v1914 = vsel %vm1780, %v1912, %v1913
      %v1915 = vrot.slane %v1851, 6
      %v1916 = vsel %vm1780, %v1913, %v1915
      %v1922 = vrot.slane %v1862, 2
      %v1923 = vrot.slane %v1867, 2
      %v1924 = vsel %vm1892, %v1922, %v1923
      %v1925 = vrot.slane %v1870, 2
      %v1926 = vsel %vm1892, %v1923, %v1925
      %v1931 = vrot.slane %v1870, 4
      %v1932 = vrot.slane %v1875, 4
      %v1933 = vsel %vm1902, %v1931, %v1932
      %v1934 = vrot.slane %v1878, 4
      %v1935 = vsel %vm1902, %v1932, %v1934
      %v1940 = vrot.slane %v1878, 6
      %v1941 = vrot.slane %v1883, 6
      %v1942 = vsel %vm1780, %v1940, %v1941
      %v1943 = vrot.slane %v1886, 6
      %v1944 = vsel %vm1780, %v1941, %v1943
      %v1947 = vpack.c.bf16 %v1822, %v1819
      %v1948 = vpack.c.bf16 %v1897, %v1895
      %v1949 = vpack.c.bf16 %v1907, %v1905
      %v1950 = vpack.c.bf16 %v1916, %v1914
      %v1951 = vpack.c.bf16 %v1859, %v1854
      %v1952 = vpack.c.bf16 %v1926, %v1924
      %v1953 = vpack.c.bf16 %v1935, %v1933
      %v1954 = vpack.c.bf16 %v1944, %v1942
      %v1963 = vunpack.c.l.b16 %v1947
      %v1964 = vunpack.c.h.b16 %v1947
      %v1965 = vunpack.c.l.b16 %v1948
      %v1966 = vunpack.c.h.b16 %v1948
      %v1967 = vunpack.c.l.b16 %v1949
      %v1968 = vunpack.c.h.b16 %v1949
      %v1969 = vunpack.c.l.b16 %v1950
      %v1970 = vunpack.c.h.b16 %v1950
      %v1971 = vunpack.c.l.b16 %v1951
      %v1972 = vunpack.c.h.b16 %v1951
      %v1973 = vunpack.c.l.b16 %v1952
      %v1974 = vunpack.c.h.b16 %v1952
      %v1975 = vunpack.c.l.b16 %v1953
      %v1976 = vunpack.c.h.b16 %v1953
      %v1977 = vunpack.c.l.b16 %v1954
      %v1978 = vunpack.c.h.b16 %v1954
      %v1979 = vpack.c.b16 %v1963, %v1963
      %v1980 = vpack.c.b16 %v1964, %v1964
      %v1981 = vpack.c.b16 %v1965, %v1965
      %v1982 = vpack.c.b16 %v1966, %v1966
      %v1983 = vpack.c.b16 %v1967, %v1967
      %v1984 = vpack.c.b16 %v1968, %v1968
      %v1985 = vpack.c.b16 %v1969, %v1969
      %v1986 = vpack.c.b16 %v1970, %v1970
      %v1987 = vpack.c.b16 %v1971, %v1971
      %v1988 = vpack.c.b16 %v1972, %v1972
      %v1989 = vpack.c.b16 %v1973, %v1973
      %v1990 = vpack.c.b16 %v1974, %v1974
      %v1991 = vpack.c.b16 %v1975, %v1975
      %v1992 = vpack.c.b16 %v1976, %v1976
      %v1993 = vpack.c.b16 %v1977, %v1977
      %v1994 = vpack.c.b16 %v1978, %v1978
      %2011 = vst.msk [vmem:[%s262] sm:$0xf] %vm270, %v1979
      %2012 = vst.msk [vmem:[%s262 + $0x4] sm:$0xf] %vm270, %v1980
      %2013 = vst.msk [vmem:[%s262 + $0x8] sm:$0xf] %vm270, %v1981
      %2014 = vst.msk [vmem:[%s262 + $0xc] sm:$0xf] %vm270, %v1982
      %2015 = vst.msk [vmem:[%s262 + $0x10] sm:$0xf] %vm270, %v1983
      %2016 = vst.msk [vmem:[%s262 + $0x14] sm:$0xf] %vm270, %v1984
      %2017 = vst.msk [vmem:[%s262 + $0x18] sm:$0xf] %vm270, %v1985
      %2018 = vst.msk [vmem:[%s262 + $0x1c] sm:$0xf] %vm270, %v1986
      %2019 = vst.msk [vmem:[%s262 + $0x20] sm:$0xf] %vm270, %v1987
      %2020 = vst.msk [vmem:[%s262 + $0x24] sm:$0xf] %vm270, %v1988
      %2021 = vst.msk [vmem:[%s262 + $0x28] sm:$0xf] %vm270, %v1989
      %2022 = vst.msk [vmem:[%s262 + $0x2c] sm:$0xf] %vm270, %v1990
      %2023 = vst.msk [vmem:[%s262 + $0x30] sm:$0xf] %vm270, %v1991
      %2024 = vst.msk [vmem:[%s262 + $0x34] sm:$0xf] %vm270, %v1992
      %2025 = vst.msk [vmem:[%s262 + $0x38] sm:$0xf] %vm270, %v1993
      %2026 = vst.msk [vmem:[%s262 + $0x3c] sm:$0xf] %vm270, %v1994
      %v2027 = vunpack.c.l.bf16 %v1947
      %v2028 = vunpack.c.h.bf16 %v1947
      %v2029 = vunpack.c.l.bf16 %v1948
      %v2030 = vunpack.c.h.bf16 %v1948
      %v2031 = vunpack.c.l.bf16 %v1949
      %v2032 = vunpack.c.h.bf16 %v1949
      %v2033 = vunpack.c.l.bf16 %v1950
      %v2034 = vunpack.c.h.bf16 %v1950
      %v2035 = vunpack.c.l.bf16 %v1951
      %v2036 = vunpack.c.h.bf16 %v1951
      %v2037 = vunpack.c.l.bf16 %v1952
      %v2038 = vunpack.c.h.bf16 %v1952
      %v2039 = vunpack.c.l.bf16 %v1953
      %v2040 = vunpack.c.h.bf16 %v1953
      %v2041 = vunpack.c.l.bf16 %v1954
      %v2042 = vunpack.c.h.bf16 %v1954
      %v2043 = vsel %vm1589, %v2027, 0.0
      %v2044 = vsel %vm1589, %v2028, 0.0
      %v2045 = vadd.f32 %v2043, %v2044
      %v2046 = vsel %vm1589, %v2029, 0.0
      %v2047 = vadd.f32 %v2045, %v2046
      %v2048 = vsel %vm1589, %v2030, 0.0
      %v2049 = vadd.f32 %v2047, %v2048
      %v2050 = vsel %vm1589, %v2031, 0.0
      %v2051 = vadd.f32 %v2049, %v2050
      %v2052 = vsel %vm1589, %v2032, 0.0
      %v2053 = vadd.f32 %v2051, %v2052
      %v2054 = vsel %vm1589, %v2033, 0.0
      %v2055 = vadd.f32 %v2053, %v2054
      %v2056 = vsel %vm1589, %v2034, 0.0
      %v2057 = vadd.f32 %v2055, %v2056
      %v2058 = vsel %vm1589, %v2035, 0.0
      %v2059 = vadd.f32 %v2057, %v2058
      %v2060 = vsel %vm1589, %v2036, 0.0
      %v2061 = vadd.f32 %v2059, %v2060
      %v2062 = vsel %vm1589, %v2037, 0.0
      %v2063 = vadd.f32 %v2061, %v2062
      %v2064 = vsel %vm1589, %v2038, 0.0
      %v2065 = vadd.f32 %v2063, %v2064
      %v2066 = vsel %vm1589, %v2039, 0.0
      %v2067 = vadd.f32 %v2065, %v2066
      %v2068 = vsel %vm1589, %v2040, 0.0
      %v2069 = vadd.f32 %v2067, %v2068
      %v2070 = vsel %vm1589, %v2041, 0.0
      %v2071 = vadd.f32 %v2069, %v2070
      %v2072 = vsel %vm1589, %v2042, 0.0
      %v2073 = vadd.f32 %v2071, %v2072
      %v2074 = vrot.slane %v2073, 4
      %v2075 = vadd.f32 %v2073, %v2074
      %v2076 = vrot.slane %v2075, 2
      %v2077 = vadd.f32 %v2075, %v2076
      %v2078 = vrot.slane %v2077, 1
      %v2079 = vadd.f32 %v2077, %v2078
      %v2080 = vadd.f32 %v2079, 0.0
      %v2081 = vmul.f32 %v2027, %v2027
      %v2082 = vmul.f32 %v2028, %v2028
      %v2083 = vmul.f32 %v2029, %v2029
      %v2084 = vmul.f32 %v2030, %v2030
      %v2085 = vmul.f32 %v2031, %v2031
      %v2086 = vmul.f32 %v2032, %v2032
      %v2087 = vmul.f32 %v2033, %v2033
      %v2088 = vmul.f32 %v2034, %v2034
      %v2089 = vmul.f32 %v2035, %v2035
      %v2090 = vmul.f32 %v2036, %v2036
      %v2091 = vmul.f32 %v2037, %v2037
      %v2092 = vmul.f32 %v2038, %v2038
      %v2093 = vmul.f32 %v2039, %v2039
      %v2094 = vmul.f32 %v2040, %v2040
      %v2095 = vmul.f32 %v2041, %v2041
      %v2096 = vmul.f32 %v2042, %v2042
      %v2097 = vsel %vm1589, %v2081, 0.0
      %v2098 = vsel %vm1589, %v2082, 0.0
      %v2099 = vadd.f32 %v2097, %v2098
      %v2100 = vsel %vm1589, %v2083, 0.0
      %v2101 = vadd.f32 %v2099, %v2100
      %v2102 = vsel %vm1589, %v2084, 0.0
      %v2103 = vadd.f32 %v2101, %v2102
      %v2104 = vsel %vm1589, %v2085, 0.0
      %v2105 = vadd.f32 %v2103, %v2104
      %v2106 = vsel %vm1589, %v2086, 0.0
      %v2107 = vadd.f32 %v2105, %v2106
      %v2108 = vsel %vm1589, %v2087, 0.0
      %v2109 = vadd.f32 %v2107, %v2108
      %v2110 = vsel %vm1589, %v2088, 0.0
      %v2111 = vadd.f32 %v2109, %v2110
      %v2112 = vsel %vm1589, %v2089, 0.0
      %v2113 = vadd.f32 %v2111, %v2112
      %v2114 = vsel %vm1589, %v2090, 0.0
      %v2115 = vadd.f32 %v2113, %v2114
      %v2116 = vsel %vm1589, %v2091, 0.0
      %v2117 = vadd.f32 %v2115, %v2116
      %v2118 = vsel %vm1589, %v2092, 0.0
      %v2119 = vadd.f32 %v2117, %v2118
      %v2120 = vsel %vm1589, %v2093, 0.0
      %v2121 = vadd.f32 %v2119, %v2120
      %v2122 = vsel %vm1589, %v2094, 0.0
      %v2123 = vadd.f32 %v2121, %v2122
      %v2124 = vsel %vm1589, %v2095, 0.0
      %v2125 = vadd.f32 %v2123, %v2124
      %v2126 = vsel %vm1589, %v2096, 0.0
      %v2127 = vadd.f32 %v2125, %v2126
      %v2128 = vrot.slane %v2127, 4
      %v2129 = vadd.f32 %v2127, %v2128
      %v2130 = vrot.slane %v2129, 2
      %v2131 = vadd.f32 %v2129, %v2130
      %v2132 = vrot.slane %v2131, 1
      %v2133 = vadd.f32 %v2131, %v2132
      %v2134 = vadd.f32 %v2133, 0.0
      %v2135 = vld [vmem:[#allocation2 + $0x48] sm:$0xf]
      %v2136 = vld [vmem:[#allocation2 + $0x4c] sm:$0xf]
      %v2137 = vld [vmem:[#allocation2 + $0x50] sm:$0xf]
      %v2138 = vld [vmem:[#allocation2 + $0x54] sm:$0xf]
      %v2139 = vld [vmem:[#allocation2 + $0x58] sm:$0xf]
      %v2140 = vld [vmem:[#allocation2 + $0x5c] sm:$0xf]
      %v2141 = vld [vmem:[#allocation2 + $0x60] sm:$0xf]
      %v2142 = vld [vmem:[#allocation2 + $0x64] sm:$0xf]
      %v2143 = vld [vmem:[#allocation2 + $0x68] sm:$0xf]
      %v2144 = vld [vmem:[#allocation2 + $0x6c] sm:$0xf]
      %v2145 = vld [vmem:[#allocation2 + $0x70] sm:$0xf]
      %v2146 = vld [vmem:[#allocation2 + $0x74] sm:$0xf]
      %v2147 = vld [vmem:[#allocation2 + $0x78] sm:$0xf]
      %v2148 = vld [vmem:[#allocation2 + $0x7c] sm:$0xf]
      %v2149 = vld [vmem:[#allocation2 + $0x80] sm:$0xf]
      %v2150 = vld [vmem:[#allocation2 + $0x84] sm:$0xf]
      %v2151 = vld [vmem:[#allocation2 + $0x88] sm:$0xf]
      %v2152 = vld [vmem:[#allocation2 + $0x8c] sm:$0xf]
      %v2153 = vld [vmem:[#allocation2 + $0x90] sm:$0x1]
      %v2154 = vld [vmem:[#allocation2 + $0x48] sm:$0xe]
      %v2155 = vld [vmem:[#allocation2 + $0x50] sm:$0xe]
      %v2156 = vld [vmem:[#allocation2 + $0x90] sm:$0xf]
      %v2157 = vld [vmem:[#allocation2 + $0x94] sm:$0xf]
      %v2158 = vld [vmem:[#allocation2 + $0x98] sm:$0x1]
      %v2159 = vld [vmem:[#allocation2 + $0x98] sm:$0x3]
      %v2160 = vld [vmem:[#allocation2 + $0x50] sm:$0xc]
      %v2161 = vld [vmem:[#allocation2 + $0x58] sm:$0xc]
      %v2162 = vld [vmem:[#allocation2 + $0x98] sm:$0xf]
      %v2163 = vld [vmem:[#allocation2 + $0x9c] sm:$0xf]
      %v2164 = vld [vmem:[#allocation2 + $0xa0] sm:$0x3]
      %v2165 = vld [vmem:[#allocation2 + $0xa0] sm:$0x7]
      %v2166 = vld [vmem:[#allocation2 + $0x58] sm:$0x8]
      %v2185 = vunpack.c.l.b16 %v2135
      %v2186 = vunpack.c.l.b16 %v2136
      %v2187 = vunpack.c.l.b16 %v2137
      %v2188 = vunpack.c.l.b16 %v2138
      %v2189 = vunpack.c.l.b16 %v2139
      %v2190 = vunpack.c.l.b16 %v2140
      %v2191 = vunpack.c.l.b16 %v2141
      %v2192 = vunpack.c.l.b16 %v2142
      %v2193 = vunpack.c.l.b16 %v2143
      %v2194 = vunpack.c.l.b16 %v2144
      %v2195 = vunpack.c.l.b16 %v2145
      %v2196 = vunpack.c.l.b16 %v2146
      %v2197 = vunpack.c.l.b16 %v2147
      %v2198 = vunpack.c.l.b16 %v2148
      %v2199 = vunpack.c.l.b16 %v2149
      %v2200 = vunpack.c.l.b16 %v2150
      %v2201 = vunpack.c.l.b16 %v2151
      %v2202 = vunpack.c.l.b16 %v2152
      %v2203 = vpack.c.b16 %v2186, %v2185
      %v2204 = vpack.c.b16 %v2188, %v2187
      %v2205 = vpack.c.b16 %v2190, %v2189
      %v2206 = vpack.c.b16 %v2192, %v2191
      %v2207 = vpack.c.b16 %v2194, %v2193
      %v2208 = vpack.c.b16 %v2196, %v2195
      %v2209 = vpack.c.b16 %v2198, %v2197
      %v2210 = vpack.c.b16 %v2200, %v2199
      %v2211 = vpack.c.b16 %v2202, %v2201
      %v2213 = vunpack.c.l.b16 %v2153
      %v2214 = vpack.c.b16 %v2213, %v2213
      %v2216 = vshrl.u32 %v2203, 16
      %v2218 = vshll.u32 %v2203, 16
      %v2220 = vrot.slane %v2218, 1
      %v2221 = vor.u32 %v2216, %v2220
      %v2223 = vshll.u32 %v2204, 16
      %v2225 = vrot.slane %v2223, 1
      %v2226 = vsel %vm1149, %v2221, %v2225
      %v2227 = vshrl.u32 %v2204, 16
      %v2229 = vor.u32 %v2227, %v2225
      %v2231 = vshll.u32 %v2205, 16
      %v2233 = vrot.slane %v2231, 1
      %v2234 = vsel %vm1149, %v2229, %v2233
      %v2235 = vshrl.u32 %v2205, 16
      %v2237 = vor.u32 %v2235, %v2233
      %v2239 = vshll.u32 %v2206, 16
      %v2241 = vrot.slane %v2239, 1
      %v2242 = vsel %vm1149, %v2237, %v2241
      %v2243 = vshrl.u32 %v2206, 16
      %v2245 = vor.u32 %v2243, %v2241
      %v2247 = vshll.u32 %v2207, 16
      %v2249 = vrot.slane %v2247, 1
      %v2250 = vsel %vm1149, %v2245, %v2249
      %v2251 = vshrl.u32 %v2207, 16
      %v2253 = vor.u32 %v2251, %v2249
      %v2255 = vshll.u32 %v2208, 16
      %v2257 = vrot.slane %v2255, 1
      %v2258 = vsel %vm1149, %v2253, %v2257
      %v2259 = vshrl.u32 %v2208, 16
      %v2261 = vor.u32 %v2259, %v2257
      %v2263 = vshll.u32 %v2209, 16
      %v2265 = vrot.slane %v2263, 1
      %v2266 = vsel %vm1149, %v2261, %v2265
      %v2267 = vshrl.u32 %v2209, 16
      %v2269 = vor.u32 %v2267, %v2265
      %v2271 = vshll.u32 %v2210, 16
      %v2273 = vrot.slane %v2271, 1
      %v2274 = vsel %vm1149, %v2269, %v2273
      %v2275 = vshrl.u32 %v2210, 16
      %v2277 = vor.u32 %v2275, %v2273
      %v2279 = vshll.u32 %v2211, 16
      %v2281 = vrot.slane %v2279, 1
      %v2282 = vsel %vm1149, %v2277, %v2281
      %v2283 = vshrl.u32 %v2211, 16
      %v2285 = vor.u32 %v2283, %v2281
      %v2287 = vshll.u32 %v2214, 16
      %v2289 = vrot.slane %v2287, 1
      %v2290 = vsel %vm1149, %v2285, %v2289
      %2291 = vrot.lane.b32.xlu0 %v2226, 4
      %v2292 = vpop.permute.xlu0 %2291
      %2293 = vrot.lane.b32.xlu0 %v2234, 4
      %v2294 = vpop.permute.xlu0 %2293
      %2295 = vrot.lane.b32.xlu0 %v2242, 4
      %v2296 = vpop.permute.xlu0 %2295
      %2297 = vrot.lane.b32.xlu0 %v2250, 4
      %v2298 = vpop.permute.xlu0 %2297
      %2299 = vrot.lane.b32.xlu0 %v2258, 4
      %v2300 = vpop.permute.xlu0 %2299
      %2301 = vrot.lane.b32.xlu0 %v2266, 4
      %v2302 = vpop.permute.xlu0 %2301
      %2303 = vrot.lane.b32.xlu0 %v2274, 4
      %v2304 = vpop.permute.xlu0 %2303
      %2305 = vrot.lane.b32.xlu0 %v2282, 4
      %v2306 = vpop.permute.xlu0 %2305
      %2307 = vrot.lane.b32.xlu0 %v2290, 4
      %v2308 = vpop.permute.xlu0 %2307
      %v2310 = vunpack.c.l.b16 %v2154
      %v2311 = vpack.c.b16 %v2186, %v2310
      %v2312 = vrot.slane %v2311, 1
      %v2313 = vrot.slane %v2204, 1
      %v2314 = vsel %vm1247, %v2312, %v2313
      %v2315 = vrot.slane %v2205, 1
      %v2316 = vsel %vm1247, %v2313, %v2315
      %v2317 = vrot.slane %v2206, 1
      %v2318 = vsel %vm1247, %v2315, %v2317
      %v2319 = vrot.slane %v2207, 1
      %v2320 = vsel %vm1247, %v2317, %v2319
      %v2321 = vrot.slane %v2208, 1
      %v2322 = vsel %vm1247, %v2319, %v2321
      %v2323 = vrot.slane %v2209, 1
      %v2324 = vsel %vm1247, %v2321, %v2323
      %v2325 = vrot.slane %v2210, 1
      %v2326 = vsel %vm1247, %v2323, %v2325
      %v2327 = vrot.slane %v2211, 1
      %v2328 = vsel %vm1247, %v2325, %v2327
      %v2329 = vrot.slane %v2214, 1
      %v2330 = vsel %vm1247, %v2327, %v2329
      %2331 = vrot.lane.b32.xlu0 %v2314, 8
      %v2332 = vpop.permute.xlu0 %2331
      %2333 = vrot.lane.b32.xlu0 %v2316, 8
      %v2334 = vpop.permute.xlu0 %2333
      %2335 = vrot.lane.b32.xlu0 %v2318, 8
      %v2336 = vpop.permute.xlu0 %2335
      %2337 = vrot.lane.b32.xlu0 %v2320, 8
      %v2338 = vpop.permute.xlu0 %2337
      %2339 = vrot.lane.b32.xlu0 %v2322, 8
      %v2340 = vpop.permute.xlu0 %2339
      %2341 = vrot.lane.b32.xlu0 %v2324, 8
      %v2342 = vpop.permute.xlu0 %2341
      %2343 = vrot.lane.b32.xlu0 %v2326, 8
      %v2344 = vpop.permute.xlu0 %2343
      %2345 = vrot.lane.b32.xlu0 %v2328, 8
      %v2346 = vpop.permute.xlu0 %2345
      %2347 = vrot.lane.b32.xlu0 %v2330, 8
      %v2348 = vpop.permute.xlu0 %2347
      %v2353 = vunpack.c.l.b16 %v2155
      %v2354 = vunpack.c.l.b16 %v2156
      %v2355 = vunpack.c.l.b16 %v2157
      %v2356 = vunpack.c.l.b16 %v2158
      %v2357 = vpack.c.b16 %v2188, %v2353
      %v2358 = vpack.c.b16 %v2355, %v2354
      %v2359 = vpack.c.b16 %v2356, %v2356
      %v2360 = vrot.slane %v2357, 1
      %v2361 = vsel %vm1247, %v2360, %v2315
      %v2362 = vrot.slane %v2358, 1
      %v2363 = vsel %vm1247, %v2327, %v2362
      %v2364 = vrot.slane %v2359, 1
      %v2365 = vsel %vm1247, %v2362, %v2364
      %2366 = vrot.lane.b32.xlu0 %v2361, 12
      %v2367 = vpop.permute.xlu0 %2366
      %2368 = vrot.lane.b32.xlu0 %v2318, 12
      %v2369 = vpop.permute.xlu0 %2368
      %2370 = vrot.lane.b32.xlu0 %v2320, 12
      %v2371 = vpop.permute.xlu0 %2370
      %2372 = vrot.lane.b32.xlu0 %v2322, 12
      %v2373 = vpop.permute.xlu0 %2372
      %2374 = vrot.lane.b32.xlu0 %v2324, 12
      %v2375 = vpop.permute.xlu0 %2374
      %2376 = vrot.lane.b32.xlu0 %v2326, 12
      %v2377 = vpop.permute.xlu0 %2376
      %2378 = vrot.lane.b32.xlu0 %v2328, 12
      %v2379 = vpop.permute.xlu0 %2378
      %2380 = vrot.lane.b32.xlu0 %v2363, 12
      %v2381 = vpop.permute.xlu0 %2380
      %2382 = vrot.lane.b32.xlu0 %v2365, 12
      %v2383 = vpop.permute.xlu0 %2382
      %v2385 = vunpack.c.l.b16 %v2159
      %v2386 = vpack.c.b16 %v2385, %v2385
      %v2388 = vshrl.u32 %v2357, 16
      %v2390 = vrot.slane %v2388, 1
      %v2391 = vshll.u32 %v2357, 16
      %v2393 = vrot.slane %v2391, 2
      %v2394 = vor.u32 %v2390, %v2393
      %v2395 = vrot.slane %v2235, 1
      %v2396 = vrot.slane %v2231, 2
      %v2397 = vor.u32 %v2395, %v2396
      %v2398 = vsel %vm1323, %v2394, %v2397
      %v2399 = vrot.slane %v2243, 1
      %v2400 = vrot.slane %v2239, 2
      %v2401 = vor.u32 %v2399, %v2400
      %v2402 = vsel %vm1323, %v2397, %v2401
      %v2403 = vrot.slane %v2251, 1
      %v2404 = vrot.slane %v2247, 2
      %v2405 = vor.u32 %v2403, %v2404
      %v2406 = vsel %vm1323, %v2401, %v2405
      %v2407 = vrot.slane %v2259, 1
      %v2408 = vrot.slane %v2255, 2
      %v2409 = vor.u32 %v2407, %v2408
      %v2410 = vsel %vm1323, %v2405, %v2409
      %v2411 = vrot.slane %v2267, 1
      %v2412 = vrot.slane %v2263, 2
      %v2413 = vor.u32 %v2411, %v2412
      %v2414 = vsel %vm1323, %v2409, %v2413
      %v2415 = vrot.slane %v2275, 1
      %v2416 = vrot.slane %v2271, 2
      %v2417 = vor.u32 %v2415, %v2416
      %v2418 = vsel %vm1323, %v2413, %v2417
      %v2419 = vrot.slane %v2283, 1
      %v2420 = vrot.slane %v2279, 2
      %v2421 = vor.u32 %v2419, %v2420
      %v2422 = vsel %vm1323, %v2417, %v2421
      %v2424 = vshrl.u32 %v2358, 16
      %v2426 = vrot.slane %v2424, 1
      %v2427 = vshll.u32 %v2358, 16
      %v2429 = vrot.slane %v2427, 2
      %v2430 = vor.u32 %v2426, %v2429
      %v2431 = vsel %vm1323, %v2421, %v2430
      %v2433 = vshrl.u32 %v2386, 16
      %v2435 = vrot.slane %v2433, 1
      %v2436 = vshll.u32 %v2386, 16
      %v2438 = vrot.slane %v2436, 2
      %v2439 = vor.u32 %v2435, %v2438
      %v2440 = vsel %vm1323, %v2430, %v2439
      %2441 = vrot.lane.b32.xlu0 %v2398, 16
      %v2442 = vpop.permute.xlu0 %2441
      %2443 = vrot.lane.b32.xlu0 %v2402, 16
      %v2444 = vpop.permute.xlu0 %2443
      %2445 = vrot.lane.b32.xlu0 %v2406, 16
      %v2446 = vpop.permute.xlu0 %2445
      %2447 = vrot.lane.b32.xlu0 %v2410, 16
      %v2448 = vpop.permute.xlu0 %2447
      %2449 = vrot.lane.b32.xlu0 %v2414, 16
      %v2450 = vpop.permute.xlu0 %2449
      %2451 = vrot.lane.b32.xlu0 %v2418, 16
      %v2452 = vpop.permute.xlu0 %2451
      %2453 = vrot.lane.b32.xlu0 %v2422, 16
      %v2454 = vpop.permute.xlu0 %2453
      %2455 = vrot.lane.b32.xlu0 %v2431, 16
      %v2456 = vpop.permute.xlu0 %2455
      %2457 = vrot.lane.b32.xlu0 %v2440, 16
      %v2458 = vpop.permute.xlu0 %2457
      %v2460 = vunpack.c.l.b16 %v2160
      %v2461 = vpack.c.b16 %v2188, %v2460
      %v2462 = vrot.slane %v2461, 2
      %v2463 = vrot.slane %v2205, 2
      %v2464 = vsel %vm1399, %v2462, %v2463
      %v2465 = vrot.slane %v2206, 2
      %v2466 = vsel %vm1399, %v2463, %v2465
      %v2467 = vrot.slane %v2207, 2
      %v2468 = vsel %vm1399, %v2465, %v2467
      %v2469 = vrot.slane %v2208, 2
      %v2470 = vsel %vm1399, %v2467, %v2469
      %v2471 = vrot.slane %v2209, 2
      %v2472 = vsel %vm1399, %v2469, %v2471
      %v2473 = vrot.slane %v2210, 2
      %v2474 = vsel %vm1399, %v2471, %v2473
      %v2475 = vrot.slane %v2211, 2
      %v2476 = vsel %vm1399, %v2473, %v2475
      %v2477 = vrot.slane %v2358, 2
      %v2478 = vsel %vm1399, %v2475, %v2477
      %v2479 = vrot.slane %v2386, 2
      %v2480 = vsel %vm1399, %v2477, %v2479
      %2481 = vrot.lane.b32.xlu0 %v2464, 20
      %v2482 = vpop.permute.xlu0 %2481
      %2483 = vrot.lane.b32.xlu0 %v2466, 20
      %v2484 = vpop.permute.xlu0 %2483
      %2485 = vrot.lane.b32.xlu0 %v2468, 20
      %v2486 = vpop.permute.xlu0 %2485
      %2487 = vrot.lane.b32.xlu0 %v2470, 20
      %v2488 = vpop.permute.xlu0 %2487
      %2489 = vrot.lane.b32.xlu0 %v2472, 20
      %v2490 = vpop.permute.xlu0 %2489
      %2491 = vrot.lane.b32.xlu0 %v2474, 20
      %v2492 = vpop.permute.xlu0 %2491
      %2493 = vrot.lane.b32.xlu0 %v2476, 20
      %v2494 = vpop.permute.xlu0 %2493
      %2495 = vrot.lane.b32.xlu0 %v2478, 20
      %v2496 = vpop.permute.xlu0 %2495
      %2497 = vrot.lane.b32.xlu0 %v2480, 20
      %v2498 = vpop.permute.xlu0 %2497
      %v2503 = vunpack.c.l.b16 %v2161
      %v2504 = vunpack.c.l.b16 %v2162
      %v2505 = vunpack.c.l.b16 %v2163
      %v2506 = vunpack.c.l.b16 %v2164
      %v2507 = vpack.c.b16 %v2190, %v2503
      %v2508 = vpack.c.b16 %v2505, %v2504
      %v2509 = vpack.c.b16 %v2506, %v2506
      %v2510 = vrot.slane %v2507, 2
      %v2511 = vsel %vm1399, %v2510, %v2465
      %v2512 = vrot.slane %v2508, 2
      %v2513 = vsel %vm1399, %v2477, %v2512
      %v2514 = vrot.slane %v2509, 2
      %v2515 = vsel %vm1399, %v2512, %v2514
      %2516 = vrot.lane.b32.xlu0 %v2511, 24
      %v2517 = vpop.permute.xlu0 %2516
      %2518 = vrot.lane.b32.xlu0 %v2468, 24
      %v2519 = vpop.permute.xlu0 %2518
      %2520 = vrot.lane.b32.xlu0 %v2470, 24
      %v2521 = vpop.permute.xlu0 %2520
      %2522 = vrot.lane.b32.xlu0 %v2472, 24
      %v2523 = vpop.permute.xlu0 %2522
      %2524 = vrot.lane.b32.xlu0 %v2474, 24
      %v2525 = vpop.permute.xlu0 %2524
      %2526 = vrot.lane.b32.xlu0 %v2476, 24
      %v2527 = vpop.permute.xlu0 %2526
      %2528 = vrot.lane.b32.xlu0 %v2478, 24
      %v2529 = vpop.permute.xlu0 %2528
      %2530 = vrot.lane.b32.xlu0 %v2513, 24
      %v2531 = vpop.permute.xlu0 %2530
      %2532 = vrot.lane.b32.xlu0 %v2515, 24
      %v2533 = vpop.permute.xlu0 %2532
      %v2535 = vunpack.c.l.b16 %v2165
      %v2536 = vpack.c.b16 %v2535, %v2535
      %v2538 = vshrl.u32 %v2507, 16
      %v2540 = vrot.slane %v2538, 2
      %v2541 = vshll.u32 %v2507, 16
      %v2543 = vrot.slane %v2541, 3
      %v2544 = vor.u32 %v2540, %v2543
      %v2545 = vrot.slane %v2243, 2
      %v2546 = vrot.slane %v2239, 3
      %v2547 = vor.u32 %v2545, %v2546
      %v2548 = vsel %vm1475, %v2544, %v2547
      %v2549 = vrot.slane %v2251, 2
      %v2550 = vrot.slane %v2247, 3
      %v2551 = vor.u32 %v2549, %v2550
      %v2552 = vsel %vm1475, %v2547, %v2551
      %v2553 = vrot.slane %v2259, 2
      %v2554 = vrot.slane %v2255, 3
      %v2555 = vor.u32 %v2553, %v2554
      %v2556 = vsel %vm1475, %v2551, %v2555
      %v2557 = vrot.slane %v2267, 2
      %v2558 = vrot.slane %v2263, 3
      %v2559 = vor.u32 %v2557, %v2558
      %v2560 = vsel %vm1475, %v2555, %v2559
      %v2561 = vrot.slane %v2275, 2
      %v2562 = vrot.slane %v2271, 3
      %v2563 = vor.u32 %v2561, %v2562
      %v2564 = vsel %vm1475, %v2559, %v2563
      %v2565 = vrot.slane %v2283, 2
      %v2566 = vrot.slane %v2279, 3
      %v2567 = vor.u32 %v2565, %v2566
      %v2568 = vsel %vm1475, %v2563, %v2567
      %v2569 = vrot.slane %v2424, 2
      %v2570 = vrot.slane %v2427, 3
      %v2571 = vor.u32 %v2569, %v2570
      %v2572 = vsel %vm1475, %v2567, %v2571
      %v2574 = vshrl.u32 %v2508, 16
      %v2576 = vrot.slane %v2574, 2
      %v2577 = vshll.u32 %v2508, 16
      %v2579 = vrot.slane %v2577, 3
      %v2580 = vor.u32 %v2576, %v2579
      %v2581 = vsel %vm1475, %v2571, %v2580
      %v2583 = vshrl.u32 %v2536, 16
      %v2585 = vrot.slane %v2583, 2
      %v2586 = vshll.u32 %v2536, 16
      %v2588 = vrot.slane %v2586, 3
      %v2589 = vor.u32 %v2585, %v2588
      %v2590 = vsel %vm1475, %v2580, %v2589
      %2591 = vrot.lane.b32.xlu0 %v2548, 28
      %v2592 = vpop.permute.xlu0 %2591
      %2593 = vrot.lane.b32.xlu0 %v2552, 28
      %v2594 = vpop.permute.xlu0 %2593
      %2595 = vrot.lane.b32.xlu0 %v2556, 28
      %v2596 = vpop.permute.xlu0 %2595
      %2597 = vrot.lane.b32.xlu0 %v2560, 28
      %v2598 = vpop.permute.xlu0 %2597
      %2599 = vrot.lane.b32.xlu0 %v2564, 28
      %v2600 = vpop.permute.xlu0 %2599
      %2601 = vrot.lane.b32.xlu0 %v2568, 28
      %v2602 = vpop.permute.xlu0 %2601
      %2603 = vrot.lane.b32.xlu0 %v2572, 28
      %v2604 = vpop.permute.xlu0 %2603
      %2605 = vrot.lane.b32.xlu0 %v2581, 28
      %v2606 = vpop.permute.xlu0 %2605
      %2607 = vrot.lane.b32.xlu0 %v2590, 28
      %v2608 = vpop.permute.xlu0 %2607
      %v2610 = vunpack.c.l.b16 %v2166
      %v2611 = vpack.c.b16 %v2190, %v2610
      %v2612 = vrot.slane %v2611, 3
      %v2613 = vrot.slane %v2206, 3
      %v2614 = vsel %vm1551, %v2612, %v2613
      %v2615 = vrot.slane %v2207, 3
      %v2616 = vsel %vm1551, %v2613, %v2615
      %v2617 = vrot.slane %v2208, 3
      %v2618 = vsel %vm1551, %v2615, %v2617
      %v2619 = vrot.slane %v2209, 3
      %v2620 = vsel %vm1551, %v2617, %v2619
      %v2621 = vrot.slane %v2210, 3
      %v2622 = vsel %vm1551, %v2619, %v2621
      %v2623 = vrot.slane %v2211, 3
      %v2624 = vsel %vm1551, %v2621, %v2623
      %v2625 = vrot.slane %v2358, 3
      %v2626 = vsel %vm1551, %v2623, %v2625
      %v2627 = vrot.slane %v2508, 3
      %v2628 = vsel %vm1551, %v2625, %v2627
      %v2629 = vrot.slane %v2536, 3
      %v2630 = vsel %vm1551, %v2627, %v2629
      %2631 = vrot.lane.b32.xlu0 %v2614, 32
      %v2632 = vpop.permute.xlu0 %2631
      %2633 = vrot.lane.b32.xlu0 %v2616, 32
      %v2634 = vpop.permute.xlu0 %2633
      %2635 = vrot.lane.b32.xlu0 %v2618, 32
      %v2636 = vpop.permute.xlu0 %2635
      %2637 = vrot.lane.b32.xlu0 %v2620, 32
      %v2638 = vpop.permute.xlu0 %2637
      %2639 = vrot.lane.b32.xlu0 %v2622, 32
      %v2640 = vpop.permute.xlu0 %2639
      %2641 = vrot.lane.b32.xlu0 %v2624, 32
      %v2642 = vpop.permute.xlu0 %2641
      %2643 = vrot.lane.b32.xlu0 %v2626, 32
      %v2644 = vpop.permute.xlu0 %2643
      %2645 = vrot.lane.b32.xlu0 %v2628, 32
      %v2646 = vpop.permute.xlu0 %2645
      %2647 = vrot.lane.b32.xlu0 %v2630, 32
      %v2648 = vpop.permute.xlu0 %2647
      %v2650 = vsel %vm1589, %v2203, %v2292
      %v2652 = vsel %vm1589, %v2204, %v2294
      %v2654 = vsel %vm1589, %v2205, %v2296
      %v2656 = vsel %vm1589, %v2206, %v2298
      %v2658 = vsel %vm1589, %v2207, %v2300
      %v2660 = vsel %vm1589, %v2208, %v2302
      %v2662 = vsel %vm1589, %v2209, %v2304
      %v2664 = vsel %vm1589, %v2210, %v2306
      %v2666 = vsel %vm1589, %v2211, %v2308
      %v2668 = vsel %vm1608, %v2650, %v2332
      %v2670 = vsel %vm1608, %v2652, %v2334
      %v2672 = vsel %vm1608, %v2654, %v2336
      %v2674 = vsel %vm1608, %v2656, %v2338
      %v2676 = vsel %vm1608, %v2658, %v2340
      %v2678 = vsel %vm1608, %v2660, %v2342
      %v2680 = vsel %vm1608, %v2662, %v2344
      %v2682 = vsel %vm1608, %v2664, %v2346
      %v2684 = vsel %vm1608, %v2666, %v2348
      %v2686 = vsel %vm1627, %v2668, %v2367
      %v2688 = vsel %vm1627, %v2670, %v2369
      %v2690 = vsel %vm1627, %v2672, %v2371
      %v2692 = vsel %vm1627, %v2674, %v2373
      %v2694 = vsel %vm1627, %v2676, %v2375
      %v2696 = vsel %vm1627, %v2678, %v2377
      %v2698 = vsel %vm1627, %v2680, %v2379
      %v2700 = vsel %vm1627, %v2682, %v2381
      %v2702 = vsel %vm1627, %v2684, %v2383
      %v2704 = vsel %vm1646, %v2686, %v2442
      %v2706 = vsel %vm1646, %v2688, %v2444
      %v2708 = vsel %vm1646, %v2690, %v2446
      %v2710 = vsel %vm1646, %v2692, %v2448
      %v2712 = vsel %vm1646, %v2694, %v2450
      %v2714 = vsel %vm1646, %v2696, %v2452
      %v2716 = vsel %vm1646, %v2698, %v2454
      %v2718 = vsel %vm1646, %v2700, %v2456
      %v2720 = vsel %vm1646, %v2702, %v2458
      %v2722 = vsel %vm1665, %v2704, %v2482
      %v2724 = vsel %vm1665, %v2706, %v2484
      %v2726 = vsel %vm1665, %v2708, %v2486
      %v2728 = vsel %vm1665, %v2710, %v2488
      %v2730 = vsel %vm1665, %v2712, %v2490
      %v2732 = vsel %vm1665, %v2714, %v2492
      %v2734 = vsel %vm1665, %v2716, %v2494
      %v2736 = vsel %vm1665, %v2718, %v2496
      %v2738 = vsel %vm1665, %v2720, %v2498
      %v2740 = vsel %vm1684, %v2722, %v2517
      %v2742 = vsel %vm1684, %v2724, %v2519
      %v2744 = vsel %vm1684, %v2726, %v2521
      %v2746 = vsel %vm1684, %v2728, %v2523
      %v2748 = vsel %vm1684, %v2730, %v2525
      %v2750 = vsel %vm1684, %v2732, %v2527
      %v2752 = vsel %vm1684, %v2734, %v2529
      %v2754 = vsel %vm1684, %v2736, %v2531
      %v2756 = vsel %vm1684, %v2738, %v2533
      %v2758 = vsel %vm1703, %v2740, %v2592
      %v2760 = vsel %vm1703, %v2742, %v2594
      %v2762 = vsel %vm1703, %v2744, %v2596
      %v2764 = vsel %vm1703, %v2746, %v2598
      %v2766 = vsel %vm1703, %v2748, %v2600
      %v2768 = vsel %vm1703, %v2750, %v2602
      %v2770 = vsel %vm1703, %v2752, %v2604
      %v2772 = vsel %vm1703, %v2754, %v2606
      %v2774 = vsel %vm1703, %v2756, %v2608
      %v2776 = vsel %vm1722, %v2758, %v2632
      %v2778 = vsel %vm1722, %v2760, %v2634
      %v2780 = vsel %vm1722, %v2762, %v2636
      %v2782 = vsel %vm1722, %v2764, %v2638
      %v2784 = vsel %vm1722, %v2766, %v2640
      %v2786 = vsel %vm1722, %v2768, %v2642
      %v2788 = vsel %vm1722, %v2770, %v2644
      %v2790 = vsel %vm1722, %v2772, %v2646
      %v2792 = vsel %vm1722, %v2774, %v2648
      %v2793 = vld [vmem:[%s3] sm:$0xf]
      %v2794 = vld [vmem:[%s3 + $0x4] sm:$0xf]
      %v2795 = vld [vmem:[%s3 + $0x8] sm:$0xf]
      %v2796 = vld [vmem:[%s3 + $0xc] sm:$0xf]
      %v2797 = vld [vmem:[%s3 + $0x10] sm:$0x3]
      %v2803 = vunpack.c.l.b16 %v2793
      %v2804 = vunpack.c.l.b16 %v2794
      %v2805 = vunpack.c.l.b16 %v2795
      %v2806 = vunpack.c.l.b16 %v2796
      %v2807 = vunpack.c.l.b16 %v2797
      %v2808 = vpack.c.b16 %v2804, %v2803
      %v2809 = vpack.c.b16 %v2806, %v2805
      %v2810 = vpack.c.b16 %v2807, %v2807
      %v2813 = vsel %vm1761, %v2776, 0
      %v2815 = vsel %vm1761, %v2778, 0
      %v2817 = vsel %vm1761, %v2780, 0
      %v2819 = vsel %vm1761, %v2782, 0
      %v2821 = vsel %vm1761, %v2784, 0
      %v2823 = vsel %vm1761, %v2786, 0
      %v2825 = vsel %vm1761, %v2788, 0
      %v2827 = vsel %vm1761, %v2790, 0
      %v2829 = vsel %vm1761, %v2792, 0
      %v2832 = vsel %vm1780, %v2810, 0
      %2834 = vmatprep.subr.bf16.mxu0 0
      %2835 = vmatpush1.bf16.msra.mxu0 %v2808
      %2836 = vmatprep.subr.bf16.mxu0 0
      %2837 = vmatpush1.bf16.msra.mxu0 %v2809
      %2838 = vmatprep.subr.bf16.mxu0 0
      %2839 = vmatpush1.bf16.msra.mxu0 %v2832
      %2840 = vmatprep.subr.bf16.mxu0 0
      %2841 = vmatpush1.bf16.msra.mxu0 0
      %2842 = vmatprep.subr.bf16.mxu0 0
      %2843 = vmatpush1.bf16.msra.mxu0 0
      %2844 = vmatprep.subr.bf16.mxu0 0
      %2845 = vmatpush1.bf16.msra.mxu0 0
      %2846 = vmatprep.subr.bf16.mxu0 0
      %2847 = vmatpush1.bf16.msra.mxu0 0
      %2848 = vmatprep.subr.bf16.mxu0 0
      %2849 = vmatpush1.bf16.msra.mxu0 0
      %2850 = vmatprep.subr.bf16.mxu0 0
      %2851 = vmatpush1.bf16.msra.mxu0 0
      %2852 = vmatprep.subr.bf16.mxu0 0
      %2853 = vmatpush1.bf16.msra.mxu0 0
      %2854 = vmatprep.subr.bf16.mxu0 0
      %2855 = vmatpush1.bf16.msra.mxu0 0
      %2856 = vmatprep.subr.bf16.mxu0 0
      %2857 = vmatpush1.bf16.msra.mxu0 0
      %2858 = vmatprep.subr.bf16.mxu0 0
      %2859 = vmatpush1.bf16.msra.mxu0 0
      %2860 = vmatprep.subr.bf16.mxu0 0
      %2861 = vmatpush1.bf16.msra.mxu0 0
      %2862 = vmatprep.subr.bf16.mxu0 0
      %2863 = vmatpush1.bf16.msra.mxu0 0
      %2864 = vmatprep.subr.bf16.mxu0 0
      %2865 = vmatpush1.bf16.msra.mxu0 0
      %2866 = vmatprep.mubr.bf16.mxu0 0
      %2867 = vmatmul.mubr.bf16.gmra.mrb[0].mxu0 %v2813
      %v2868 = vpop.f32.mrb[0].mxu0
      %v2869 = vadd.f32 0.0, %v2868
      %v2870 = vpop.f32.mrb[0].mxu0
      %v2871 = vpop.f32.mrb[0].mxu0
      %v2872 = vadd.f32 0.0, %v2871
      %v2873 = vpop.f32.mrb[0].mxu0
      %2874 = vmatprep.mubr.bf16.mxu0 0
      %2875 = vmatmul.mubr.bf16.gmra.mrb[0].mxu0 %v2815
      %v2876 = vpop.f32.mrb[0].mxu0
      %v2877 = vadd.f32 0.0, %v2876
      %v2878 = vpop.f32.mrb[0].mxu0
      %v2879 = vpop.f32.mrb[0].mxu0
      %v2880 = vadd.f32 0.0, %v2879
      %v2881 = vpop.f32.mrb[0].mxu0
      %2882 = vmatprep.mubr.bf16.mxu0 0
      %2883 = vmatmul.mubr.bf16.gmra.mrb[0].mxu0 %v2817
      %v2884 = vpop.f32.mrb[0].mxu0
      %v2885 = vadd.f32 0.0, %v2884
      %v2886 = vpop.f32.mrb[0].mxu0
      %v2887 = vpop.f32.mrb[0].mxu0
      %v2888 = vadd.f32 0.0, %v2887
      %v2889 = vpop.f32.mrb[0].mxu0
      %2890 = vmatprep.mubr.bf16.mxu0 0
      %2891 = vmatmul.mubr.bf16.gmra.mrb[0].mxu0 %v2819
      %v2892 = vpop.f32.mrb[0].mxu0
      %v2893 = vadd.f32 0.0, %v2892
      %v2894 = vpop.f32.mrb[0].mxu0
      %v2895 = vpop.f32.mrb[0].mxu0
      %v2896 = vadd.f32 0.0, %v2895
      %v2897 = vpop.f32.mrb[0].mxu0
      %2898 = vmatprep.mubr.bf16.mxu0 0
      %2899 = vmatmul.mubr.bf16.gmra.mrb[0].mxu0 %v2821
      %v2900 = vpop.f32.mrb[0].mxu0
      %v2901 = vadd.f32 0.0, %v2900
      %v2902 = vpop.f32.mrb[0].mxu0
      %v2903 = vpop.f32.mrb[0].mxu0
      %v2904 = vadd.f32 0.0, %v2903
      %v2905 = vpop.f32.mrb[0].mxu0
      %2906 = vmatprep.mubr.bf16.mxu0 0
      %2907 = vmatmul.mubr.bf16.gmra.mrb[0].mxu0 %v2823
      %v2908 = vpop.f32.mrb[0].mxu0
      %v2909 = vadd.f32 0.0, %v2908
      %v2910 = vpop.f32.mrb[0].mxu0
      %v2911 = vpop.f32.mrb[0].mxu0
      %v2912 = vadd.f32 0.0, %v2911
      %v2913 = vpop.f32.mrb[0].mxu0
      %2914 = vmatprep.mubr.bf16.mxu0 0
      %2915 = vmatmul.mubr.bf16.gmra.mrb[0].mxu0 %v2825
      %v2916 = vpop.f32.mrb[0].mxu0
      %v2917 = vadd.f32 0.0, %v2916
      %v2918 = vpop.f32.mrb[0].mxu0
      %v2919 = vpop.f32.mrb[0].mxu0
      %v2920 = vadd.f32 0.0, %v2919
      %v2921 = vpop.f32.mrb[0].mxu0
      %2922 = vmatprep.mubr.bf16.mxu0 0
      %2923 = vmatmul.mubr.bf16.gmra.mrb[0].mxu0 %v2827
      %v2924 = vpop.f32.mrb[0].mxu0
      %v2925 = vadd.f32 0.0, %v2924
      %v2926 = vpop.f32.mrb[0].mxu0
      %v2927 = vpop.f32.mrb[0].mxu0
      %v2928 = vadd.f32 0.0, %v2927
      %v2929 = vpop.f32.mrb[0].mxu0
      %2930 = vmatprep.mubr.bf16.mxu0 0
      %2931 = vmatmul.mubr.bf16.gmra.mrb[0].mxu0 %v2829
      %v2932 = vpop.f32.mrb[0].mxu0
      %v2933 = vadd.f32 0.0, %v2932
      %v2934 = vpop.f32.mrb[0].mxu0
      %v2935 = vpop.f32.mrb[0].mxu0
      %v2936 = vadd.f32 0.0, %v2935
      %v2937 = vpop.f32.mrb[0].mxu0
      %2938 = vdwg.mxu0
      %v2942 = vrot.slane %v2877, 2
      %v2943 = vrot.slane %v2880, 2
      %v2944 = vsel %vm1892, %v2942, %v2943
      %v2945 = vrot.slane %v2885, 2
      %v2946 = vsel %vm1892, %v2943, %v2945
      %v2951 = vrot.slane %v2885, 4
      %v2952 = vrot.slane %v2888, 4
      %v2953 = vsel %vm1902, %v2951, %v2952
      %v2954 = vrot.slane %v2893, 4
      %v2955 = vsel %vm1902, %v2952, %v2954
      %v2960 = vrot.slane %v2893, 6
      %v2961 = vrot.slane %v2896, 6
      %v2962 = vsel %vm1780, %v2960, %v2961
      %v2963 = vrot.slane %v2901, 6
      %v2964 = vsel %vm1780, %v2961, %v2963
      %v2970 = vrot.slane %v2912, 2
      %v2971 = vrot.slane %v2917, 2
      %v2972 = vsel %vm1892, %v2970, %v2971
      %v2973 = vrot.slane %v2920, 2
      %v2974 = vsel %vm1892, %v2971, %v2973
      %v2979 = vrot.slane %v2920, 4
      %v2980 = vrot.slane %v2925, 4
      %v2981 = vsel %vm1902, %v2979, %v2980
      %v2982 = vrot.slane %v2928, 4
      %v2983 = vsel %vm1902, %v2980, %v2982
      %v2988 = vrot.slane %v2928, 6
      %v2989 = vrot.slane %v2933, 6
      %v2990 = vsel %vm1780, %v2988, %v2989
      %v2991 = vrot.slane %v2936, 6
      %v2992 = vsel %vm1780, %v2989, %v2991
      %v2995 = vpack.c.bf16 %v2872, %v2869
      %v2996 = vpack.c.bf16 %v2946, %v2944
      %v2997 = vpack.c.bf16 %v2955, %v2953
      %v2998 = vpack.c.bf16 %v2964, %v2962
      %v2999 = vpack.c.bf16 %v2909, %v2904
      %v3000 = vpack.c.bf16 %v2974, %v2972
      %v3001 = vpack.c.bf16 %v2983, %v2981
      %v3002 = vpack.c.bf16 %v2992, %v2990
      %v3011 = vunpack.c.l.b16 %v2995
      %v3012 = vunpack.c.h.b16 %v2995
      %v3013 = vunpack.c.l.b16 %v2996
      %v3014 = vunpack.c.h.b16 %v2996
      %v3015 = vunpack.c.l.b16 %v2997
      %v3016 = vunpack.c.h.b16 %v2997
      %v3017 = vunpack.c.l.b16 %v2998
      %v3018 = vunpack.c.h.b16 %v2998
      %v3019 = vunpack.c.l.b16 %v2999
      %v3020 = vunpack.c.h.b16 %v2999
      %v3021 = vunpack.c.l.b16 %v3000
      %v3022 = vunpack.c.h.b16 %v3000
      %v3023 = vunpack.c.l.b16 %v3001
      %v3024 = vunpack.c.h.b16 %v3001
      %v3025 = vunpack.c.l.b16 %v3002
      %v3026 = vunpack.c.h.b16 %v3002
      %v3027 = vpack.c.b16 %v3011, %v3011
      %v3028 = vpack.c.b16 %v3012, %v3012
      %v3029 = vpack.c.b16 %v3013, %v3013
      %v3030 = vpack.c.b16 %v3014, %v3014
      %v3031 = vpack.c.b16 %v3015, %v3015
      %v3032 = vpack.c.b16 %v3016, %v3016
      %v3033 = vpack.c.b16 %v3017, %v3017
      %v3034 = vpack.c.b16 %v3018, %v3018
      %v3035 = vpack.c.b16 %v3019, %v3019
      %v3036 = vpack.c.b16 %v3020, %v3020
      %v3037 = vpack.c.b16 %v3021, %v3021
      %v3038 = vpack.c.b16 %v3022, %v3022
      %v3039 = vpack.c.b16 %v3023, %v3023
      %v3040 = vpack.c.b16 %v3024, %v3024
      %v3041 = vpack.c.b16 %v3025, %v3025
      %v3042 = vpack.c.b16 %v3026, %v3026
      %3059 = vst.msk [vmem:[%s262 + $0x40] sm:$0xf] %vm270, %v3027
      %3060 = vst.msk [vmem:[%s262 + $0x44] sm:$0xf] %vm270, %v3028
      %3061 = vst.msk [vmem:[%s262 + $0x48] sm:$0xf] %vm270, %v3029
      %3062 = vst.msk [vmem:[%s262 + $0x4c] sm:$0xf] %vm270, %v3030
      %3063 = vst.msk [vmem:[%s262 + $0x50] sm:$0xf] %vm270, %v3031
      %3064 = vst.msk [vmem:[%s262 + $0x54] sm:$0xf] %vm270, %v3032
      %3065 = vst.msk [vmem:[%s262 + $0x58] sm:$0xf] %vm270, %v3033
      %3066 = vst.msk [vmem:[%s262 + $0x5c] sm:$0xf] %vm270, %v3034
      %3067 = vst.msk [vmem:[%s262 + $0x60] sm:$0xf] %vm270, %v3035
      %3068 = vst.msk [vmem:[%s262 + $0x64] sm:$0xf] %vm270, %v3036
      %3069 = vst.msk [vmem:[%s262 + $0x68] sm:$0xf] %vm270, %v3037
      %3070 = vst.msk [vmem:[%s262 + $0x6c] sm:$0xf] %vm270, %v3038
      %3071 = vst.msk [vmem:[%s262 + $0x70] sm:$0xf] %vm270, %v3039
      %3072 = vst.msk [vmem:[%s262 + $0x74] sm:$0xf] %vm270, %v3040
      %3073 = vst.msk [vmem:[%s262 + $0x78] sm:$0xf] %vm270, %v3041
      %3074 = vst.msk [vmem:[%s262 + $0x7c] sm:$0xf] %vm270, %v3042
      %v3075 = vunpack.c.l.bf16 %v2995
      %v3076 = vunpack.c.h.bf16 %v2995
      %v3077 = vunpack.c.l.bf16 %v2996
      %v3078 = vunpack.c.h.bf16 %v2996
      %v3079 = vunpack.c.l.bf16 %v2997
      %v3080 = vunpack.c.h.bf16 %v2997
      %v3081 = vunpack.c.l.bf16 %v2998
      %v3082 = vunpack.c.h.bf16 %v2998
      %v3083 = vunpack.c.l.bf16 %v2999
      %v3084 = vunpack.c.h.bf16 %v2999
      %v3085 = vunpack.c.l.bf16 %v3000
      %v3086 = vunpack.c.h.bf16 %v3000
      %v3087 = vunpack.c.l.bf16 %v3001
      %v3088 = vunpack.c.h.bf16 %v3001
      %v3089 = vunpack.c.l.bf16 %v3002
      %v3090 = vunpack.c.h.bf16 %v3002
      %v3091 = vsel %vm1589, %v3075, 0.0
      %v3092 = vsel %vm1589, %v3076, 0.0
      %v3093 = vadd.f32 %v3091, %v3092
      %v3094 = vsel %vm1589, %v3077, 0.0
      %v3095 = vadd.f32 %v3093, %v3094
      %v3096 = vsel %vm1589, %v3078, 0.0
      %v3097 = vadd.f32 %v3095, %v3096
      %v3098 = vsel %vm1589, %v3079, 0.0
      %v3099 = vadd.f32 %v3097, %v3098
      %v3100 = vsel %vm1589, %v3080, 0.0
      %v3101 = vadd.f32 %v3099, %v3100
      %v3102 = vsel %vm1589, %v3081, 0.0
      %v3103 = vadd.f32 %v3101, %v3102
      %v3104 = vsel %vm1589, %v3082, 0.0
      %v3105 = vadd.f32 %v3103, %v3104
      %v3106 = vsel %vm1589, %v3083, 0.0
      %v3107 = vadd.f32 %v3105, %v3106
      %v3108 = vsel %vm1589, %v3084, 0.0
      %v3109 = vadd.f32 %v3107, %v3108
      %v3110 = vsel %vm1589, %v3085, 0.0
      %v3111 = vadd.f32 %v3109, %v3110
      %v3112 = vsel %vm1589, %v3086, 0.0
      %v3113 = vadd.f32 %v3111, %v3112
      %v3114 = vsel %vm1589, %v3087, 0.0
      %v3115 = vadd.f32 %v3113, %v3114
      %v3116 = vsel %vm1589, %v3088, 0.0
      %v3117 = vadd.f32 %v3115, %v3116
      %v3118 = vsel %vm1589, %v3089, 0.0
      %v3119 = vadd.f32 %v3117, %v3118
      %v3120 = vsel %vm1589, %v3090, 0.0
      %v3121 = vadd.f32 %v3119, %v3120
      %v3122 = vrot.slane %v3121, 4
      %v3123 = vadd.f32 %v3121, %v3122
      %v3124 = vrot.slane %v3123, 2
      %v3125 = vadd.f32 %v3123, %v3124
      %v3126 = vrot.slane %v3125, 1
      %v3127 = vadd.f32 %v3125, %v3126
      %v3128 = vadd.f32 %v2080, %v3127
      %v3129 = vmul.f32 %v3075, %v3075
      %v3130 = vmul.f32 %v3076, %v3076
      %v3131 = vmul.f32 %v3077, %v3077
      %v3132 = vmul.f32 %v3078, %v3078
      %v3133 = vmul.f32 %v3079, %v3079
      %v3134 = vmul.f32 %v3080, %v3080
      %v3135 = vmul.f32 %v3081, %v3081
      %v3136 = vmul.f32 %v3082, %v3082
      %v3137 = vmul.f32 %v3083, %v3083
      %v3138 = vmul.f32 %v3084, %v3084
      %v3139 = vmul.f32 %v3085, %v3085
      %v3140 = vmul.f32 %v3086, %v3086
      %v3141 = vmul.f32 %v3087, %v3087
      %v3142 = vmul.f32 %v3088, %v3088
      %v3143 = vmul.f32 %v3089, %v3089
      %v3144 = vmul.f32 %v3090, %v3090
      %v3145 = vsel %vm1589, %v3129, 0.0
      %v3146 = vsel %vm1589, %v3130, 0.0
      %v3147 = vadd.f32 %v3145, %v3146
      %v3148 = vsel %vm1589, %v3131, 0.0
      %v3149 = vadd.f32 %v3147, %v3148
      %v3150 = vsel %vm1589, %v3132, 0.0
      %v3151 = vadd.f32 %v3149, %v3150
      %v3152 = vsel %vm1589, %v3133, 0.0
      %v3153 = vadd.f32 %v3151, %v3152
      %v3154 = vsel %vm1589, %v3134, 0.0
      %v3155 = vadd.f32 %v3153, %v3154
      %v3156 = vsel %vm1589, %v3135, 0.0
      %v3157 = vadd.f32 %v3155, %v3156
      %v3158 = vsel %vm1589, %v3136, 0.0
      %v3159 = vadd.f32 %v3157, %v3158
      %v3160 = vsel %vm1589, %v3137, 0.0
      %v3161 = vadd.f32 %v3159, %v3160
      %v3162 = vsel %vm1589, %v3138, 0.0
      %v3163 = vadd.f32 %v3161, %v3162
      %v3164 = vsel %vm1589, %v3139, 0.0
      %v3165 = vadd.f32 %v3163, %v3164
      %v3166 = vsel %vm1589, %v3140, 0.0
      %v3167 = vadd.f32 %v3165, %v3166
      %v3168 = vsel %vm1589, %v3141, 0.0
      %v3169 = vadd.f32 %v3167, %v3168
      %v3170 = vsel %vm1589, %v3142, 0.0
      %v3171 = vadd.f32 %v3169, %v3170
      %v3172 = vsel %vm1589, %v3143, 0.0
      %v3173 = vadd.f32 %v3171, %v3172
      %v3174 = vsel %vm1589, %v3144, 0.0
      %v3175 = vadd.f32 %v3173, %v3174
      %v3176 = vrot.slane %v3175, 4
      %v3177 = vadd.f32 %v3175, %v3176
      %v3178 = vrot.slane %v3177, 2
      %v3179 = vadd.f32 %v3177, %v3178
      %v3180 = vrot.slane %v3179, 1
      %v3181 = vadd.f32 %v3179, %v3180
      %v3182 = vadd.f32 %v2134, %v3181
      %vm3183 = vcmask 24576
      %3184 = vst.msk [vmem:[%s265] sm:$0x1] %vm3183, %v3128
      %3185 = vst.msk [vmem:[%s268] sm:$0x1] %vm3183, %v3182
      %p3186 = scmp.lt.s32.totalorder %s18, 1
      %s3187 = scalar_select %p3186, %s18, 1
      %s3188 = smul.addr %s3187, 32
      %s3189 = smul.addr %s3188, 4
      %s3190 = scalar_lea.vmem %s4, %s3189
      %p3191 = scmp.lt.s32.totalorder %s18, 1
      %s3192 = scalar_select %p3191, %s18, 1
      %s3193 = scalar_lea.vmem %s5, %s3192
      %p3194 = scmp.lt.s32.totalorder %s18, 1
      %s3195 = scalar_select %p3194, %s18, 1
      %s3196 = scalar_lea.vmem %s6, %s3195
      // Predicated region
      $region37: #{bottleneck_forward.5} parent=35 // pred_check
        %p3197 = pneg %p125
      $region38: #{bottleneck_forward.5} parent=35 // pred_check_branch
        %3199 = sbr.rel (%p3197) target = $region40
      $region39: #{bottleneck_forward.5} parent=35 // pred_region
        _
      $region40: #{bottleneck_forward.5} parent=35 // pred_fallthru
        _
      // Predicated region
      $region41: #{bottleneck_forward.5} parent=35 // pred_check
        %p3200 = pneg %p151
      $region42: #{bottleneck_forward.5} parent=35 // pred_check_branch
        %3202 = sbr.rel (%p3200) target = $region44
      $region43: #{bottleneck_forward.5} parent=35 // pred_region
        _
      $region44: #{bottleneck_forward.5} parent=35 // pred_fallthru
        _
      // Predicated region
      $region45: #{bottleneck_forward.5} parent=35 // pred_check
        %p3203 = pneg %p177
      $region46: #{bottleneck_forward.5} parent=35 // pred_check_branch
        %3205 = sbr.rel (%p3203) target = $region48
      $region47: #{bottleneck_forward.5} parent=35 // pred_region
        _
      $region48: #{bottleneck_forward.5} parent=35 // pred_fallthru
        _
    $region36: #{bottleneck_forward.5} parent=5 // pred_fallthru
      _
    %p3206 = scmp.le.s32.totalorder 2, %s13
    // Predicated region
    $region49: #{bottleneck_forward.5} parent=5 // pred_check
      %p3207 = pneg %p3206
    $region50: #{bottleneck_forward.5} parent=5 // pred_check_branch
      %3209 = sbr.rel (%p3207) target = $region52
    $region51: #{bottleneck_forward.5} parent=5 // pred_region
      %s3210 = ssub.s32 %s13, 2
      // Predicated region
      $region53: #{bottleneck_forward.5} parent=51 // pred_check
        %p3211 = pneg %p131
      $region54: #{bottleneck_forward.5} parent=51 // pred_check_branch
        %3213 = sbr.rel (%p3211) target = $region56
      $region55: #{bottleneck_forward.5} parent=51 // pred_region
        %p3214 = scmp.lt.s32.totalorder %s19, 1
        %s3215 = scalar_select %p3214, %s19, 1
        %s3216 = smul.addr %s3215, 32
        %s3217 = smul.addr %s3216, 4
        %s3218 = scalar_lea.vmem %s4, %s3217
      $region56: #{bottleneck_forward.5} parent=51 // pred_fallthru
        _
      // Predicated region
      $region57: #{bottleneck_forward.5} parent=51 // pred_check
        %p3219 = pneg %p157
      $region58: #{bottleneck_forward.5} parent=51 // pred_check_branch
        %3221 = sbr.rel (%p3219) target = $region60
      $region59: #{bottleneck_forward.5} parent=51 // pred_region
        %p3222 = scmp.lt.s32.totalorder %s19, 1
        %s3223 = scalar_select %p3222, %s19, 1
        %s3224 = scalar_lea.vmem %s5, %s3223
      $region60: #{bottleneck_forward.5} parent=51 // pred_fallthru
        _
      // Predicated region
      $region61: #{bottleneck_forward.5} parent=51 // pred_check
        %p3225 = pneg %p183
      $region62: #{bottleneck_forward.5} parent=51 // pred_check_branch
        %3227 = sbr.rel (%p3225) target = $region64
      $region63: #{bottleneck_forward.5} parent=51 // pred_region
        %p3228 = scmp.lt.s32.totalorder %s19, 1
        %s3229 = scalar_select %p3228, %s19, 1
        %s3230 = scalar_lea.vmem %s6, %s3229
      $region64: #{bottleneck_forward.5} parent=51 // pred_fallthru
        _
    $region52: #{bottleneck_forward.5} parent=5 // pred_fallthru
      _
  $region6: #{bottleneck_forward.5} parent=0 // loop_footer
    %s17 = sadd.s32 1, %s13
  $region7: #{bottleneck_forward.5} parent=0 // loop_footer_branch
    %12 = sbr.rel target = $region3
  $region8: #{bottleneck_forward.5} parent=0 // loop_exit
    _

</llo_original>
